<compile_context>
chip_gen: v5e
topology: v5e:2x2
jax: 0.10.0
libtpu: 0.0.40
codegen_flags: <defaults>
</compile_context>

<pallas_src>
import functools
import math

import jax
import jax.numpy as jnp
from jax.experimental import pallas as pl
from jax.experimental.pallas import tpu as pltpu

# ------------------------- small synthetic config ---------------------------
IMG = 64            # upscale target (stands in for 224 in F.interpolate)
PATCH = 16          # ViTMAE patch size
CIN = 3             # image channels
PDIM = CIN * PATCH * PATCH
HID = 128           # embedding_dim (stands in for 768)
HEADS = 4           # attention heads (stands in for 12)
DHEAD = HID // HEADS
LAYERS = 2          # encoder layers (stands in for 12)
INTER = 256         # FFN intermediate size (stands in for 3072)
FEAT = 64           # projection feat_dim (stands in for 128)
MASK_RATIO = 0.75   # ViTMAE random-masking ratio
NPATCH = (IMG // PATCH) ** 2
LEN_KEEP = int(NPATCH * (1.0 - MASK_RATIO))
SEQ = LEN_KEEP + 1  # +1 CLS token
SEQ_PAD = 8         # per-sample rows padded to a sublane multiple
LN_EPS = 1e-5       # roberta layer_norm_eps
PAD_IDX = 1         # roberta padding_idx (position ids start at PAD_IDX + 1)
NEG_INF = -1e9

assert SEQ_PAD >= SEQ and (SEQ_PAD & (SEQ_PAD - 1)) == 0
_SHIFT = SEQ_PAD.bit_length() - 1

_VMEM = pl.BlockSpec(memory_space=pltpu.MemorySpace.VMEM)


# ------------------------------ fused kernel --------------------------------
def _layernorm(x, gamma, beta, eps=LN_EPS):
    mu = jnp.mean(x, axis=-1, keepdims=True)
    xc = x - mu
    var = jnp.mean(xc * xc, axis=-1, keepdims=True)
    return xc * jax.lax.rsqrt(var + eps) * gamma + beta


def _fused_kernel(
        # data (already laid out as padded per-sample slabs)
        patches_ref, add_ref,
        # patch embed + embedding LayerNorm
        pw_ref, eg_ref, eb_ref,
        # encoder layers (stacked on a leading LAYERS axis)
        wqkv_ref, bqkv_ref, wo_ref, bo_ref, g1_ref, b1_ref,
        wi_ref, bi_ref, wo2_ref, bo2_ref, g2_ref, b2_ref,
        # projection head (lane-padded to 128)
        hw1_ref, hb1_ref, hw2_ref, hb2_ref,
        # output (rows, HID) lane-dense slab
        out_ref):
    rows = patches_ref.shape[0]                    # batch * SEQ_PAD

    # ---- patch embedding directly into the padded slab layout ----
    # CLS / pad rows of patches are zero; all additive embedding terms (CLS
    # token, ViT pos, Roberta token-type/pos, patch-embed bias) are in add_ref.
    x = jnp.dot(patches_ref[...], pw_ref[...],
                preferred_element_type=jnp.float32) + add_ref[...]

    # ---- Roberta embedding LayerNorm ----
    x = _layernorm(x, eg_ref[...], eb_ref[...])

    # ---- static attention bias (hoisted out of the layer/head loops):
    # keys must belong to the same sample and to a real (non-pad) position.
    qi = jax.lax.broadcasted_iota(jnp.int32, (rows, rows), 0)
    kj = jax.lax.broadcasted_iota(jnp.int32, (rows, rows), 1)
    same_sample = (qi >> _SHIFT) == (kj >> _SHIFT)
    valid_key = (kj & (SEQ_PAD - 1)) < SEQ
    attn_bias = jnp.where(same_sample & valid_key, 0.0, NEG_INF).astype(
        jnp.float32)

    scale = 1.0 / math.sqrt(DHEAD)
    contract_last = (((1,), (1,)), ((), ()))       # q @ k^T without transpose

    # ---- encoder layers (statically unrolled, weights VMEM resident) ----
    for l in range(LAYERS):
        qkv = jnp.dot(x, wqkv_ref[l],
                      preferred_element_type=jnp.float32) + bqkv_ref[l]
        q = qkv[:, 0 * HID:1 * HID] * scale
        k = qkv[:, 1 * HID:2 * HID]
        v = qkv[:, 2 * HID:3 * HID]

        wol = wo_ref[l]                            # (HID, HID)
        acc = None
        for h in range(HEADS):
            sl = slice(h * DHEAD, (h + 1) * DHEAD)
            qh, kh, vh = q[:, sl], k[:, sl], v[:, sl]
            s = jax.lax.dot_general(qh, kh, contract_last,
                                    preferred_element_type=jnp.float32)
            s = s + attn_bias
            s = s - jnp.max(s, axis=-1, keepdims=True)
            p = jnp.exp(s)
            p = p * pl.reciprocal(jnp.sum(p, axis=-1, keepdims=True),
                                  approx=True)
            ctx_h = jnp.dot(p, vh, preferred_element_type=jnp.float32)
            # fold the head-merge into the output projection:
            part = jnp.dot(ctx_h, wol[h * DHEAD:(h + 1) * DHEAD, :],
                           preferred_element_type=jnp.float32)
            acc = part if acc is None else acc + part
        attn_out = acc + bo_ref[l]
        x = _layernorm(attn_out + x, g1_ref[l], b1_ref[l])

        inter = jnp.dot(x, wi_ref[l],
                        preferred_element_type=jnp.float32) + bi_ref[l]
        # TODO(synk): Roberta uses exact erf-GELU; tanh approximation used here.
        inter = jax.nn.gelu(inter, approximate=True)
        ffn_out = jnp.dot(inter, wo2_ref[l],
                          preferred_element_type=jnp.float32) + bo2_ref[l]
        x = _layernorm(ffn_out + x, g2_ref[l], b2_ref[l])

    # ---- MLP head + F.normalize(dim=1) on the full slab (lane-dense store).
    # CLS rows are picked out in JAX afterwards (global_pool=False, pos 0);
    # W2 is zero-padded to 128 lanes, so the norm equals F.normalize over FEAT.
    h1 = jnp.dot(x, hw1_ref[...],
                 preferred_element_type=jnp.float32) + hb1_ref[...]
    h1 = jnp.maximum(h1, 0.0)
    y = jnp.dot(h1, hw2_ref[...],
                preferred_element_type=jnp.float32) + hb2_ref[...]
    ss = jnp.sum(y * y, axis=-1, keepdims=True)
    out_ref[...] = (y * jax.lax.rsqrt(jnp.maximum(ss, 1e-24))).astype(
        out_ref.dtype)


# ------------------------------ model forward --------------------------------
def forward(params, x, mask_noise):
    b = x.shape[0]
    rows = b * SEQ_PAD

    # F.interpolate(x, (IMG, IMG)) -- nearest-neighbour integer upscale (JAX glue).
    sh, sw = IMG // x.shape[2], IMG // x.shape[3]
    xu = jnp.repeat(jnp.repeat(x, sh, axis=2), sw, axis=3)

    # Patchify (Conv2d k=stride=PATCH == unfold); the matmul runs in-kernel.
    nh = IMG // PATCH
    patches = xu.reshape(b, CIN, nh, PATCH, nh, PATCH)
    patches = patches.transpose(0, 2, 4, 1, 3, 5).reshape(b, NPATCH, PDIM)

    # ViTMAE random masking applied BEFORE the patch-embed matmul (commutes).
    ids_shuffle = jnp.argsort(mask_noise, axis=1)
    ids_keep = ids_shuffle[:, :LEN_KEEP]                          # (b, LEN_KEEP)
    patches_keep = jnp.take_along_axis(patches, ids_keep[:, :, None], axis=1)

    # Padded patch slab: row 0 of each sample (CLS) and sublane-pad rows = 0.
    patch_slab = jnp.pad(
        patches_keep, ((0, 0), (1, SEQ_PAD - SEQ), (0, 0))).reshape(rows, PDIM)

    # Additive embedding slab (tiny gathers, folded into one add in-kernel):
    # ViT position embeddings of kept patches + Roberta token-type/position
    # + patch-embed bias; CLS row gets cls_token + vit_pos[0] + extra[0].
    pos_ids = jnp.arange(PAD_IDX + 1, PAD_IDX + 1 + SEQ)
    extra = params["rob_tok_type"][None, :] + params["rob_pos"][pos_ids]
    vit_pos_patch = params["vit_pos"][0, 1:, :]
    add_kept = (jnp.take(vit_pos_patch, ids_keep, axis=0)
                + extra[None, 1:SEQ, :]
                + params["patch_b"][None, :, :])                  # (b, LEN_KEEP, HID)
    cls_row = (params["cls_token"][0, 0] + params["vit_pos"][0, 0]
               + extra[0]).reshape(1, 1, HID)
    add_slab = jnp.concatenate(
        [jnp.broadcast_to(cls_row, (b, 1, HID)),
         add_kept,
         jnp.zeros((b, SEQ_PAD - SEQ, HID), jnp.float32)],
        axis=1).reshape(rows, HID)

    # Single fused Pallas kernel (patch embed -> encoder -> head -> normalize).
    out_slab = pl.pallas_call(
        _fused_kernel,
        out_shape=jax.ShapeDtypeStruct((rows, HID), jnp.float32),
        in_specs=[_VMEM] * 21,
        out_specs=_VMEM,
    )(patch_slab, add_slab,
      params["patch_w"],
      params["emb_ln_g"], params["emb_ln_b"],
      params["wqkv"], params["bqkv"], params["wo"], params["bo"],
      params["ln1_g"], params["ln1_b"],
      params["wi"], params["bi"], params["wo2"], params["bo2"],
      params["ln2_g"], params["ln2_b"],
      params["head_w1"], params["head_b1"],
      params["head_w2"], params["head_b2"])

    # global_pool=False -> CLS token (cls_token_pos = 0) of every sample.
    return out_slab.reshape(b, SEQ_PAD, HID)[:, 0, :FEAT]


# ------------------------------ parameter init --------------------------------
def init_params(key):
    keys = iter(jax.random.split(key, 64))

    def nrm(shape, std=0.02):
        return std * jax.random.normal(next(keys), shape, jnp.float32)

    def stack(fn):
        return jnp.stack([fn() for _ in range(LAYERS)], axis=0)

    params = {
        "patch_w": nrm((PDIM, HID)),
        "patch_b": jnp.zeros((1, HID), jnp.float32),
        # init.normal_(position_embeddings) in the module -> std 1.
        "vit_pos": jax.random.normal(next(keys), (1, NPATCH + 1, HID),
                                     jnp.float32),
        "cls_token": nrm((1, 1, HID)),
        "rob_tok_type": nrm((HID,)),
        # reference zeroes Roberta position embeddings (weight.data * 0).
        "rob_pos": jnp.zeros((SEQ + PAD_IDX + 2, HID), jnp.float32),
        "emb_ln_g": jnp.ones((1, HID), jnp.float32),
        "emb_ln_b": jnp.zeros((1, HID), jnp.float32),
        # encoder layers stacked on a leading LAYERS axis, QKV fused (N=384).
        "wqkv": stack(lambda: jnp.concatenate(
            [nrm((HID, HID)), nrm((HID, HID)), nrm((HID, HID))], axis=1)),
        "bqkv": jnp.zeros((LAYERS, 1, 3 * HID), jnp.float32),
        "wo": stack(lambda: nrm((HID, HID))),
        "bo": jnp.zeros((LAYERS, 1, HID), jnp.float32),
        "ln1_g": jnp.ones((LAYERS, 1, HID), jnp.float32),
        "ln1_b": jnp.zeros((LAYERS, 1, HID), jnp.float32),
        "wi": stack(lambda: nrm((HID, INTER))),
        "bi": jnp.zeros((LAYERS, 1, INTER), jnp.float32),
        "wo2": stack(lambda: nrm((INTER, HID))),
        "bo2": jnp.zeros((LAYERS, 1, HID), jnp.float32),
        "ln2_g": jnp.ones((LAYERS, 1, HID), jnp.float32),
        "ln2_b": jnp.zeros((LAYERS, 1, HID), jnp.float32),
        # projection head; W2/b2 lane-padded to 128 with zeros (normalize over
        # the padded output equals F.normalize over the first FEAT columns).
        "head_w1": nrm((HID, HID)),
        "head_b1": jnp.zeros((1, HID), jnp.float32),
        "head_w2": jnp.pad(nrm((HID, FEAT)), ((0, 0), (0, HID - FEAT))),
        "head_b2": jnp.zeros((1, HID), jnp.float32),
    }
    return params


# ------------------------------------ main ------------------------------------
if __name__ == "__main__":
    root = jax.random.PRNGKey(0)
    pkey, xkey, nkey = jax.random.split(root, 3)
    params = init_params(pkey)
    x = jax.random.normal(xkey, (2, CIN, 32, 32), jnp.float32)          # NCHW
    mask_noise = jax.random.uniform(nkey, (2, NPATCH), jnp.float32)      # ViTMAE noise

    out = jax.jit(forward)(params, x, mask_noise)
    out = jax.block_until_ready(out)

    assert out.shape == (2, FEAT), out.shape
    assert bool(jnp.all(jnp.isfinite(out)))
    # rows of the output must be unit-norm (F.normalize)
    assert bool(jnp.allclose(jnp.linalg.norm(out, axis=1), 1.0, atol=1e-4))
    print("KERNEL_OK")
</pallas_src>

<mosaic_0001>
module attributes {stable_mosaic.version = 11 : i64} {
  func.func @_fused_kernel(%arg0: memref<16x768xf32, #tpu.memory_space<vmem>>, %arg1: memref<16x128xf32, #tpu.memory_space<vmem>>, %arg2: memref<768x128xf32, #tpu.memory_space<vmem>>, %arg3: memref<1x128xf32, #tpu.memory_space<vmem>>, %arg4: memref<1x128xf32, #tpu.memory_space<vmem>>, %arg5: memref<2x128x384xf32, #tpu.memory_space<vmem>>, %arg6: memref<2x1x384xf32, #tpu.memory_space<vmem>>, %arg7: memref<2x128x128xf32, #tpu.memory_space<vmem>>, %arg8: memref<2x1x128xf32, #tpu.memory_space<vmem>>, %arg9: memref<2x1x128xf32, #tpu.memory_space<vmem>>, %arg10: memref<2x1x128xf32, #tpu.memory_space<vmem>>, %arg11: memref<2x128x256xf32, #tpu.memory_space<vmem>>, %arg12: memref<2x1x256xf32, #tpu.memory_space<vmem>>, %arg13: memref<2x256x128xf32, #tpu.memory_space<vmem>>, %arg14: memref<2x1x128xf32, #tpu.memory_space<vmem>>, %arg15: memref<2x1x128xf32, #tpu.memory_space<vmem>>, %arg16: memref<2x1x128xf32, #tpu.memory_space<vmem>>, %arg17: memref<128x128xf32, #tpu.memory_space<vmem>>, %arg18: memref<1x128xf32, #tpu.memory_space<vmem>>, %arg19: memref<128x128xf32, #tpu.memory_space<vmem>>, %arg20: memref<1x128xf32, #tpu.memory_space<vmem>>, %arg21: memref<16x128xf32, #tpu.memory_space<vmem>>) attributes {dimension_semantics = [], scalar_prefetch = 0 : i64, scratch_operands = 0 : i64, tpu.core_type = #tpu.core_type<tc>} {
    %c0 = arith.constant 0 : index
    %c0_0 = arith.constant 0 : index
    %0 = vector.load %arg0[%c0, %c0_0] : memref<16x768xf32, #tpu.memory_space<vmem>>, vector<16x768xf32>
    %c0_1 = arith.constant 0 : index
    %c0_2 = arith.constant 0 : index
    %1 = vector.load %arg2[%c0_1, %c0_2] : memref<768x128xf32, #tpu.memory_space<vmem>>, vector<768x128xf32>
    %cst = arith.constant dense<0.000000e+00> : vector<16x128xf32>
    %2 = tpu.matmul %0, %1, %cst {dimension_numbers = #tpu.dot_dimension_numbers<[1], [0], [0], [1], [0, 0, 1, 1], [], []>} : vector<16x768xf32>, vector<768x128xf32>, vector<16x128xf32> -> vector<16x128xf32>
    %c0_3 = arith.constant 0 : index
    %c0_4 = arith.constant 0 : index
    %3 = vector.load %arg1[%c0_3, %c0_4] : memref<16x128xf32, #tpu.memory_space<vmem>>, vector<16x128xf32>
    %4 = arith.addf %2, %3 : vector<16x128xf32>
    %c0_5 = arith.constant 0 : index
    %c0_6 = arith.constant 0 : index
    %5 = vector.load %arg3[%c0_5, %c0_6] : memref<1x128xf32, #tpu.memory_space<vmem>>, vector<1x128xf32>
    %c0_7 = arith.constant 0 : index
    %c0_8 = arith.constant 0 : index
    %6 = vector.load %arg4[%c0_7, %c0_8] : memref<1x128xf32, #tpu.memory_space<vmem>>, vector<1x128xf32>
    %cst_9 = arith.constant dense<0.000000e+00> : vector<16xf32>
    %7 = vector.multi_reduction <add>, %4, %cst_9 [1] : vector<16x128xf32> to vector<16xf32>
    %8 = vector.shape_cast %7 : vector<16xf32> to vector<16x1xf32>
    %cst_10 = arith.constant 1.280000e+02 : f32
    %9 = vector.broadcast %cst_10 : f32 to vector<16x1xf32>
    %10 = arith.divf %8, %9 : vector<16x1xf32>
    %11 = vector.broadcast %10 : vector<16x1xf32> to vector<16x128xf32>
    %12 = arith.subf %4, %11 : vector<16x128xf32>
    %13 = arith.mulf %12, %12 : vector<16x128xf32>
    %cst_11 = arith.constant dense<0.000000e+00> : vector<16xf32>
    %14 = vector.multi_reduction <add>, %13, %cst_11 [1] : vector<16x128xf32> to vector<16xf32>
    %15 = vector.shape_cast %14 : vector<16xf32> to vector<16x1xf32>
    %cst_12 = arith.constant 1.280000e+02 : f32
    %16 = vector.broadcast %cst_12 : f32 to vector<16x1xf32>
    %17 = arith.divf %15, %16 : vector<16x1xf32>
    %cst_13 = arith.constant 9.99999974E-6 : f32
    %18 = vector.broadcast %cst_13 : f32 to vector<16x1xf32>
    %19 = arith.addf %17, %18 : vector<16x1xf32>
    %20 = math.rsqrt %19 : vector<16x1xf32>
    %21 = vector.broadcast %20 : vector<16x1xf32> to vector<16x128xf32>
    %22 = arith.mulf %12, %21 : vector<16x128xf32>
    %23 = vector.broadcast %5 : vector<1x128xf32> to vector<16x128xf32>
    %24 = arith.mulf %22, %23 : vector<16x128xf32>
    %25 = vector.broadcast %6 : vector<1x128xf32> to vector<16x128xf32>
    %26 = arith.addf %24, %25 : vector<16x128xf32>
    %27 = tpu.iota {dimensions = array<i32: 0>} : vector<16x16xi32>
    %28 = tpu.iota {dimensions = array<i32: 1>} : vector<16x16xi32>
    %c3_i32 = arith.constant 3 : i32
    %29 = vector.broadcast %c3_i32 : i32 to vector<16x16xi32>
    %30 = arith.shrsi %27, %29 : vector<16x16xi32>
    %c3_i32_14 = arith.constant 3 : i32
    %31 = vector.broadcast %c3_i32_14 : i32 to vector<16x16xi32>
    %32 = arith.shrsi %28, %31 : vector<16x16xi32>
    %33 = arith.cmpi eq, %30, %32 : vector<16x16xi32>
    %c7_i32 = arith.constant 7 : i32
    %34 = vector.broadcast %c7_i32 : i32 to vector<16x16xi32>
    %35 = arith.andi %28, %34 : vector<16x16xi32>
    %c5_i32 = arith.constant 5 : i32
    %36 = vector.broadcast %c5_i32 : i32 to vector<16x16xi32>
    %37 = arith.cmpi slt, %35, %36 : vector<16x16xi32>
    %38 = arith.andi %33, %37 : vector<16x16xi1>
    %cst_15 = arith.constant 0.000000e+00 : f32
    %cst_16 = arith.constant -1.000000e+09 : f32
    %39 = vector.broadcast %cst_15 : f32 to vector<16x16xf32>
    %40 = vector.broadcast %cst_16 : f32 to vector<16x16xf32>
    %41 = arith.select %38, %39, %40 : vector<16x16xi1>, vector<16x16xf32>
    %c0_17 = arith.constant 0 : index
    %c0_18 = arith.constant 0 : index
    %c0_19 = arith.constant 0 : index
    %42 = vector.load %arg5[%c0_17, %c0_18, %c0_19] : memref<2x128x384xf32, #tpu.memory_space<vmem>>, vector<1x128x384xf32>
    %43 = vector.shape_cast %42 : vector<1x128x384xf32> to vector<128x384xf32>
    %cst_20 = arith.constant dense<0.000000e+00> : vector<16x384xf32>
    %44 = tpu.matmul %26, %43, %cst_20 {dimension_numbers = #tpu.dot_dimension_numbers<[1], [0], [0], [1], [0, 0, 1, 1], [], []>} : vector<16x128xf32>, vector<128x384xf32>, vector<16x384xf32> -> vector<16x384xf32>
    %c0_21 = arith.constant 0 : index
    %c0_22 = arith.constant 0 : index
    %c0_23 = arith.constant 0 : index
    %45 = vector.load %arg6[%c0_21, %c0_22, %c0_23] : memref<2x1x384xf32, #tpu.memory_space<vmem>>, vector<1x1x384xf32>
    %46 = vector.shape_cast %45 : vector<1x1x384xf32> to vector<1x384xf32>
    %47 = vector.broadcast %46 : vector<1x384xf32> to vector<16x384xf32>
    %48 = arith.addf %44, %47 : vector<16x384xf32>
    %49 = vector.extract_strided_slice %48 {offsets = [0, 0], sizes = [16, 128], strides = [1, 1]} : vector<16x384xf32> to vector<16x128xf32>
    %cst_24 = arith.constant 0.176776692 : f32
    %50 = vector.broadcast %cst_24 : f32 to vector<16x128xf32>
    %51 = arith.mulf %49, %50 : vector<16x128xf32>
    %52 = vector.extract_strided_slice %48 {offsets = [0, 128], sizes = [16, 128], strides = [1, 1]} : vector<16x384xf32> to vector<16x128xf32>
    %53 = vector.extract_strided_slice %48 {offsets = [0, 256], sizes = [16, 128], strides = [1, 1]} : vector<16x384xf32> to vector<16x128xf32>
    %c0_25 = arith.constant 0 : index
    %c0_26 = arith.constant 0 : index
    %c0_27 = arith.constant 0 : index
    %54 = vector.load %arg7[%c0_25, %c0_26, %c0_27] : memref<2x128x128xf32, #tpu.memory_space<vmem>>, vector<1x128x128xf32>
    %55 = vector.shape_cast %54 : vector<1x128x128xf32> to vector<128x128xf32>
    %56 = vector.extract_strided_slice %51 {offsets = [0, 0], sizes = [16, 32], strides = [1, 1]} : vector<16x128xf32> to vector<16x32xf32>
    %57 = vector.extract_strided_slice %52 {offsets = [0, 0], sizes = [16, 32], strides = [1, 1]} : vector<16x128xf32> to vector<16x32xf32>
    %58 = vector.extract_strided_slice %53 {offsets = [0, 0], sizes = [16, 32], strides = [1, 1]} : vector<16x128xf32> to vector<16x32xf32>
    %cst_28 = arith.constant dense<0.000000e+00> : vector<16x16xf32>
    %59 = tpu.matmul %56, %57, %cst_28 {dimension_numbers = #tpu.dot_dimension_numbers<[1], [1], [0], [0], [0, 0, 1, 0], [], []>} : vector<16x32xf32>, vector<16x32xf32>, vector<16x16xf32> -> vector<16x16xf32>
    %60 = arith.addf %59, %41 : vector<16x16xf32>
    %cst_29 = arith.constant dense<0xFF800000> : vector<16xf32>
    %61 = vector.multi_reduction <maximumf>, %60, %cst_29 [1] : vector<16x16xf32> to vector<16xf32>
    %62 = vector.shape_cast %61 : vector<16xf32> to vector<16x1xf32>
    %63 = vector.broadcast %62 : vector<16x1xf32> to vector<16x16xf32>
    %64 = arith.subf %60, %63 : vector<16x16xf32>
    %65 = math.exp %64 : vector<16x16xf32>
    %cst_30 = arith.constant dense<0.000000e+00> : vector<16xf32>
    %66 = vector.multi_reduction <add>, %65, %cst_30 [1] : vector<16x16xf32> to vector<16xf32>
    %67 = vector.shape_cast %66 : vector<16xf32> to vector<16x1xf32>
    %68 = tpu.reciprocal %67 {approx = true} : vector<16x1xf32> -> vector<16x1xf32>
    %69 = vector.broadcast %68 : vector<16x1xf32> to vector<16x16xf32>
    %70 = arith.mulf %65, %69 : vector<16x16xf32>
    %cst_31 = arith.constant dense<0.000000e+00> : vector<16x32xf32>
    %71 = tpu.matmul %70, %58, %cst_31 {dimension_numbers = #tpu.dot_dimension_numbers<[1], [0], [0], [1], [0, 0, 1, 1], [], []>} : vector<16x16xf32>, vector<16x32xf32>, vector<16x32xf32> -> vector<16x32xf32>
    %72 = vector.extract_strided_slice %55 {offsets = [0, 0], sizes = [32, 128], strides = [1, 1]} : vector<128x128xf32> to vector<32x128xf32>
    %cst_32 = arith.constant dense<0.000000e+00> : vector<16x128xf32>
    %73 = tpu.matmul %71, %72, %cst_32 {dimension_numbers = #tpu.dot_dimension_numbers<[1], [0], [0], [1], [0, 0, 1, 1], [], []>} : vector<16x32xf32>, vector<32x128xf32>, vector<16x128xf32> -> vector<16x128xf32>
    %74 = vector.extract_strided_slice %51 {offsets = [0, 32], sizes = [16, 32], strides = [1, 1]} : vector<16x128xf32> to vector<16x32xf32>
    %75 = vector.extract_strided_slice %52 {offsets = [0, 32], sizes = [16, 32], strides = [1, 1]} : vector<16x128xf32> to vector<16x32xf32>
    %76 = vector.extract_strided_slice %53 {offsets = [0, 32], sizes = [16, 32], strides = [1, 1]} : vector<16x128xf32> to vector<16x32xf32>
    %cst_33 = arith.constant dense<0.000000e+00> : vector<16x16xf32>
    %77 = tpu.matmul %74, %75, %cst_33 {dimension_numbers = #tpu.dot_dimension_numbers<[1], [1], [0], [0], [0, 0, 1, 0], [], []>} : vector<16x32xf32>, vector<16x32xf32>, vector<16x16xf32> -> vector<16x16xf32>
    %78 = arith.addf %77, %41 : vector<16x16xf32>
    %cst_34 = arith.constant dense<0xFF800000> : vector<16xf32>
    %79 = vector.multi_reduction <maximumf>, %78, %cst_34 [1] : vector<16x16xf32> to vector<16xf32>
    %80 = vector.shape_cast %79 : vector<16xf32> to vector<16x1xf32>
    %81 = vector.broadcast %80 : vector<16x1xf32> to vector<16x16xf32>
    %82 = arith.subf %78, %81 : vector<16x16xf32>
    %83 = math.exp %82 : vector<16x16xf32>
    %cst_35 = arith.constant dense<0.000000e+00> : vector<16xf32>
    %84 = vector.multi_reduction <add>, %83, %cst_35 [1] : vector<16x16xf32> to vector<16xf32>
    %85 = vector.shape_cast %84 : vector<16xf32> to vector<16x1xf32>
    %86 = tpu.reciprocal %85 {approx = true} : vector<16x1xf32> -> vector<16x1xf32>
    %87 = vector.broadcast %86 : vector<16x1xf32> to vector<16x16xf32>
    %88 = arith.mulf %83, %87 : vector<16x16xf32>
    %cst_36 = arith.constant dense<0.000000e+00> : vector<16x32xf32>
    %89 = tpu.matmul %88, %76, %cst_36 {dimension_numbers = #tpu.dot_dimension_numbers<[1], [0], [0], [1], [0, 0, 1, 1], [], []>} : vector<16x16xf32>, vector<16x32xf32>, vector<16x32xf32> -> vector<16x32xf32>
    %90 = vector.extract_strided_slice %55 {offsets = [32, 0], sizes = [32, 128], strides = [1, 1]} : vector<128x128xf32> to vector<32x128xf32>
    %cst_37 = arith.constant dense<0.000000e+00> : vector<16x128xf32>
    %91 = tpu.matmul %89, %90, %cst_37 {dimension_numbers = #tpu.dot_dimension_numbers<[1], [0], [0], [1], [0, 0, 1, 1], [], []>} : vector<16x32xf32>, vector<32x128xf32>, vector<16x128xf32> -> vector<16x128xf32>
    %92 = arith.addf %73, %91 : vector<16x128xf32>
    %93 = vector.extract_strided_slice %51 {offsets = [0, 64], sizes = [16, 32], strides = [1, 1]} : vector<16x128xf32> to vector<16x32xf32>
    %94 = vector.extract_strided_slice %52 {offsets = [0, 64], sizes = [16, 32], strides = [1, 1]} : vector<16x128xf32> to vector<16x32xf32>
    %95 = vector.extract_strided_slice %53 {offsets = [0, 64], sizes = [16, 32], strides = [1, 1]} : vector<16x128xf32> to vector<16x32xf32>
    %cst_38 = arith.constant dense<0.000000e+00> : vector<16x16xf32>
    %96 = tpu.matmul %93, %94, %cst_38 {dimension_numbers = #tpu.dot_dimension_numbers<[1], [1], [0], [0], [0, 0, 1, 0], [], []>} : vector<16x32xf32>, vector<16x32xf32>, vector<16x16xf32> -> vector<16x16xf32>
    %97 = arith.addf %96, %41 : vector<16x16xf32>
    %cst_39 = arith.constant dense<0xFF800000> : vector<16xf32>
    %98 = vector.multi_reduction <maximumf>, %97, %cst_39 [1] : vector<16x16xf32> to vector<16xf32>
    %99 = vector.shape_cast %98 : vector<16xf32> to vector<16x1xf32>
    %100 = vector.broadcast %99 : vector<16x1xf32> to vector<16x16xf32>
    %101 = arith.subf %97, %100 : vector<16x16xf32>
    %102 = math.exp %101 : vector<16x16xf32>
    %cst_40 = arith.constant dense<0.000000e+00> : vector<16xf32>
    %103 = vector.multi_reduction <add>, %102, %cst_40 [1] : vector<16x16xf32> to vector<16xf32>
    %104 = vector.shape_cast %103 : vector<16xf32> to vector<16x1xf32>
    %105 = tpu.reciprocal %104 {approx = true} : vector<16x1xf32> -> vector<16x1xf32>
    %106 = vector.broadcast %105 : vector<16x1xf32> to vector<16x16xf32>
    %107 = arith.mulf %102, %106 : vector<16x16xf32>
    %cst_41 = arith.constant dense<0.000000e+00> : vector<16x32xf32>
    %108 = tpu.matmul %107, %95, %cst_41 {dimension_numbers = #tpu.dot_dimension_numbers<[1], [0], [0], [1], [0, 0, 1, 1], [], []>} : vector<16x16xf32>, vector<16x32xf32>, vector<16x32xf32> -> vector<16x32xf32>
    %109 = vector.extract_strided_slice %55 {offsets = [64, 0], sizes = [32, 128], strides = [1, 1]} : vector<128x128xf32> to vector<32x128xf32>
    %cst_42 = arith.constant dense<0.000000e+00> : vector<16x128xf32>
    %110 = tpu.matmul %108, %109, %cst_42 {dimension_numbers = #tpu.dot_dimension_numbers<[1], [0], [0], [1], [0, 0, 1, 1], [], []>} : vector<16x32xf32>, vector<32x128xf32>, vector<16x128xf32> -> vector<16x128xf32>
    %111 = arith.addf %92, %110 : vector<16x128xf32>
    %112 = vector.extract_strided_slice %51 {offsets = [0, 96], sizes = [16, 32], strides = [1, 1]} : vector<16x128xf32> to vector<16x32xf32>
    %113 = vector.extract_strided_slice %52 {offsets = [0, 96], sizes = [16, 32], strides = [1, 1]} : vector<16x128xf32> to vector<16x32xf32>
    %114 = vector.extract_strided_slice %53 {offsets = [0, 96], sizes = [16, 32], strides = [1, 1]} : vector<16x128xf32> to vector<16x32xf32>
    %cst_43 = arith.constant dense<0.000000e+00> : vector<16x16xf32>
    %115 = tpu.matmul %112, %113, %cst_43 {dimension_numbers = #tpu.dot_dimension_numbers<[1], [1], [0], [0], [0, 0, 1, 0], [], []>} : vector<16x32xf32>, vector<16x32xf32>, vector<16x16xf32> -> vector<16x16xf32>
    %116 = arith.addf %115, %41 : vector<16x16xf32>
    %cst_44 = arith.constant dense<0xFF800000> : vector<16xf32>
    %117 = vector.multi_reduction <maximumf>, %116, %cst_44 [1] : vector<16x16xf32> to vector<16xf32>
    %118 = vector.shape_cast %117 : vector<16xf32> to vector<16x1xf32>
    %119 = vector.broadcast %118 : vector<16x1xf32> to vector<16x16xf32>
    %120 = arith.subf %116, %119 : vector<16x16xf32>
    %121 = math.exp %120 : vector<16x16xf32>
    %cst_45 = arith.constant dense<0.000000e+00> : vector<16xf32>
    %122 = vector.multi_reduction <add>, %121, %cst_45 [1] : vector<16x16xf32> to vector<16xf32>
    %123 = vector.shape_cast %122 : vector<16xf32> to vector<16x1xf32>
    %124 = tpu.reciprocal %123 {approx = true} : vector<16x1xf32> -> vector<16x1xf32>
    %125 = vector.broadcast %124 : vector<16x1xf32> to vector<16x16xf32>
    %126 = arith.mulf %121, %125 : vector<16x16xf32>
    %cst_46 = arith.constant dense<0.000000e+00> : vector<16x32xf32>
    %127 = tpu.matmul %126, %114, %cst_46 {dimension_numbers = #tpu.dot_dimension_numbers<[1], [0], [0], [1], [0, 0, 1, 1], [], []>} : vector<16x16xf32>, vector<16x32xf32>, vector<16x32xf32> -> vector<16x32xf32>
    %128 = vector.extract_strided_slice %55 {offsets = [96, 0], sizes = [32, 128], strides = [1, 1]} : vector<128x128xf32> to vector<32x128xf32>
    %cst_47 = arith.constant dense<0.000000e+00> : vector<16x128xf32>
    %129 = tpu.matmul %127, %128, %cst_47 {dimension_numbers = #tpu.dot_dimension_numbers<[1], [0], [0], [1], [0, 0, 1, 1], [], []>} : vector<16x32xf32>, vector<32x128xf32>, vector<16x128xf32> -> vector<16x128xf32>
    %130 = arith.addf %111, %129 : vector<16x128xf32>
    %c0_48 = arith.constant 0 : index
    %c0_49 = arith.constant 0 : index
    %c0_50 = arith.constant 0 : index
    %131 = vector.load %arg8[%c0_48, %c0_49, %c0_50] : memref<2x1x128xf32, #tpu.memory_space<vmem>>, vector<1x1x128xf32>
    %132 = vector.shape_cast %131 : vector<1x1x128xf32> to vector<1x128xf32>
    %133 = vector.broadcast %132 : vector<1x128xf32> to vector<16x128xf32>
    %134 = arith.addf %130, %133 : vector<16x128xf32>
    %135 = arith.addf %134, %26 : vector<16x128xf32>
    %c0_51 = arith.constant 0 : index
    %c0_52 = arith.constant 0 : index
    %c0_53 = arith.constant 0 : index
    %136 = vector.load %arg9[%c0_51, %c0_52, %c0_53] : memref<2x1x128xf32, #tpu.memory_space<vmem>>, vector<1x1x128xf32>
    %137 = vector.shape_cast %136 : vector<1x1x128xf32> to vector<1x128xf32>
    %c0_54 = arith.constant 0 : index
    %c0_55 = arith.constant 0 : index
    %c0_56 = arith.constant 0 : index
    %138 = vector.load %arg10[%c0_54, %c0_55, %c0_56] : memref<2x1x128xf32, #tpu.memory_space<vmem>>, vector<1x1x128xf32>
    %139 = vector.shape_cast %138 : vector<1x1x128xf32> to vector<1x128xf32>
    %cst_57 = arith.constant dense<0.000000e+00> : vector<16xf32>
    %140 = vector.multi_reduction <add>, %135, %cst_57 [1] : vector<16x128xf32> to vector<16xf32>
    %141 = vector.shape_cast %140 : vector<16xf32> to vector<16x1xf32>
    %cst_58 = arith.constant 1.280000e+02 : f32
    %142 = vector.broadcast %cst_58 : f32 to vector<16x1xf32>
    %143 = arith.divf %141, %142 : vector<16x1xf32>
    %144 = vector.broadcast %143 : vector<16x1xf32> to vector<16x128xf32>
    %145 = arith.subf %135, %144 : vector<16x128xf32>
    %146 = arith.mulf %145, %145 : vector<16x128xf32>
    %cst_59 = arith.constant dense<0.000000e+00> : vector<16xf32>
    %147 = vector.multi_reduction <add>, %146, %cst_59 [1] : vector<16x128xf32> to vector<16xf32>
    %148 = vector.shape_cast %147 : vector<16xf32> to vector<16x1xf32>
    %cst_60 = arith.constant 1.280000e+02 : f32
    %149 = vector.broadcast %cst_60 : f32 to vector<16x1xf32>
    %150 = arith.divf %148, %149 : vector<16x1xf32>
    %cst_61 = arith.constant 9.99999974E-6 : f32
    %151 = vector.broadcast %cst_61 : f32 to vector<16x1xf32>
    %152 = arith.addf %150, %151 : vector<16x1xf32>
    %153 = math.rsqrt %152 : vector<16x1xf32>
    %154 = vector.broadcast %153 : vector<16x1xf32> to vector<16x128xf32>
    %155 = arith.mulf %145, %154 : vector<16x128xf32>
    %156 = vector.broadcast %137 : vector<1x128xf32> to vector<16x128xf32>
    %157 = arith.mulf %155, %156 : vector<16x128xf32>
    %158 = vector.broadcast %139 : vector<1x128xf32> to vector<16x128xf32>
    %159 = arith.addf %157, %158 : vector<16x128xf32>
    %c0_62 = arith.constant 0 : index
    %c0_63 = arith.constant 0 : index
    %c0_64 = arith.constant 0 : index
    %160 = vector.load %arg11[%c0_62, %c0_63, %c0_64] : memref<2x128x256xf32, #tpu.memory_space<vmem>>, vector<1x128x256xf32>
    %161 = vector.shape_cast %160 : vector<1x128x256xf32> to vector<128x256xf32>
    %cst_65 = arith.constant dense<0.000000e+00> : vector<16x256xf32>
    %162 = tpu.matmul %159, %161, %cst_65 {dimension_numbers = #tpu.dot_dimension_numbers<[1], [0], [0], [1], [0, 0, 1, 1], [], []>} : vector<16x128xf32>, vector<128x256xf32>, vector<16x256xf32> -> vector<16x256xf32>
    %c0_66 = arith.constant 0 : index
    %c0_67 = arith.constant 0 : index
    %c0_68 = arith.constant 0 : index
    %163 = vector.load %arg12[%c0_66, %c0_67, %c0_68] : memref<2x1x256xf32, #tpu.memory_space<vmem>>, vector<1x1x256xf32>
    %164 = vector.shape_cast %163 : vector<1x1x256xf32> to vector<1x256xf32>
    %165 = vector.broadcast %164 : vector<1x256xf32> to vector<16x256xf32>
    %166 = arith.addf %162, %165 : vector<16x256xf32>
    %167 = arith.mulf %166, %166 : vector<16x256xf32>
    %168 = arith.mulf %166, %167 : vector<16x256xf32>
    %cst_69 = arith.constant 4.471500e-02 : f32
    %169 = vector.broadcast %cst_69 : f32 to vector<16x256xf32>
    %170 = arith.mulf %169, %168 : vector<16x256xf32>
    %171 = arith.addf %166, %170 : vector<16x256xf32>
    %cst_70 = arith.constant 0.797884583 : f32
    %172 = vector.broadcast %cst_70 : f32 to vector<16x256xf32>
    %173 = arith.mulf %172, %171 : vector<16x256xf32>
    %174 = math.tanh %173 : vector<16x256xf32>
    %cst_71 = arith.constant 1.000000e+00 : f32
    %175 = vector.broadcast %cst_71 : f32 to vector<16x256xf32>
    %176 = arith.addf %175, %174 : vector<16x256xf32>
    %cst_72 = arith.constant 5.000000e-01 : f32
    %177 = vector.broadcast %cst_72 : f32 to vector<16x256xf32>
    %178 = arith.mulf %177, %176 : vector<16x256xf32>
    %179 = arith.mulf %166, %178 : vector<16x256xf32>
    %c0_73 = arith.constant 0 : index
    %c0_74 = arith.constant 0 : index
    %c0_75 = arith.constant 0 : index
    %180 = vector.load %arg13[%c0_73, %c0_74, %c0_75] : memref<2x256x128xf32, #tpu.memory_space<vmem>>, vector<1x256x128xf32>
    %181 = vector.shape_cast %180 : vector<1x256x128xf32> to vector<256x128xf32>
    %cst_76 = arith.constant dense<0.000000e+00> : vector<16x128xf32>
    %182 = tpu.matmul %179, %181, %cst_76 {dimension_numbers = #tpu.dot_dimension_numbers<[1], [0], [0], [1], [0, 0, 1, 1], [], []>} : vector<16x256xf32>, vector<256x128xf32>, vector<16x128xf32> -> vector<16x128xf32>
    %c0_77 = arith.constant 0 : index
    %c0_78 = arith.constant 0 : index
    %c0_79 = arith.constant 0 : index
    %183 = vector.load %arg14[%c0_77, %c0_78, %c0_79] : memref<2x1x128xf32, #tpu.memory_space<vmem>>, vector<1x1x128xf32>
    %184 = vector.shape_cast %183 : vector<1x1x128xf32> to vector<1x128xf32>
    %185 = vector.broadcast %184 : vector<1x128xf32> to vector<16x128xf32>
    %186 = arith.addf %182, %185 : vector<16x128xf32>
    %187 = arith.addf %186, %159 : vector<16x128xf32>
    %c0_80 = arith.constant 0 : index
    %c0_81 = arith.constant 0 : index
    %c0_82 = arith.constant 0 : index
    %188 = vector.load %arg15[%c0_80, %c0_81, %c0_82] : memref<2x1x128xf32, #tpu.memory_space<vmem>>, vector<1x1x128xf32>
    %189 = vector.shape_cast %188 : vector<1x1x128xf32> to vector<1x128xf32>
    %c0_83 = arith.constant 0 : index
    %c0_84 = arith.constant 0 : index
    %c0_85 = arith.constant 0 : index
    %190 = vector.load %arg16[%c0_83, %c0_84, %c0_85] : memref<2x1x128xf32, #tpu.memory_space<vmem>>, vector<1x1x128xf32>
    %191 = vector.shape_cast %190 : vector<1x1x128xf32> to vector<1x128xf32>
    %cst_86 = arith.constant dense<0.000000e+00> : vector<16xf32>
    %192 = vector.multi_reduction <add>, %187, %cst_86 [1] : vector<16x128xf32> to vector<16xf32>
    %193 = vector.shape_cast %192 : vector<16xf32> to vector<16x1xf32>
    %cst_87 = arith.constant 1.280000e+02 : f32
    %194 = vector.broadcast %cst_87 : f32 to vector<16x1xf32>
    %195 = arith.divf %193, %194 : vector<16x1xf32>
    %196 = vector.broadcast %195 : vector<16x1xf32> to vector<16x128xf32>
    %197 = arith.subf %187, %196 : vector<16x128xf32>
    %198 = arith.mulf %197, %197 : vector<16x128xf32>
    %cst_88 = arith.constant dense<0.000000e+00> : vector<16xf32>
    %199 = vector.multi_reduction <add>, %198, %cst_88 [1] : vector<16x128xf32> to vector<16xf32>
    %200 = vector.shape_cast %199 : vector<16xf32> to vector<16x1xf32>
    %cst_89 = arith.constant 1.280000e+02 : f32
    %201 = vector.broadcast %cst_89 : f32 to vector<16x1xf32>
    %202 = arith.divf %200, %201 : vector<16x1xf32>
    %cst_90 = arith.constant 9.99999974E-6 : f32
    %203 = vector.broadcast %cst_90 : f32 to vector<16x1xf32>
    %204 = arith.addf %202, %203 : vector<16x1xf32>
    %205 = math.rsqrt %204 : vector<16x1xf32>
    %206 = vector.broadcast %205 : vector<16x1xf32> to vector<16x128xf32>
    %207 = arith.mulf %197, %206 : vector<16x128xf32>
    %208 = vector.broadcast %189 : vector<1x128xf32> to vector<16x128xf32>
    %209 = arith.mulf %207, %208 : vector<16x128xf32>
    %210 = vector.broadcast %191 : vector<1x128xf32> to vector<16x128xf32>
    %211 = arith.addf %209, %210 : vector<16x128xf32>
    %c1 = arith.constant 1 : index
    %c0_91 = arith.constant 0 : index
    %c0_92 = arith.constant 0 : index
    %212 = vector.load %arg5[%c1, %c0_91, %c0_92] : memref<2x128x384xf32, #tpu.memory_space<vmem>>, vector<1x128x384xf32>
    %213 = vector.shape_cast %212 : vector<1x128x384xf32> to vector<128x384xf32>
    %cst_93 = arith.constant dense<0.000000e+00> : vector<16x384xf32>
    %214 = tpu.matmul %211, %213, %cst_93 {dimension_numbers = #tpu.dot_dimension_numbers<[1], [0], [0], [1], [0, 0, 1, 1], [], []>} : vector<16x128xf32>, vector<128x384xf32>, vector<16x384xf32> -> vector<16x384xf32>
    %c1_94 = arith.constant 1 : index
    %c0_95 = arith.constant 0 : index
    %c0_96 = arith.constant 0 : index
    %215 = vector.load %arg6[%c1_94, %c0_95, %c0_96] : memref<2x1x384xf32, #tpu.memory_space<vmem>>, vector<1x1x384xf32>
    %216 = vector.shape_cast %215 : vector<1x1x384xf32> to vector<1x384xf32>
    %217 = vector.broadcast %216 : vector<1x384xf32> to vector<16x384xf32>
    %218 = arith.addf %214, %217 : vector<16x384xf32>
    %219 = vector.extract_strided_slice %218 {offsets = [0, 0], sizes = [16, 128], strides = [1, 1]} : vector<16x384xf32> to vector<16x128xf32>
    %cst_97 = arith.constant 0.176776692 : f32
    %220 = vector.broadcast %cst_97 : f32 to vector<16x128xf32>
    %221 = arith.mulf %219, %220 : vector<16x128xf32>
    %222 = vector.extract_strided_slice %218 {offsets = [0, 128], sizes = [16, 128], strides = [1, 1]} : vector<16x384xf32> to vector<16x128xf32>
    %223 = vector.extract_strided_slice %218 {offsets = [0, 256], sizes = [16, 128], strides = [1, 1]} : vector<16x384xf32> to vector<16x128xf32>
    %c1_98 = arith.constant 1 : index
    %c0_99 = arith.constant 0 : index
    %c0_100 = arith.constant 0 : index
    %224 = vector.load %arg7[%c1_98, %c0_99, %c0_100] : memref<2x128x128xf32, #tpu.memory_space<vmem>>, vector<1x128x128xf32>
    %225 = vector.shape_cast %224 : vector<1x128x128xf32> to vector<128x128xf32>
    %226 = vector.extract_strided_slice %221 {offsets = [0, 0], sizes = [16, 32], strides = [1, 1]} : vector<16x128xf32> to vector<16x32xf32>
    %227 = vector.extract_strided_slice %222 {offsets = [0, 0], sizes = [16, 32], strides = [1, 1]} : vector<16x128xf32> to vector<16x32xf32>
    %228 = vector.extract_strided_slice %223 {offsets = [0, 0], sizes = [16, 32], strides = [1, 1]} : vector<16x128xf32> to vector<16x32xf32>
    %cst_101 = arith.constant dense<0.000000e+00> : vector<16x16xf32>
    %229 = tpu.matmul %226, %227, %cst_101 {dimension_numbers = #tpu.dot_dimension_numbers<[1], [1], [0], [0], [0, 0, 1, 0], [], []>} : vector<16x32xf32>, vector<16x32xf32>, vector<16x16xf32> -> vector<16x16xf32>
    %230 = arith.addf %229, %41 : vector<16x16xf32>
    %cst_102 = arith.constant dense<0xFF800000> : vector<16xf32>
    %231 = vector.multi_reduction <maximumf>, %230, %cst_102 [1] : vector<16x16xf32> to vector<16xf32>
    %232 = vector.shape_cast %231 : vector<16xf32> to vector<16x1xf32>
    %233 = vector.broadcast %232 : vector<16x1xf32> to vector<16x16xf32>
    %234 = arith.subf %230, %233 : vector<16x16xf32>
    %235 = math.exp %234 : vector<16x16xf32>
    %cst_103 = arith.constant dense<0.000000e+00> : vector<16xf32>
    %236 = vector.multi_reduction <add>, %235, %cst_103 [1] : vector<16x16xf32> to vector<16xf32>
    %237 = vector.shape_cast %236 : vector<16xf32> to vector<16x1xf32>
    %238 = tpu.reciprocal %237 {approx = true} : vector<16x1xf32> -> vector<16x1xf32>
    %239 = vector.broadcast %238 : vector<16x1xf32> to vector<16x16xf32>
    %240 = arith.mulf %235, %239 : vector<16x16xf32>
    %cst_104 = arith.constant dense<0.000000e+00> : vector<16x32xf32>
    %241 = tpu.matmul %240, %228, %cst_104 {dimension_numbers = #tpu.dot_dimension_numbers<[1], [0], [0], [1], [0, 0, 1, 1], [], []>} : vector<16x16xf32>, vector<16x32xf32>, vector<16x32xf32> -> vector<16x32xf32>
    %242 = vector.extract_strided_slice %225 {offsets = [0, 0], sizes = [32, 128], strides = [1, 1]} : vector<128x128xf32> to vector<32x128xf32>
    %cst_105 = arith.constant dense<0.000000e+00> : vector<16x128xf32>
    %243 = tpu.matmul %241, %242, %cst_105 {dimension_numbers = #tpu.dot_dimension_numbers<[1], [0], [0], [1], [0, 0, 1, 1], [], []>} : vector<16x32xf32>, vector<32x128xf32>, vector<16x128xf32> -> vector<16x128xf32>
    %244 = vector.extract_strided_slice %221 {offsets = [0, 32], sizes = [16, 32], strides = [1, 1]} : vector<16x128xf32> to vector<16x32xf32>
    %245 = vector.extract_strided_slice %222 {offsets = [0, 32], sizes = [16, 32], strides = [1, 1]} : vector<16x128xf32> to vector<16x32xf32>
    %246 = vector.extract_strided_slice %223 {offsets = [0, 32], sizes = [16, 32], strides = [1, 1]} : vector<16x128xf32> to vector<16x32xf32>
    %cst_106 = arith.constant dense<0.000000e+00> : vector<16x16xf32>
    %247 = tpu.matmul %244, %245, %cst_106 {dimension_numbers = #tpu.dot_dimension_numbers<[1], [1], [0], [0], [0, 0, 1, 0], [], []>} : vector<16x32xf32>, vector<16x32xf32>, vector<16x16xf32> -> vector<16x16xf32>
    %248 = arith.addf %247, %41 : vector<16x16xf32>
    %cst_107 = arith.constant dense<0xFF800000> : vector<16xf32>
    %249 = vector.multi_reduction <maximumf>, %248, %cst_107 [1] : vector<16x16xf32> to vector<16xf32>
    %250 = vector.shape_cast %249 : vector<16xf32> to vector<16x1xf32>
    %251 = vector.broadcast %250 : vector<16x1xf32> to vector<16x16xf32>
    %252 = arith.subf %248, %251 : vector<16x16xf32>
    %253 = math.exp %252 : vector<16x16xf32>
    %cst_108 = arith.constant dense<0.000000e+00> : vector<16xf32>
    %254 = vector.multi_reduction <add>, %253, %cst_108 [1] : vector<16x16xf32> to vector<16xf32>
    %255 = vector.shape_cast %254 : vector<16xf32> to vector<16x1xf32>
    %256 = tpu.reciprocal %255 {approx = true} : vector<16x1xf32> -> vector<16x1xf32>
    %257 = vector.broadcast %256 : vector<16x1xf32> to vector<16x16xf32>
    %258 = arith.mulf %253, %257 : vector<16x16xf32>
    %cst_109 = arith.constant dense<0.000000e+00> : vector<16x32xf32>
    %259 = tpu.matmul %258, %246, %cst_109 {dimension_numbers = #tpu.dot_dimension_numbers<[1], [0], [0], [1], [0, 0, 1, 1], [], []>} : vector<16x16xf32>, vector<16x32xf32>, vector<16x32xf32> -> vector<16x32xf32>
    %260 = vector.extract_strided_slice %225 {offsets = [32, 0], sizes = [32, 128], strides = [1, 1]} : vector<128x128xf32> to vector<32x128xf32>
    %cst_110 = arith.constant dense<0.000000e+00> : vector<16x128xf32>
    %261 = tpu.matmul %259, %260, %cst_110 {dimension_numbers = #tpu.dot_dimension_numbers<[1], [0], [0], [1], [0, 0, 1, 1], [], []>} : vector<16x32xf32>, vector<32x128xf32>, vector<16x128xf32> -> vector<16x128xf32>
    %262 = arith.addf %243, %261 : vector<16x128xf32>
    %263 = vector.extract_strided_slice %221 {offsets = [0, 64], sizes = [16, 32], strides = [1, 1]} : vector<16x128xf32> to vector<16x32xf32>
    %264 = vector.extract_strided_slice %222 {offsets = [0, 64], sizes = [16, 32], strides = [1, 1]} : vector<16x128xf32> to vector<16x32xf32>
    %265 = vector.extract_strided_slice %223 {offsets = [0, 64], sizes = [16, 32], strides = [1, 1]} : vector<16x128xf32> to vector<16x32xf32>
    %cst_111 = arith.constant dense<0.000000e+00> : vector<16x16xf32>
    %266 = tpu.matmul %263, %264, %cst_111 {dimension_numbers = #tpu.dot_dimension_numbers<[1], [1], [0], [0], [0, 0, 1, 0], [], []>} : vector<16x32xf32>, vector<16x32xf32>, vector<16x16xf32> -> vector<16x16xf32>
    %267 = arith.addf %266, %41 : vector<16x16xf32>
    %cst_112 = arith.constant dense<0xFF800000> : vector<16xf32>
    %268 = vector.multi_reduction <maximumf>, %267, %cst_112 [1] : vector<16x16xf32> to vector<16xf32>
    %269 = vector.shape_cast %268 : vector<16xf32> to vector<16x1xf32>
    %270 = vector.broadcast %269 : vector<16x1xf32> to vector<16x16xf32>
    %271 = arith.subf %267, %270 : vector<16x16xf32>
    %272 = math.exp %271 : vector<16x16xf32>
    %cst_113 = arith.constant dense<0.000000e+00> : vector<16xf32>
    %273 = vector.multi_reduction <add>, %272, %cst_113 [1] : vector<16x16xf32> to vector<16xf32>
    %274 = vector.shape_cast %273 : vector<16xf32> to vector<16x1xf32>
    %275 = tpu.reciprocal %274 {approx = true} : vector<16x1xf32> -> vector<16x1xf32>
    %276 = vector.broadcast %275 : vector<16x1xf32> to vector<16x16xf32>
    %277 = arith.mulf %272, %276 : vector<16x16xf32>
    %cst_114 = arith.constant dense<0.000000e+00> : vector<16x32xf32>
    %278 = tpu.matmul %277, %265, %cst_114 {dimension_numbers = #tpu.dot_dimension_numbers<[1], [0], [0], [1], [0, 0, 1, 1], [], []>} : vector<16x16xf32>, vector<16x32xf32>, vector<16x32xf32> -> vector<16x32xf32>
    %279 = vector.extract_strided_slice %225 {offsets = [64, 0], sizes = [32, 128], strides = [1, 1]} : vector<128x128xf32> to vector<32x128xf32>
    %cst_115 = arith.constant dense<0.000000e+00> : vector<16x128xf32>
    %280 = tpu.matmul %278, %279, %cst_115 {dimension_numbers = #tpu.dot_dimension_numbers<[1], [0], [0], [1], [0, 0, 1, 1], [], []>} : vector<16x32xf32>, vector<32x128xf32>, vector<16x128xf32> -> vector<16x128xf32>
    %281 = arith.addf %262, %280 : vector<16x128xf32>
    %282 = vector.extract_strided_slice %221 {offsets = [0, 96], sizes = [16, 32], strides = [1, 1]} : vector<16x128xf32> to vector<16x32xf32>
    %283 = vector.extract_strided_slice %222 {offsets = [0, 96], sizes = [16, 32], strides = [1, 1]} : vector<16x128xf32> to vector<16x32xf32>
    %284 = vector.extract_strided_slice %223 {offsets = [0, 96], sizes = [16, 32], strides = [1, 1]} : vector<16x128xf32> to vector<16x32xf32>
    %cst_116 = arith.constant dense<0.000000e+00> : vector<16x16xf32>
    %285 = tpu.matmul %282, %283, %cst_116 {dimension_numbers = #tpu.dot_dimension_numbers<[1], [1], [0], [0], [0, 0, 1, 0], [], []>} : vector<16x32xf32>, vector<16x32xf32>, vector<16x16xf32> -> vector<16x16xf32>
    %286 = arith.addf %285, %41 : vector<16x16xf32>
    %cst_117 = arith.constant dense<0xFF800000> : vector<16xf32>
    %287 = vector.multi_reduction <maximumf>, %286, %cst_117 [1] : vector<16x16xf32> to vector<16xf32>
    %288 = vector.shape_cast %287 : vector<16xf32> to vector<16x1xf32>
    %289 = vector.broadcast %288 : vector<16x1xf32> to vector<16x16xf32>
    %290 = arith.subf %286, %289 : vector<16x16xf32>
    %291 = math.exp %290 : vector<16x16xf32>
    %cst_118 = arith.constant dense<0.000000e+00> : vector<16xf32>
    %292 = vector.multi_reduction <add>, %291, %cst_118 [1] : vector<16x16xf32> to vector<16xf32>
    %293 = vector.shape_cast %292 : vector<16xf32> to vector<16x1xf32>
    %294 = tpu.reciprocal %293 {approx = true} : vector<16x1xf32> -> vector<16x1xf32>
    %295 = vector.broadcast %294 : vector<16x1xf32> to vector<16x16xf32>
    %296 = arith.mulf %291, %295 : vector<16x16xf32>
    %cst_119 = arith.constant dense<0.000000e+00> : vector<16x32xf32>
    %297 = tpu.matmul %296, %284, %cst_119 {dimension_numbers = #tpu.dot_dimension_numbers<[1], [0], [0], [1], [0, 0, 1, 1], [], []>} : vector<16x16xf32>, vector<16x32xf32>, vector<16x32xf32> -> vector<16x32xf32>
    %298 = vector.extract_strided_slice %225 {offsets = [96, 0], sizes = [32, 128], strides = [1, 1]} : vector<128x128xf32> to vector<32x128xf32>
    %cst_120 = arith.constant dense<0.000000e+00> : vector<16x128xf32>
    %299 = tpu.matmul %297, %298, %cst_120 {dimension_numbers = #tpu.dot_dimension_numbers<[1], [0], [0], [1], [0, 0, 1, 1], [], []>} : vector<16x32xf32>, vector<32x128xf32>, vector<16x128xf32> -> vector<16x128xf32>
    %300 = arith.addf %281, %299 : vector<16x128xf32>
    %c1_121 = arith.constant 1 : index
    %c0_122 = arith.constant 0 : index
    %c0_123 = arith.constant 0 : index
    %301 = vector.load %arg8[%c1_121, %c0_122, %c0_123] : memref<2x1x128xf32, #tpu.memory_space<vmem>>, vector<1x1x128xf32>
    %302 = vector.shape_cast %301 : vector<1x1x128xf32> to vector<1x128xf32>
    %303 = vector.broadcast %302 : vector<1x128xf32> to vector<16x128xf32>
    %304 = arith.addf %300, %303 : vector<16x128xf32>
    %305 = arith.addf %304, %211 : vector<16x128xf32>
    %c1_124 = arith.constant 1 : index
    %c0_125 = arith.constant 0 : index
    %c0_126 = arith.constant 0 : index
    %306 = vector.load %arg9[%c1_124, %c0_125, %c0_126] : memref<2x1x128xf32, #tpu.memory_space<vmem>>, vector<1x1x128xf32>
    %307 = vector.shape_cast %306 : vector<1x1x128xf32> to vector<1x128xf32>
    %c1_127 = arith.constant 1 : index
    %c0_128 = arith.constant 0 : index
    %c0_129 = arith.constant 0 : index
    %308 = vector.load %arg10[%c1_127, %c0_128, %c0_129] : memref<2x1x128xf32, #tpu.memory_space<vmem>>, vector<1x1x128xf32>
    %309 = vector.shape_cast %308 : vector<1x1x128xf32> to vector<1x128xf32>
    %cst_130 = arith.constant dense<0.000000e+00> : vector<16xf32>
    %310 = vector.multi_reduction <add>, %305, %cst_130 [1] : vector<16x128xf32> to vector<16xf32>
    %311 = vector.shape_cast %310 : vector<16xf32> to vector<16x1xf32>
    %cst_131 = arith.constant 1.280000e+02 : f32
    %312 = vector.broadcast %cst_131 : f32 to vector<16x1xf32>
    %313 = arith.divf %311, %312 : vector<16x1xf32>
    %314 = vector.broadcast %313 : vector<16x1xf32> to vector<16x128xf32>
    %315 = arith.subf %305, %314 : vector<16x128xf32>
    %316 = arith.mulf %315, %315 : vector<16x128xf32>
    %cst_132 = arith.constant dense<0.000000e+00> : vector<16xf32>
    %317 = vector.multi_reduction <add>, %316, %cst_132 [1] : vector<16x128xf32> to vector<16xf32>
    %318 = vector.shape_cast %317 : vector<16xf32> to vector<16x1xf32>
    %cst_133 = arith.constant 1.280000e+02 : f32
    %319 = vector.broadcast %cst_133 : f32 to vector<16x1xf32>
    %320 = arith.divf %318, %319 : vector<16x1xf32>
    %cst_134 = arith.constant 9.99999974E-6 : f32
    %321 = vector.broadcast %cst_134 : f32 to vector<16x1xf32>
    %322 = arith.addf %320, %321 : vector<16x1xf32>
    %323 = math.rsqrt %322 : vector<16x1xf32>
    %324 = vector.broadcast %323 : vector<16x1xf32> to vector<16x128xf32>
    %325 = arith.mulf %315, %324 : vector<16x128xf32>
    %326 = vector.broadcast %307 : vector<1x128xf32> to vector<16x128xf32>
    %327 = arith.mulf %325, %326 : vector<16x128xf32>
    %328 = vector.broadcast %309 : vector<1x128xf32> to vector<16x128xf32>
    %329 = arith.addf %327, %328 : vector<16x128xf32>
    %c1_135 = arith.constant 1 : index
    %c0_136 = arith.constant 0 : index
    %c0_137 = arith.constant 0 : index
    %330 = vector.load %arg11[%c1_135, %c0_136, %c0_137] : memref<2x128x256xf32, #tpu.memory_space<vmem>>, vector<1x128x256xf32>
    %331 = vector.shape_cast %330 : vector<1x128x256xf32> to vector<128x256xf32>
    %cst_138 = arith.constant dense<0.000000e+00> : vector<16x256xf32>
    %332 = tpu.matmul %329, %331, %cst_138 {dimension_numbers = #tpu.dot_dimension_numbers<[1], [0], [0], [1], [0, 0, 1, 1], [], []>} : vector<16x128xf32>, vector<128x256xf32>, vector<16x256xf32> -> vector<16x256xf32>
    %c1_139 = arith.constant 1 : index
    %c0_140 = arith.constant 0 : index
    %c0_141 = arith.constant 0 : index
    %333 = vector.load %arg12[%c1_139, %c0_140, %c0_141] : memref<2x1x256xf32, #tpu.memory_space<vmem>>, vector<1x1x256xf32>
    %334 = vector.shape_cast %333 : vector<1x1x256xf32> to vector<1x256xf32>
    %335 = vector.broadcast %334 : vector<1x256xf32> to vector<16x256xf32>
    %336 = arith.addf %332, %335 : vector<16x256xf32>
    %337 = arith.mulf %336, %336 : vector<16x256xf32>
    %338 = arith.mulf %336, %337 : vector<16x256xf32>
    %cst_142 = arith.constant 4.471500e-02 : f32
    %339 = vector.broadcast %cst_142 : f32 to vector<16x256xf32>
    %340 = arith.mulf %339, %338 : vector<16x256xf32>
    %341 = arith.addf %336, %340 : vector<16x256xf32>
    %cst_143 = arith.constant 0.797884583 : f32
    %342 = vector.broadcast %cst_143 : f32 to vector<16x256xf32>
    %343 = arith.mulf %342, %341 : vector<16x256xf32>
    %344 = math.tanh %343 : vector<16x256xf32>
    %cst_144 = arith.constant 1.000000e+00 : f32
    %345 = vector.broadcast %cst_144 : f32 to vector<16x256xf32>
    %346 = arith.addf %345, %344 : vector<16x256xf32>
    %cst_145 = arith.constant 5.000000e-01 : f32
    %347 = vector.broadcast %cst_145 : f32 to vector<16x256xf32>
    %348 = arith.mulf %347, %346 : vector<16x256xf32>
    %349 = arith.mulf %336, %348 : vector<16x256xf32>
    %c1_146 = arith.constant 1 : index
    %c0_147 = arith.constant 0 : index
    %c0_148 = arith.constant 0 : index
    %350 = vector.load %arg13[%c1_146, %c0_147, %c0_148] : memref<2x256x128xf32, #tpu.memory_space<vmem>>, vector<1x256x128xf32>
    %351 = vector.shape_cast %350 : vector<1x256x128xf32> to vector<256x128xf32>
    %cst_149 = arith.constant dense<0.000000e+00> : vector<16x128xf32>
    %352 = tpu.matmul %349, %351, %cst_149 {dimension_numbers = #tpu.dot_dimension_numbers<[1], [0], [0], [1], [0, 0, 1, 1], [], []>} : vector<16x256xf32>, vector<256x128xf32>, vector<16x128xf32> -> vector<16x128xf32>
    %c1_150 = arith.constant 1 : index
    %c0_151 = arith.constant 0 : index
    %c0_152 = arith.constant 0 : index
    %353 = vector.load %arg14[%c1_150, %c0_151, %c0_152] : memref<2x1x128xf32, #tpu.memory_space<vmem>>, vector<1x1x128xf32>
    %354 = vector.shape_cast %353 : vector<1x1x128xf32> to vector<1x128xf32>
    %355 = vector.broadcast %354 : vector<1x128xf32> to vector<16x128xf32>
    %356 = arith.addf %352, %355 : vector<16x128xf32>
    %357 = arith.addf %356, %329 : vector<16x128xf32>
    %c1_153 = arith.constant 1 : index
    %c0_154 = arith.constant 0 : index
    %c0_155 = arith.constant 0 : index
    %358 = vector.load %arg15[%c1_153, %c0_154, %c0_155] : memref<2x1x128xf32, #tpu.memory_space<vmem>>, vector<1x1x128xf32>
    %359 = vector.shape_cast %358 : vector<1x1x128xf32> to vector<1x128xf32>
    %c1_156 = arith.constant 1 : index
    %c0_157 = arith.constant 0 : index
    %c0_158 = arith.constant 0 : index
    %360 = vector.load %arg16[%c1_156, %c0_157, %c0_158] : memref<2x1x128xf32, #tpu.memory_space<vmem>>, vector<1x1x128xf32>
    %361 = vector.shape_cast %360 : vector<1x1x128xf32> to vector<1x128xf32>
    %cst_159 = arith.constant dense<0.000000e+00> : vector<16xf32>
    %362 = vector.multi_reduction <add>, %357, %cst_159 [1] : vector<16x128xf32> to vector<16xf32>
    %363 = vector.shape_cast %362 : vector<16xf32> to vector<16x1xf32>
    %cst_160 = arith.constant 1.280000e+02 : f32
    %364 = vector.broadcast %cst_160 : f32 to vector<16x1xf32>
    %365 = arith.divf %363, %364 : vector<16x1xf32>
    %366 = vector.broadcast %365 : vector<16x1xf32> to vector<16x128xf32>
    %367 = arith.subf %357, %366 : vector<16x128xf32>
    %368 = arith.mulf %367, %367 : vector<16x128xf32>
    %cst_161 = arith.constant dense<0.000000e+00> : vector<16xf32>
    %369 = vector.multi_reduction <add>, %368, %cst_161 [1] : vector<16x128xf32> to vector<16xf32>
    %370 = vector.shape_cast %369 : vector<16xf32> to vector<16x1xf32>
    %cst_162 = arith.constant 1.280000e+02 : f32
    %371 = vector.broadcast %cst_162 : f32 to vector<16x1xf32>
    %372 = arith.divf %370, %371 : vector<16x1xf32>
    %cst_163 = arith.constant 9.99999974E-6 : f32
    %373 = vector.broadcast %cst_163 : f32 to vector<16x1xf32>
    %374 = arith.addf %372, %373 : vector<16x1xf32>
    %375 = math.rsqrt %374 : vector<16x1xf32>
    %376 = vector.broadcast %375 : vector<16x1xf32> to vector<16x128xf32>
    %377 = arith.mulf %367, %376 : vector<16x128xf32>
    %378 = vector.broadcast %359 : vector<1x128xf32> to vector<16x128xf32>
    %379 = arith.mulf %377, %378 : vector<16x128xf32>
    %380 = vector.broadcast %361 : vector<1x128xf32> to vector<16x128xf32>
    %381 = arith.addf %379, %380 : vector<16x128xf32>
    %c0_164 = arith.constant 0 : index
    %c0_165 = arith.constant 0 : index
    %382 = vector.load %arg17[%c0_164, %c0_165] : memref<128x128xf32, #tpu.memory_space<vmem>>, vector<128x128xf32>
    %cst_166 = arith.constant dense<0.000000e+00> : vector<16x128xf32>
    %383 = tpu.matmul %381, %382, %cst_166 {dimension_numbers = #tpu.dot_dimension_numbers<[1], [0], [0], [1], [0, 0, 1, 1], [], []>} : vector<16x128xf32>, vector<128x128xf32>, vector<16x128xf32> -> vector<16x128xf32>
    %c0_167 = arith.constant 0 : index
    %c0_168 = arith.constant 0 : index
    %384 = vector.load %arg18[%c0_167, %c0_168] : memref<1x128xf32, #tpu.memory_space<vmem>>, vector<1x128xf32>
    %385 = vector.broadcast %384 : vector<1x128xf32> to vector<16x128xf32>
    %386 = arith.addf %383, %385 : vector<16x128xf32>
    %cst_169 = arith.constant 0.000000e+00 : f32
    %387 = vector.broadcast %cst_169 : f32 to vector<16x128xf32>
    %388 = arith.maximumf %386, %387 : vector<16x128xf32>
    %c0_170 = arith.constant 0 : index
    %c0_171 = arith.constant 0 : index
    %389 = vector.load %arg19[%c0_170, %c0_171] : memref<128x128xf32, #tpu.memory_space<vmem>>, vector<128x128xf32>
    %cst_172 = arith.constant dense<0.000000e+00> : vector<16x128xf32>
    %390 = tpu.matmul %388, %389, %cst_172 {dimension_numbers = #tpu.dot_dimension_numbers<[1], [0], [0], [1], [0, 0, 1, 1], [], []>} : vector<16x128xf32>, vector<128x128xf32>, vector<16x128xf32> -> vector<16x128xf32>
    %c0_173 = arith.constant 0 : index
    %c0_174 = arith.constant 0 : index
    %391 = vector.load %arg20[%c0_173, %c0_174] : memref<1x128xf32, #tpu.memory_space<vmem>>, vector<1x128xf32>
    %392 = vector.broadcast %391 : vector<1x128xf32> to vector<16x128xf32>
    %393 = arith.addf %390, %392 : vector<16x128xf32>
    %394 = arith.mulf %393, %393 : vector<16x128xf32>
    %cst_175 = arith.constant dense<0.000000e+00> : vector<16xf32>
    %395 = vector.multi_reduction <add>, %394, %cst_175 [1] : vector<16x128xf32> to vector<16xf32>
    %396 = vector.shape_cast %395 : vector<16xf32> to vector<16x1xf32>
    %cst_176 = arith.constant 1.000000e-24 : f32
    %397 = vector.broadcast %cst_176 : f32 to vector<16x1xf32>
    %398 = arith.maximumf %396, %397 : vector<16x1xf32>
    %399 = math.rsqrt %398 : vector<16x1xf32>
    %400 = vector.broadcast %399 : vector<16x1xf32> to vector<16x128xf32>
    %401 = arith.mulf %393, %400 : vector<16x128xf32>
    %c0_177 = arith.constant 0 : index
    %c0_178 = arith.constant 0 : index
    %402 = vector.load %arg21[%c0_177, %c0_178] : memref<16x128xf32, #tpu.memory_space<vmem>>, vector<16x128xf32>
    tpu.vector_store %arg21[%c0_177, %c0_178], %401 {strides = array<i32>} : memref<16x128xf32, #tpu.memory_space<vmem>>, vector<16x128xf32>,
    return
  }
}

</mosaic_0001>

<llo_original>
// kernel: forward.1
$region0: #{forward.1}
  #allocation0 [shape = 'u32[]', space=smem, size = 0x4, offset = 0x4, fixed_abs, tag = 'smem constant byte address 0x4 - core index']
  #allocation1 [shape = 'u32[72,128]{1,0:T(1,128)}', space=vmem, size = 0x9000, scoped, tag = 'internal scratch']
  %s0 = inlined_call_operand.vmem [shape: f32[16,768], index: 0, kind: input, shape index: {}]
  %s1 = inlined_call_operand.vmem [shape: f32[16,128], index: 1, kind: input, shape index: {}]
  %s2 = inlined_call_operand.vmem [shape: f32[768,128], index: 2, kind: input, shape index: {}]
  %s3 = inlined_call_operand.vmem [shape: f32[1,128], index: 3, kind: input, shape index: {}]
  %s4 = inlined_call_operand.vmem [shape: f32[1,128], index: 4, kind: input, shape index: {}]
  %s5 = inlined_call_operand.vmem [shape: f32[2,128,384], index: 5, kind: input, shape index: {}]
  %s6 = inlined_call_operand.vmem [shape: f32[2,1,384], index: 6, kind: input, shape index: {}]
  %s7 = inlined_call_operand.vmem [shape: f32[2,128,128], index: 7, kind: input, shape index: {}]
  %s8 = inlined_call_operand.vmem [shape: f32[2,1,128], index: 8, kind: input, shape index: {}]
  %s9 = inlined_call_operand.vmem [shape: f32[2,1,128], index: 9, kind: input, shape index: {}]
  %s10 = inlined_call_operand.vmem [shape: f32[2,1,128], index: 10, kind: input, shape index: {}]
  %s11 = inlined_call_operand.vmem [shape: f32[2,128,256], index: 11, kind: input, shape index: {}]
  %s12 = inlined_call_operand.vmem [shape: f32[2,1,256], index: 12, kind: input, shape index: {}]
  %s13 = inlined_call_operand.vmem [shape: f32[2,256,128], index: 13, kind: input, shape index: {}]
  %s14 = inlined_call_operand.vmem [shape: f32[2,1,128], index: 14, kind: input, shape index: {}]
  %s15 = inlined_call_operand.vmem [shape: f32[2,1,128], index: 15, kind: input, shape index: {}]
  %s16 = inlined_call_operand.vmem [shape: f32[2,1,128], index: 16, kind: input, shape index: {}]
  %s17 = inlined_call_operand.vmem [shape: f32[128,128], index: 17, kind: input, shape index: {}]
  %s18 = inlined_call_operand.vmem [shape: f32[1,128], index: 18, kind: input, shape index: {}]
  %s19 = inlined_call_operand.vmem [shape: f32[128,128], index: 19, kind: input, shape index: {}]
  %s20 = inlined_call_operand.vmem [shape: f32[1,128], index: 20, kind: input, shape index: {}]
  %s21 = inlined_call_operand.vmem [shape: f32[16,128], index: 21, kind: output, shape index: {}]
  %s22 = sld [smem:[#allocation0]]
  $region94: #{forward.1} parent=0
    _
  %s24 = ssub.s32 1, %s22
  %s25 = scalar_select 0, %s24, %s22
  // Predicated region
  $region2: #{forward.1} parent=0 // pred_check
    _
  $region3: #{forward.1} parent=0 // pred_check_branch
    %27 = sbr.rel (0) target = $region5
  $region4: #{forward.1} parent=0 // pred_region
    _
  $region5: #{forward.1} parent=0 // pred_fallthru
    _
  // Predicated region
  $region6: #{forward.1} parent=0 // pred_check
    _
  $region7: #{forward.1} parent=0 // pred_check_branch
    %29 = sbr.rel (0) target = $region9
  $region8: #{forward.1} parent=0 // pred_region
    _
  $region9: #{forward.1} parent=0 // pred_fallthru
    _
  // Predicated region
  $region10: #{forward.1} parent=0 // pred_check
    _
  $region11: #{forward.1} parent=0 // pred_check_branch
    %31 = sbr.rel (0) target = $region13
  $region12: #{forward.1} parent=0 // pred_region
    _
  $region13: #{forward.1} parent=0 // pred_fallthru
    _
  // Predicated region
  $region14: #{forward.1} parent=0 // pred_check
    _
  $region15: #{forward.1} parent=0 // pred_check_branch
    %33 = sbr.rel (0) target = $region17
  $region16: #{forward.1} parent=0 // pred_region
    _
  $region17: #{forward.1} parent=0 // pred_fallthru
    _
  // Predicated region
  $region18: #{forward.1} parent=0 // pred_check
    _
  $region19: #{forward.1} parent=0 // pred_check_branch
    %35 = sbr.rel (0) target = $region21
  $region20: #{forward.1} parent=0 // pred_region
    _
  $region21: #{forward.1} parent=0 // pred_fallthru
    _
  // Predicated region
  $region22: #{forward.1} parent=0 // pred_check
    _
  $region23: #{forward.1} parent=0 // pred_check_branch
    %37 = sbr.rel (0) target = $region25
  $region24: #{forward.1} parent=0 // pred_region
    _
  $region25: #{forward.1} parent=0 // pred_fallthru
    _
  // Predicated region
  $region26: #{forward.1} parent=0 // pred_check
    _
  $region27: #{forward.1} parent=0 // pred_check_branch
    %39 = sbr.rel (0) target = $region29
  $region28: #{forward.1} parent=0 // pred_region
    _
  $region29: #{forward.1} parent=0 // pred_fallthru
    _
  // Predicated region
  $region30: #{forward.1} parent=0 // pred_check
    _
  $region31: #{forward.1} parent=0 // pred_check_branch
    %41 = sbr.rel (0) target = $region33
  $region32: #{forward.1} parent=0 // pred_region
    _
  $region33: #{forward.1} parent=0 // pred_fallthru
    _
  // Predicated region
  $region34: #{forward.1} parent=0 // pred_check
    _
  $region35: #{forward.1} parent=0 // pred_check_branch
    %43 = sbr.rel (0) target = $region37
  $region36: #{forward.1} parent=0 // pred_region
    _
  $region37: #{forward.1} parent=0 // pred_fallthru
    _
  // Predicated region
  $region38: #{forward.1} parent=0 // pred_check
    _
  $region39: #{forward.1} parent=0 // pred_check_branch
    %45 = sbr.rel (0) target = $region41
  $region40: #{forward.1} parent=0 // pred_region
    _
  $region41: #{forward.1} parent=0 // pred_fallthru
    _
  // Predicated region
  $region42: #{forward.1} parent=0 // pred_check
    _
  $region43: #{forward.1} parent=0 // pred_check_branch
    %47 = sbr.rel (0) target = $region45
  $region44: #{forward.1} parent=0 // pred_region
    _
  $region45: #{forward.1} parent=0 // pred_fallthru
    _
  // Predicated region
  $region46: #{forward.1} parent=0 // pred_check
    _
  $region47: #{forward.1} parent=0 // pred_check_branch
    %49 = sbr.rel (0) target = $region49
  $region48: #{forward.1} parent=0 // pred_region
    _
  $region49: #{forward.1} parent=0 // pred_fallthru
    _
  // Predicated region
  $region50: #{forward.1} parent=0 // pred_check
    _
  $region51: #{forward.1} parent=0 // pred_check_branch
    %51 = sbr.rel (0) target = $region53
  $region52: #{forward.1} parent=0 // pred_region
    _
  $region53: #{forward.1} parent=0 // pred_fallthru
    _
  // Predicated region
  $region54: #{forward.1} parent=0 // pred_check
    _
  $region55: #{forward.1} parent=0 // pred_check_branch
    %53 = sbr.rel (0) target = $region57
  $region56: #{forward.1} parent=0 // pred_region
    _
  $region57: #{forward.1} parent=0 // pred_fallthru
    _
  // Predicated region
  $region58: #{forward.1} parent=0 // pred_check
    _
  $region59: #{forward.1} parent=0 // pred_check_branch
    %55 = sbr.rel (0) target = $region61
  $region60: #{forward.1} parent=0 // pred_region
    _
  $region61: #{forward.1} parent=0 // pred_fallthru
    _
  // Predicated region
  $region62: #{forward.1} parent=0 // pred_check
    _
  $region63: #{forward.1} parent=0 // pred_check_branch
    %57 = sbr.rel (0) target = $region65
  $region64: #{forward.1} parent=0 // pred_region
    _
  $region65: #{forward.1} parent=0 // pred_fallthru
    _
  // Predicated region
  $region66: #{forward.1} parent=0 // pred_check
    _
  $region67: #{forward.1} parent=0 // pred_check_branch
    %59 = sbr.rel (0) target = $region69
  $region68: #{forward.1} parent=0 // pred_region
    _
  $region69: #{forward.1} parent=0 // pred_fallthru
    _
  // Predicated region
  $region70: #{forward.1} parent=0 // pred_check
    _
  $region71: #{forward.1} parent=0 // pred_check_branch
    %61 = sbr.rel (0) target = $region73
  $region72: #{forward.1} parent=0 // pred_region
    _
  $region73: #{forward.1} parent=0 // pred_fallthru
    _
  // Predicated region
  $region74: #{forward.1} parent=0 // pred_check
    _
  $region75: #{forward.1} parent=0 // pred_check_branch
    %63 = sbr.rel (0) target = $region77
  $region76: #{forward.1} parent=0 // pred_region
    _
  $region77: #{forward.1} parent=0 // pred_fallthru
    _
  // Predicated region
  $region78: #{forward.1} parent=0 // pred_check
    _
  $region79: #{forward.1} parent=0 // pred_check_branch
    %65 = sbr.rel (0) target = $region81
  $region80: #{forward.1} parent=0 // pred_region
    _
  $region81: #{forward.1} parent=0 // pred_fallthru
    _
  // Predicated region
  $region82: #{forward.1} parent=0 // pred_check
    _
  $region83: #{forward.1} parent=0 // pred_check_branch
    %67 = sbr.rel (0) target = $region85
  $region84: #{forward.1} parent=0 // pred_region
    _
  $region85: #{forward.1} parent=0 // pred_fallthru
    _
  %v68 = vld [vmem:[%s0] sm:$0xff]
  %v69 = vld [vmem:[%s0 + $0x8] sm:$0xff]
  %v70 = vld [vmem:[%s0 + $0x10] sm:$0xff]
  %v71 = vld [vmem:[%s0 + $0x18] sm:$0xff]
  %v72 = vld [vmem:[%s0 + $0x20] sm:$0xff]
  %v73 = vld [vmem:[%s0 + $0x28] sm:$0xff]
  %v74 = vld [vmem:[%s0 + $0x30] sm:$0xff]
  %v75 = vld [vmem:[%s0 + $0x38] sm:$0xff]
  %v76 = vld [vmem:[%s0 + $0x40] sm:$0xff]
  %v77 = vld [vmem:[%s0 + $0x48] sm:$0xff]
  %v78 = vld [vmem:[%s0 + $0x50] sm:$0xff]
  %v79 = vld [vmem:[%s0 + $0x58] sm:$0xff]
  %v80 = vld [vmem:[%s2] sm:$0xff]
  %v81 = vld [vmem:[%s2 + $0x8] sm:$0xff]
  %v82 = vld [vmem:[%s2 + $0x10] sm:$0xff]
  %v83 = vld [vmem:[%s2 + $0x18] sm:$0xff]
  %v84 = vld [vmem:[%s2 + $0x20] sm:$0xff]
  %v85 = vld [vmem:[%s2 + $0x28] sm:$0xff]
  %v86 = vld [vmem:[%s2 + $0x30] sm:$0xff]
  %v87 = vld [vmem:[%s2 + $0x38] sm:$0xff]
  %v88 = vld [vmem:[%s2 + $0x40] sm:$0xff]
  %v89 = vld [vmem:[%s2 + $0x48] sm:$0xff]
  %v90 = vld [vmem:[%s2 + $0x50] sm:$0xff]
  %v91 = vld [vmem:[%s2 + $0x58] sm:$0xff]
  %v92 = vld [vmem:[%s2 + $0x60] sm:$0xff]
  %v93 = vld [vmem:[%s2 + $0x68] sm:$0xff]
  %v94 = vld [vmem:[%s2 + $0x70] sm:$0xff]
  %v95 = vld [vmem:[%s2 + $0x78] sm:$0xff]
  %v96 = vld [vmem:[%s2 + $0x80] sm:$0xff]
  %v97 = vld [vmem:[%s2 + $0x88] sm:$0xff]
  %v98 = vld [vmem:[%s2 + $0x90] sm:$0xff]
  %v99 = vld [vmem:[%s2 + $0x98] sm:$0xff]
  %v100 = vld [vmem:[%s2 + $0xa0] sm:$0xff]
  %v101 = vld [vmem:[%s2 + $0xa8] sm:$0xff]
  %v102 = vld [vmem:[%s2 + $0xb0] sm:$0xff]
  %v103 = vld [vmem:[%s2 + $0xb8] sm:$0xff]
  %v104 = vld [vmem:[%s2 + $0xc0] sm:$0xff]
  %v105 = vld [vmem:[%s2 + $0xc8] sm:$0xff]
  %v106 = vld [vmem:[%s2 + $0xd0] sm:$0xff]
  %v107 = vld [vmem:[%s2 + $0xd8] sm:$0xff]
  %v108 = vld [vmem:[%s2 + $0xe0] sm:$0xff]
  %v109 = vld [vmem:[%s2 + $0xe8] sm:$0xff]
  %v110 = vld [vmem:[%s2 + $0xf0] sm:$0xff]
  %v111 = vld [vmem:[%s2 + $0xf8] sm:$0xff]
  %v112 = vld [vmem:[%s2 + $0x100] sm:$0xff]
  %v113 = vld [vmem:[%s2 + $0x108] sm:$0xff]
  %v114 = vld [vmem:[%s2 + $0x110] sm:$0xff]
  %v115 = vld [vmem:[%s2 + $0x118] sm:$0xff]
  %v116 = vld [vmem:[%s2 + $0x120] sm:$0xff]
  %v117 = vld [vmem:[%s2 + $0x128] sm:$0xff]
  %v118 = vld [vmem:[%s2 + $0x130] sm:$0xff]
  %v119 = vld [vmem:[%s2 + $0x138] sm:$0xff]
  %v120 = vld [vmem:[%s2 + $0x140] sm:$0xff]
  %v121 = vld [vmem:[%s2 + $0x148] sm:$0xff]
  %v122 = vld [vmem:[%s2 + $0x150] sm:$0xff]
  %v123 = vld [vmem:[%s2 + $0x158] sm:$0xff]
  %v124 = vld [vmem:[%s2 + $0x160] sm:$0xff]
  %v125 = vld [vmem:[%s2 + $0x168] sm:$0xff]
  %v126 = vld [vmem:[%s2 + $0x170] sm:$0xff]
  %v127 = vld [vmem:[%s2 + $0x178] sm:$0xff]
  %v128 = vld [vmem:[%s2 + $0x180] sm:$0xff]
  %v129 = vld [vmem:[%s2 + $0x188] sm:$0xff]
  %v130 = vld [vmem:[%s2 + $0x190] sm:$0xff]
  %v131 = vld [vmem:[%s2 + $0x198] sm:$0xff]
  %v132 = vld [vmem:[%s2 + $0x1a0] sm:$0xff]
  %v133 = vld [vmem:[%s2 + $0x1a8] sm:$0xff]
  %v134 = vld [vmem:[%s2 + $0x1b0] sm:$0xff]
  %v135 = vld [vmem:[%s2 + $0x1b8] sm:$0xff]
  %v136 = vld [vmem:[%s2 + $0x1c0] sm:$0xff]
  %v137 = vld [vmem:[%s2 + $0x1c8] sm:$0xff]
  %v138 = vld [vmem:[%s2 + $0x1d0] sm:$0xff]
  %v139 = vld [vmem:[%s2 + $0x1d8] sm:$0xff]
  %v140 = vld [vmem:[%s2 + $0x1e0] sm:$0xff]
  %v141 = vld [vmem:[%s2 + $0x1e8] sm:$0xff]
  %v142 = vld [vmem:[%s2 + $0x1f0] sm:$0xff]
  %v143 = vld [vmem:[%s2 + $0x1f8] sm:$0xff]
  %v144 = vld [vmem:[%s2 + $0x200] sm:$0xff]
  %v145 = vld [vmem:[%s2 + $0x208] sm:$0xff]
  %v146 = vld [vmem:[%s2 + $0x210] sm:$0xff]
  %v147 = vld [vmem:[%s2 + $0x218] sm:$0xff]
  %v148 = vld [vmem:[%s2 + $0x220] sm:$0xff]
  %v149 = vld [vmem:[%s2 + $0x228] sm:$0xff]
  %v150 = vld [vmem:[%s2 + $0x230] sm:$0xff]
  %v151 = vld [vmem:[%s2 + $0x238] sm:$0xff]
  %v152 = vld [vmem:[%s2 + $0x240] sm:$0xff]
  %v153 = vld [vmem:[%s2 + $0x248] sm:$0xff]
  %v154 = vld [vmem:[%s2 + $0x250] sm:$0xff]
  %v155 = vld [vmem:[%s2 + $0x258] sm:$0xff]
  %v156 = vld [vmem:[%s2 + $0x260] sm:$0xff]
  %v157 = vld [vmem:[%s2 + $0x268] sm:$0xff]
  %v158 = vld [vmem:[%s2 + $0x270] sm:$0xff]
  %v159 = vld [vmem:[%s2 + $0x278] sm:$0xff]
  %v160 = vld [vmem:[%s2 + $0x280] sm:$0xff]
  %v161 = vld [vmem:[%s2 + $0x288] sm:$0xff]
  %v162 = vld [vmem:[%s2 + $0x290] sm:$0xff]
  %v163 = vld [vmem:[%s2 + $0x298] sm:$0xff]
  %v164 = vld [vmem:[%s2 + $0x2a0] sm:$0xff]
  %v165 = vld [vmem:[%s2 + $0x2a8] sm:$0xff]
  %v166 = vld [vmem:[%s2 + $0x2b0] sm:$0xff]
  %v167 = vld [vmem:[%s2 + $0x2b8] sm:$0xff]
  %v168 = vld [vmem:[%s2 + $0x2c0] sm:$0xff]
  %v169 = vld [vmem:[%s2 + $0x2c8] sm:$0xff]
  %v170 = vld [vmem:[%s2 + $0x2d0] sm:$0xff]
  %v171 = vld [vmem:[%s2 + $0x2d8] sm:$0xff]
  %v172 = vld [vmem:[%s2 + $0x2e0] sm:$0xff]
  %v173 = vld [vmem:[%s2 + $0x2e8] sm:$0xff]
  %v174 = vld [vmem:[%s2 + $0x2f0] sm:$0xff]
  %v175 = vld [vmem:[%s2 + $0x2f8] sm:$0xff]
  %v176 = vld [vmem:[%s1] sm:$0xff]
  %v177 = vld [vmem:[%s1 + $0x8] sm:$0xff]
  %178 = vmatpush.msra.mxu0 %v95
  %179 = vmatpush.msra.mxu0 %v94
  %180 = vmatpush.msra.mxu0 %v93
  %181 = vmatpush.msra.mxu0 %v92
  %182 = vmatpush.msra.mxu0 %v91
  %183 = vmatpush.msra.mxu0 %v90
  %184 = vmatpush.msra.mxu0 %v89
  %185 = vmatpush.msra.mxu0 %v88
  %186 = vmatpush.msra.mxu0 %v87
  %187 = vmatpush.msra.mxu0 %v86
  %188 = vmatpush.msra.mxu0 %v85
  %189 = vmatpush.msra.mxu0 %v84
  %190 = vmatpush.msra.mxu0 %v83
  %191 = vmatpush.msra.mxu0 %v82
  %192 = vmatpush.msra.mxu0 %v81
  %193 = vmatpush.msra.mxu0 %v80
  %194 = vmatmul.f32.gmra.mxu0 %v68
  %v195 = vpop.f32.mrf.mxu0
  %v196 = vadd.f32 %v176, %v195
  %197 = vmatmul.f32.gmra.mxu0 %v74
  %v198 = vpop.f32.mrf.mxu0
  %v199 = vadd.f32 %v177, %v198
  %200 = vdwg.mxu0
  %201 = vmatpush.msra.mxu0 %v111
  %202 = vmatpush.msra.mxu0 %v110
  %203 = vmatpush.msra.mxu0 %v109
  %204 = vmatpush.msra.mxu0 %v108
  %205 = vmatpush.msra.mxu0 %v107
  %206 = vmatpush.msra.mxu0 %v106
  %207 = vmatpush.msra.mxu0 %v105
  %208 = vmatpush.msra.mxu0 %v104
  %209 = vmatpush.msra.mxu0 %v103
  %210 = vmatpush.msra.mxu0 %v102
  %211 = vmatpush.msra.mxu0 %v101
  %212 = vmatpush.msra.mxu0 %v100
  %213 = vmatpush.msra.mxu0 %v99
  %214 = vmatpush.msra.mxu0 %v98
  %215 = vmatpush.msra.mxu0 %v97
  %216 = vmatpush.msra.mxu0 %v96
  %217 = vmatmul.f32.gmra.mxu0 %v69
  %v218 = vpop.f32.mrf.mxu0
  %v219 = vadd.f32 %v196, %v218
  %220 = vmatmul.f32.gmra.mxu0 %v75
  %v221 = vpop.f32.mrf.mxu0
  %v222 = vadd.f32 %v199, %v221
  %223 = vdwg.mxu0
  %224 = vmatpush.msra.mxu0 %v127
  %225 = vmatpush.msra.mxu0 %v126
  %226 = vmatpush.msra.mxu0 %v125
  %227 = vmatpush.msra.mxu0 %v124
  %228 = vmatpush.msra.mxu0 %v123
  %229 = vmatpush.msra.mxu0 %v122
  %230 = vmatpush.msra.mxu0 %v121
  %231 = vmatpush.msra.mxu0 %v120
  %232 = vmatpush.msra.mxu0 %v119
  %233 = vmatpush.msra.mxu0 %v118
  %234 = vmatpush.msra.mxu0 %v117
  %235 = vmatpush.msra.mxu0 %v116
  %236 = vmatpush.msra.mxu0 %v115
  %237 = vmatpush.msra.mxu0 %v114
  %238 = vmatpush.msra.mxu0 %v113
  %239 = vmatpush.msra.mxu0 %v112
  %240 = vmatmul.f32.gmra.mxu0 %v70
  %v241 = vpop.f32.mrf.mxu0
  %v242 = vadd.f32 %v219, %v241
  %243 = vmatmul.f32.gmra.mxu0 %v76
  %v244 = vpop.f32.mrf.mxu0
  %v245 = vadd.f32 %v222, %v244
  %246 = vdwg.mxu0
  %247 = vmatpush.msra.mxu0 %v143
  %248 = vmatpush.msra.mxu0 %v142
  %249 = vmatpush.msra.mxu0 %v141
  %250 = vmatpush.msra.mxu0 %v140
  %251 = vmatpush.msra.mxu0 %v139
  %252 = vmatpush.msra.mxu0 %v138
  %253 = vmatpush.msra.mxu0 %v137
  %254 = vmatpush.msra.mxu0 %v136
  %255 = vmatpush.msra.mxu0 %v135
  %256 = vmatpush.msra.mxu0 %v134
  %257 = vmatpush.msra.mxu0 %v133
  %258 = vmatpush.msra.mxu0 %v132
  %259 = vmatpush.msra.mxu0 %v131
  %260 = vmatpush.msra.mxu0 %v130
  %261 = vmatpush.msra.mxu0 %v129
  %262 = vmatpush.msra.mxu0 %v128
  %263 = vmatmul.f32.gmra.mxu0 %v71
  %v264 = vpop.f32.mrf.mxu0
  %v265 = vadd.f32 %v242, %v264
  %266 = vmatmul.f32.gmra.mxu0 %v77
  %v267 = vpop.f32.mrf.mxu0
  %v268 = vadd.f32 %v245, %v267
  %269 = vdwg.mxu0
  %270 = vmatpush.msra.mxu0 %v159
  %271 = vmatpush.msra.mxu0 %v158
  %272 = vmatpush.msra.mxu0 %v157
  %273 = vmatpush.msra.mxu0 %v156
  %274 = vmatpush.msra.mxu0 %v155
  %275 = vmatpush.msra.mxu0 %v154
  %276 = vmatpush.msra.mxu0 %v153
  %277 = vmatpush.msra.mxu0 %v152
  %278 = vmatpush.msra.mxu0 %v151
  %279 = vmatpush.msra.mxu0 %v150
  %280 = vmatpush.msra.mxu0 %v149
  %281 = vmatpush.msra.mxu0 %v148
  %282 = vmatpush.msra.mxu0 %v147
  %283 = vmatpush.msra.mxu0 %v146
  %284 = vmatpush.msra.mxu0 %v145
  %285 = vmatpush.msra.mxu0 %v144
  %286 = vmatmul.f32.gmra.mxu0 %v72
  %v287 = vpop.f32.mrf.mxu0
  %v288 = vadd.f32 %v265, %v287
  %289 = vmatmul.f32.gmra.mxu0 %v78
  %v290 = vpop.f32.mrf.mxu0
  %v291 = vadd.f32 %v268, %v290
  %292 = vdwg.mxu0
  %293 = vmatpush.msra.mxu0 %v175
  %294 = vmatpush.msra.mxu0 %v174
  %295 = vmatpush.msra.mxu0 %v173
  %296 = vmatpush.msra.mxu0 %v172
  %297 = vmatpush.msra.mxu0 %v171
  %298 = vmatpush.msra.mxu0 %v170
  %299 = vmatpush.msra.mxu0 %v169
  %300 = vmatpush.msra.mxu0 %v168
  %301 = vmatpush.msra.mxu0 %v167
  %302 = vmatpush.msra.mxu0 %v166
  %303 = vmatpush.msra.mxu0 %v165
  %304 = vmatpush.msra.mxu0 %v164
  %305 = vmatpush.msra.mxu0 %v163
  %306 = vmatpush.msra.mxu0 %v162
  %307 = vmatpush.msra.mxu0 %v161
  %308 = vmatpush.msra.mxu0 %v160
  %309 = vmatmul.f32.gmra.mxu0 %v73
  %v310 = vpop.f32.mrf.mxu0
  %v311 = vadd.f32 %v288, %v310
  %312 = vmatmul.f32.gmra.mxu0 %v79
  %v313 = vpop.f32.mrf.mxu0
  %v314 = vadd.f32 %v291, %v313
  %315 = vdwg.mxu0
  %v316 = vld [vmem:[%s3] sm:$0x1]
  %v317 = vld [vmem:[%s4] sm:$0x1]
  %318 = vadd.xlane.f32.xlu0 %v311
  %v319 = vpop.xlane.xlu0 %318
  %320 = vadd.xlane.f32.xlu0 %v314
  %v321 = vpop.xlane.xlu0 %320
  %v322 = vrcp.pop 128.0
  %v323 = vmul.f32 128.0, %v322
  %v324 = vsub.f32 1.0, %v323
  %v325 = vmul.f32 %v322, %v324
  %v326 = vadd.f32 %v322, %v325
  %vm327 = vweird.f32 %v322
  %v328 = vsel %vm327, %v322, %v326
  %v329 = vmul.f32 %v319, %v328
  %v330 = vmul.f32 %v321, %v328
  %v331 = vsub.f32 %v311, %v329
  %v332 = vsub.f32 %v314, %v330
  %v333 = vmul.f32 %v331, %v331
  %v334 = vmul.f32 %v332, %v332
  %335 = vadd.xlane.f32.xlu0 %v333
  %v336 = vpop.xlane.xlu0 %335
  %337 = vadd.xlane.f32.xlu0 %v334
  %v338 = vpop.xlane.xlu0 %337
  %v339 = vmul.f32 %v336, %v328
  %v340 = vmul.f32 %v338, %v328
  %v341 = vadd.f32 %v339, 1e-05
  %v342 = vadd.f32 %v340, 1e-05
  %v343 = vrsqrt.pop %v341
  %v344 = vmul.f32 %v343, %v341
  %v345 = vmul.f32 %v344, %v343
  %v346 = vmul.f32 0.5, %v345
  %v347 = vsub.f32 1.5, %v346
  %v348 = vmul.f32 %v343, %v347
  %vm349 = vweird.f32 %v341
  %vm350 = vweird.f32 %v343
  %vm351 = vmor %vm349, %vm350
  %v352 = vsel %vm351, %v343, %v348
  %v353 = vrsqrt.pop %v342
  %v354 = vmul.f32 %v353, %v342
  %v355 = vmul.f32 %v354, %v353
  %v356 = vmul.f32 0.5, %v355
  %v357 = vsub.f32 1.5, %v356
  %v358 = vmul.f32 %v353, %v357
  %vm359 = vweird.f32 %v342
  %vm360 = vweird.f32 %v353
  %vm361 = vmor %vm359, %vm360
  %v362 = vsel %vm361, %v353, %v358
  %v363 = vmul.f32 %v331, %v352
  %v364 = vmul.f32 %v332, %v362
  %v366 = vperm.slane %v316, 0
  %v368 = vmul.f32 %v363, %v366
  %v369 = vmul.f32 %v364, %v366
  %v371 = vperm.slane %v317, 0
  %v373 = vadd.f32 %v368, %v371
  %v374 = vadd.f32 %v369, %v371
  %v375 = vlaneseq
  %v376 = vshrl.u32 %v375, 7
  %v377 = vadd.s32 %v376, 8
  %v378 = vlaneseq
  %v379 = vand.u32 %v378, 127
  %v380 = vshra.s32 %v376, 3
  %v381 = vshra.s32 %v377, 3
  %v382 = vshra.s32 %v379, 3
  %vm383 = vcmp.eq.s32.totalorder %v380, %v382
  %vm384 = vcmp.eq.s32.totalorder %v381, %v382
  %v385 = vand.u32 %v379, 7
  %vm386 = vcmp.lt.s32.totalorder %v385, 5
  %vm387 = vmand %vm383, %vm386
  %vm388 = vmand %vm384, %vm386
  %v389 = vsel %vm387, 0.0, -1e+09
  %v390 = vsel %vm388, 0.0, -1e+09
  %v391 = vld [vmem:[%s5] sm:$0xff]
  %v392 = vld [vmem:[%s5 + $0x8] sm:$0xff]
  %v393 = vld [vmem:[%s5 + $0x10] sm:$0xff]
  %v394 = vld [vmem:[%s5 + $0x18] sm:$0xff]
  %v395 = vld [vmem:[%s5 + $0x20] sm:$0xff]
  %v396 = vld [vmem:[%s5 + $0x28] sm:$0xff]
  %v397 = vld [vmem:[%s5 + $0x30] sm:$0xff]
  %v398 = vld [vmem:[%s5 + $0x38] sm:$0xff]
  %v399 = vld [vmem:[%s5 + $0x40] sm:$0xff]
  %v400 = vld [vmem:[%s5 + $0x48] sm:$0xff]
  %v401 = vld [vmem:[%s5 + $0x50] sm:$0xff]
  %v402 = vld [vmem:[%s5 + $0x58] sm:$0xff]
  %v403 = vld [vmem:[%s5 + $0x60] sm:$0xff]
  %v404 = vld [vmem:[%s5 + $0x68] sm:$0xff]
  %v405 = vld [vmem:[%s5 + $0x70] sm:$0xff]
  %v406 = vld [vmem:[%s5 + $0x78] sm:$0xff]
  %v407 = vld [vmem:[%s5 + $0x80] sm:$0xff]
  %v408 = vld [vmem:[%s5 + $0x88] sm:$0xff]
  %v409 = vld [vmem:[%s5 + $0x90] sm:$0xff]
  %v410 = vld [vmem:[%s5 + $0x98] sm:$0xff]
  %v411 = vld [vmem:[%s5 + $0xa0] sm:$0xff]
  %v412 = vld [vmem:[%s5 + $0xa8] sm:$0xff]
  %v413 = vld [vmem:[%s5 + $0xb0] sm:$0xff]
  %v414 = vld [vmem:[%s5 + $0xb8] sm:$0xff]
  %v415 = vld [vmem:[%s5 + $0xc0] sm:$0xff]
  %v416 = vld [vmem:[%s5 + $0xc8] sm:$0xff]
  %v417 = vld [vmem:[%s5 + $0xd0] sm:$0xff]
  %v418 = vld [vmem:[%s5 + $0xd8] sm:$0xff]
  %v419 = vld [vmem:[%s5 + $0xe0] sm:$0xff]
  %v420 = vld [vmem:[%s5 + $0xe8] sm:$0xff]
  %v421 = vld [vmem:[%s5 + $0xf0] sm:$0xff]
  %v422 = vld [vmem:[%s5 + $0xf8] sm:$0xff]
  %v423 = vld [vmem:[%s5 + $0x100] sm:$0xff]
  %v424 = vld [vmem:[%s5 + $0x108] sm:$0xff]
  %v425 = vld [vmem:[%s5 + $0x110] sm:$0xff]
  %v426 = vld [vmem:[%s5 + $0x118] sm:$0xff]
  %v427 = vld [vmem:[%s5 + $0x120] sm:$0xff]
  %v428 = vld [vmem:[%s5 + $0x128] sm:$0xff]
  %v429 = vld [vmem:[%s5 + $0x130] sm:$0xff]
  %v430 = vld [vmem:[%s5 + $0x138] sm:$0xff]
  %v431 = vld [vmem:[%s5 + $0x140] sm:$0xff]
  %v432 = vld [vmem:[%s5 + $0x148] sm:$0xff]
  %v433 = vld [vmem:[%s5 + $0x150] sm:$0xff]
  %v434 = vld [vmem:[%s5 + $0x158] sm:$0xff]
  %v435 = vld [vmem:[%s5 + $0x160] sm:$0xff]
  %v436 = vld [vmem:[%s5 + $0x168] sm:$0xff]
  %v437 = vld [vmem:[%s5 + $0x170] sm:$0xff]
  %v438 = vld [vmem:[%s5 + $0x178] sm:$0xff]
  %v439 = vld [vmem:[%s6] sm:$0x7]
  %v441 = vperm.slane %v439, 0
  %v442 = vperm.slane %v439, 1
  %v443 = vperm.slane %v439, 2
  %447 = vmatpush.msra.mxu0 %v436
  %448 = vmatpush.msra.mxu0 %v433
  %449 = vmatpush.msra.mxu0 %v430
  %450 = vmatpush.msra.mxu0 %v427
  %451 = vmatpush.msra.mxu0 %v424
  %452 = vmatpush.msra.mxu0 %v421
  %453 = vmatpush.msra.mxu0 %v418
  %454 = vmatpush.msra.mxu0 %v415
  %455 = vmatpush.msra.mxu0 %v412
  %456 = vmatpush.msra.mxu0 %v409
  %457 = vmatpush.msra.mxu0 %v406
  %458 = vmatpush.msra.mxu0 %v403
  %459 = vmatpush.msra.mxu0 %v400
  %460 = vmatpush.msra.mxu0 %v397
  %461 = vmatpush.msra.mxu0 %v394
  %462 = vmatpush.msra.mxu0 %v391
  %463 = vmatmul.f32.gmra.mxu0 %v373
  %v464 = vpop.f32.mrf.mxu0
  %v465 = vadd.f32 %v441, %v464
  %466 = vmatmul.f32.gmra.mxu0 %v374
  %v467 = vpop.f32.mrf.mxu0
  %v468 = vadd.f32 %v441, %v467
  %469 = vdwg.mxu0
  %470 = vmatpush.msra.mxu0 %v437
  %471 = vmatpush.msra.mxu0 %v434
  %472 = vmatpush.msra.mxu0 %v431
  %473 = vmatpush.msra.mxu0 %v428
  %474 = vmatpush.msra.mxu0 %v425
  %475 = vmatpush.msra.mxu0 %v422
  %476 = vmatpush.msra.mxu0 %v419
  %477 = vmatpush.msra.mxu0 %v416
  %478 = vmatpush.msra.mxu0 %v413
  %479 = vmatpush.msra.mxu0 %v410
  %480 = vmatpush.msra.mxu0 %v407
  %481 = vmatpush.msra.mxu0 %v404
  %482 = vmatpush.msra.mxu0 %v401
  %483 = vmatpush.msra.mxu0 %v398
  %484 = vmatpush.msra.mxu0 %v395
  %485 = vmatpush.msra.mxu0 %v392
  %486 = vmatmul.f32.gmra.mxu0 %v373
  %v487 = vpop.f32.mrf.mxu0
  %v488 = vadd.f32 %v442, %v487
  %489 = vmatmul.f32.gmra.mxu0 %v374
  %v490 = vpop.f32.mrf.mxu0
  %v491 = vadd.f32 %v442, %v490
  %492 = vdwg.mxu0
  %493 = vmatpush.msra.mxu0 %v438
  %494 = vmatpush.msra.mxu0 %v435
  %495 = vmatpush.msra.mxu0 %v432
  %496 = vmatpush.msra.mxu0 %v429
  %497 = vmatpush.msra.mxu0 %v426
  %498 = vmatpush.msra.mxu0 %v423
  %499 = vmatpush.msra.mxu0 %v420
  %500 = vmatpush.msra.mxu0 %v417
  %501 = vmatpush.msra.mxu0 %v414
  %502 = vmatpush.msra.mxu0 %v411
  %503 = vmatpush.msra.mxu0 %v408
  %504 = vmatpush.msra.mxu0 %v405
  %505 = vmatpush.msra.mxu0 %v402
  %506 = vmatpush.msra.mxu0 %v399
  %507 = vmatpush.msra.mxu0 %v396
  %508 = vmatpush.msra.mxu0 %v393
  %509 = vmatmul.f32.gmra.mxu0 %v373
  %v510 = vpop.f32.mrf.mxu0
  %v511 = vadd.f32 %v443, %v510
  %512 = vmatmul.f32.gmra.mxu0 %v374
  %v513 = vpop.f32.mrf.mxu0
  %v514 = vadd.f32 %v443, %v513
  %515 = vdwg.mxu0
  %v516 = vmul.f32 %v465, 0.17677669
  %v517 = vmul.f32 %v468, 0.17677669
  %v518 = vld [vmem:[%s7] sm:$0xff]
  %v519 = vld [vmem:[%s7 + $0x8] sm:$0xff]
  %v520 = vld [vmem:[%s7 + $0x10] sm:$0xff]
  %v521 = vld [vmem:[%s7 + $0x18] sm:$0xff]
  %v522 = vld [vmem:[%s7 + $0x20] sm:$0xff]
  %v523 = vld [vmem:[%s7 + $0x28] sm:$0xff]
  %v524 = vld [vmem:[%s7 + $0x30] sm:$0xff]
  %v525 = vld [vmem:[%s7 + $0x38] sm:$0xff]
  %v526 = vld [vmem:[%s7 + $0x40] sm:$0xff]
  %v527 = vld [vmem:[%s7 + $0x48] sm:$0xff]
  %v528 = vld [vmem:[%s7 + $0x50] sm:$0xff]
  %v529 = vld [vmem:[%s7 + $0x58] sm:$0xff]
  %v530 = vld [vmem:[%s7 + $0x60] sm:$0xff]
  %v531 = vld [vmem:[%s7 + $0x68] sm:$0xff]
  %v532 = vld [vmem:[%s7 + $0x70] sm:$0xff]
  %v533 = vld [vmem:[%s7 + $0x78] sm:$0xff]
  %vm534 = vcmask 261120
  %v536 = vsel %vm534, %v516, 0
  %v539 = vsel %vm534, %v517, 0
  %v542 = vsel %vm534, %v488, 0
  %v545 = vsel %vm534, %v491, 0
  %547 = vmatpush.xpose.msra.mxu0 0.0
  %548 = vmatpush.xpose.msra.mxu0 0.0
  %549 = vmatpush.xpose.msra.mxu0 0.0
  %550 = vmatpush.xpose.msra.mxu0 0.0
  %551 = vmatpush.xpose.msra.mxu0 0.0
  %552 = vmatpush.xpose.msra.mxu0 0.0
  %553 = vmatpush.xpose.msra.mxu0 0.0
  %554 = vmatpush.xpose.msra.mxu0 0.0
  %555 = vmatpush.xpose.msra.mxu0 0.0
  %556 = vmatpush.xpose.msra.mxu0 0.0
  %557 = vmatpush.xpose.msra.mxu0 0.0
  %558 = vmatpush.xpose.msra.mxu0 0.0
  %559 = vmatpush.xpose.msra.mxu0 0.0
  %560 = vmatpush.xpose.msra.mxu0 0.0
  %561 = vmatpush.xpose.msra.mxu0 %v545
  %562 = vmatpush.xpose.msra.mxu0 %v542
  %563 = vmatmul.f32.gmra.mxu0 %v536
  %v564 = vpop.f32.mrf.mxu0
  %v565 = vadd.f32 %v389, %v564
  %566 = vmatmul.f32.gmra.mxu0 %v539
  %v567 = vpop.f32.mrf.mxu0
  %v568 = vadd.f32 %v390, %v567
  %569 = vdwg.mxu0
  %vm570 = vcmask 130048
  %v571 = vsel %vm570, %v565, -inf
  %572 = vmax.xlane.f32.xlu0 %v571
  %v573 = vpop.xlane.xlu0 %572
  %v574 = vsel %vm570, %v568, -inf
  %575 = vmax.xlane.f32.xlu0 %v574
  %v576 = vpop.xlane.xlu0 %575
  %v577 = vsub.f32 %v565, %v573
  %v578 = vsub.f32 %v568, %v576
  %v579 = vmul.f32 %v577, 1.442695
  %v580 = vpow.pop %v579
  %v581 = vmul.f32 %v578, 1.442695
  %v582 = vpow.pop %v581
  %v583 = vsel %vm570, %v580, 0.0
  %584 = vadd.xlane.f32.xlu0 %v583
  %v585 = vpop.xlane.xlu0 %584
  %v586 = vsel %vm570, %v582, 0.0
  %587 = vadd.xlane.f32.xlu0 %v586
  %v588 = vpop.xlane.xlu0 %587
  %v589 = vrcp.pop %v585
  %v590 = vrcp.pop %v588
  %v591 = vmul.f32 %v580, %v589
  %v592 = vmul.f32 %v582, %v590
  %v594 = vsel %vm570, %v591, 0
  %v597 = vsel %vm570, %v592, 0
  %599 = vmatpush.msra.mxu0 0.0
  %600 = vmatpush.msra.mxu0 0.0
  %601 = vmatpush.msra.mxu0 0.0
  %602 = vmatpush.msra.mxu0 0.0
  %603 = vmatpush.msra.mxu0 0.0
  %604 = vmatpush.msra.mxu0 0.0
  %605 = vmatpush.msra.mxu0 0.0
  %606 = vmatpush.msra.mxu0 0.0
  %607 = vmatpush.msra.mxu0 0.0
  %608 = vmatpush.msra.mxu0 0.0
  %609 = vmatpush.msra.mxu0 0.0
  %610 = vmatpush.msra.mxu0 0.0
  %611 = vmatpush.msra.mxu0 0.0
  %612 = vmatpush.msra.mxu0 0.0
  %613 = vmatpush.msra.mxu0 %v514
  %614 = vmatpush.msra.mxu0 %v511
  %615 = vmatmul.f32.gmra.mxu0 %v594
  %v616 = vpop.f32.mrf.mxu0
  %v617 = vadd.f32 0.0, %v616
  %618 = vmatmul.f32.gmra.mxu0 %v597
  %v619 = vpop.f32.mrf.mxu0
  %v620 = vadd.f32 0.0, %v619
  %621 = vdwg.mxu0
  %622 = vrot.lane.b32.xlu0 %v516, 96
  %v623 = vpop.permute.xlu0 %622
  %624 = vrot.lane.b32.xlu0 %v517, 96
  %v625 = vpop.permute.xlu0 %624
  %626 = vrot.lane.b32.xlu0 %v488, 96
  %v627 = vpop.permute.xlu0 %626
  %628 = vrot.lane.b32.xlu0 %v491, 96
  %v629 = vpop.permute.xlu0 %628
  %v630 = vsel %vm534, %v623, 0
  %v632 = vsel %vm534, %v625, 0
  %v634 = vsel %vm534, %v627, 0
  %v636 = vsel %vm534, %v629, 0
  %638 = vmatpush.xpose.msra.mxu0 0.0
  %639 = vmatpush.xpose.msra.mxu0 0.0
  %640 = vmatpush.xpose.msra.mxu0 0.0
  %641 = vmatpush.xpose.msra.mxu0 0.0
  %642 = vmatpush.xpose.msra.mxu0 0.0
  %643 = vmatpush.xpose.msra.mxu0 0.0
  %644 = vmatpush.xpose.msra.mxu0 0.0
  %645 = vmatpush.xpose.msra.mxu0 0.0
  %646 = vmatpush.xpose.msra.mxu0 0.0
  %647 = vmatpush.xpose.msra.mxu0 0.0
  %648 = vmatpush.xpose.msra.mxu0 0.0
  %649 = vmatpush.xpose.msra.mxu0 0.0
  %650 = vmatpush.xpose.msra.mxu0 0.0
  %651 = vmatpush.xpose.msra.mxu0 0.0
  %652 = vmatpush.xpose.msra.mxu0 %v636
  %653 = vmatpush.xpose.msra.mxu0 %v634
  %654 = vmatmul.f32.gmra.mxu0 %v630
  %v655 = vpop.f32.mrf.mxu0
  %v656 = vadd.f32 %v389, %v655
  %657 = vmatmul.f32.gmra.mxu0 %v632
  %v658 = vpop.f32.mrf.mxu0
  %v659 = vadd.f32 %v390, %v658
  %660 = vdwg.mxu0
  %v661 = vsel %vm570, %v656, -inf
  %662 = vmax.xlane.f32.xlu0 %v661
  %v663 = vpop.xlane.xlu0 %662
  %v664 = vsel %vm570, %v659, -inf
  %665 = vmax.xlane.f32.xlu0 %v664
  %v666 = vpop.xlane.xlu0 %665
  %v667 = vsub.f32 %v656, %v663
  %v668 = vsub.f32 %v659, %v666
  %v669 = vmul.f32 %v667, 1.442695
  %v670 = vpow.pop %v669
  %v671 = vmul.f32 %v668, 1.442695
  %v672 = vpow.pop %v671
  %v673 = vsel %vm570, %v670, 0.0
  %674 = vadd.xlane.f32.xlu0 %v673
  %v675 = vpop.xlane.xlu0 %674
  %v676 = vsel %vm570, %v672, 0.0
  %677 = vadd.xlane.f32.xlu0 %v676
  %v678 = vpop.xlane.xlu0 %677
  %v679 = vrcp.pop %v675
  %v680 = vrcp.pop %v678
  %v681 = vmul.f32 %v670, %v679
  %v682 = vmul.f32 %v672, %v680
  %685 = vrot.lane.b32.xlu0 %v511, 96
  %v686 = vpop.permute.xlu0 %685
  %687 = vrot.lane.b32.xlu0 %v514, 96
  %v688 = vpop.permute.xlu0 %687
  %v692 = vsel %vm570, %v681, 0
  %v695 = vsel %vm570, %v682, 0
  %697 = vmatpush.msra.mxu0 0.0
  %698 = vmatpush.msra.mxu0 0.0
  %699 = vmatpush.msra.mxu0 0.0
  %700 = vmatpush.msra.mxu0 0.0
  %701 = vmatpush.msra.mxu0 0.0
  %702 = vmatpush.msra.mxu0 0.0
  %703 = vmatpush.msra.mxu0 0.0
  %704 = vmatpush.msra.mxu0 0.0
  %705 = vmatpush.msra.mxu0 0.0
  %706 = vmatpush.msra.mxu0 0.0
  %707 = vmatpush.msra.mxu0 0.0
  %708 = vmatpush.msra.mxu0 0.0
  %709 = vmatpush.msra.mxu0 0.0
  %710 = vmatpush.msra.mxu0 0.0
  %711 = vmatpush.msra.mxu0 %v688
  %712 = vmatpush.msra.mxu0 %v686
  %713 = vmatmul.f32.gmra.mxu0 %v692
  %v714 = vpop.f32.mrf.mxu0
  %v715 = vadd.f32 0.0, %v714
  %716 = vmatmul.f32.gmra.mxu0 %v695
  %v717 = vpop.f32.mrf.mxu0
  %v718 = vadd.f32 0.0, %v717
  %719 = vdwg.mxu0
  %v721 = vsel %vm534, %v715, 0
  %v724 = vsel %vm534, %v718, 0
  %726 = vmatpush.msra.mxu0 0.0
  %727 = vmatpush.msra.mxu0 0.0
  %728 = vmatpush.msra.mxu0 0.0
  %729 = vmatpush.msra.mxu0 0.0
  %730 = vmatpush.msra.mxu0 0.0
  %731 = vmatpush.msra.mxu0 0.0
  %732 = vmatpush.msra.mxu0 0.0
  %733 = vmatpush.msra.mxu0 0.0
  %734 = vmatpush.msra.mxu0 0.0
  %735 = vmatpush.msra.mxu0 0.0
  %736 = vmatpush.msra.mxu0 0.0
  %737 = vmatpush.msra.mxu0 0.0
  %738 = vmatpush.msra.mxu0 %v525
  %739 = vmatpush.msra.mxu0 %v524
  %740 = vmatpush.msra.mxu0 %v523
  %741 = vmatpush.msra.mxu0 %v522
  %742 = vmatmul.f32.gmra.mxu0 %v721
  %v743 = vpop.f32.mrf.mxu0
  %v744 = vadd.f32 0.0, %v743
  %745 = vmatmul.f32.gmra.mxu0 %v724
  %v746 = vpop.f32.mrf.mxu0
  %v747 = vadd.f32 0.0, %v746
  %748 = vdwg.mxu0
  %v750 = vsel %vm534, %v617, 0
  %v753 = vsel %vm534, %v620, 0
  %755 = vmatpush.msra.mxu0 0.0
  %756 = vmatpush.msra.mxu0 0.0
  %757 = vmatpush.msra.mxu0 0.0
  %758 = vmatpush.msra.mxu0 0.0
  %759 = vmatpush.msra.mxu0 0.0
  %760 = vmatpush.msra.mxu0 0.0
  %761 = vmatpush.msra.mxu0 0.0
  %762 = vmatpush.msra.mxu0 0.0
  %763 = vmatpush.msra.mxu0 0.0
  %764 = vmatpush.msra.mxu0 0.0
  %765 = vmatpush.msra.mxu0 0.0
  %766 = vmatpush.msra.mxu0 0.0
  %767 = vmatpush.msra.mxu0 %v521
  %768 = vmatpush.msra.mxu0 %v520
  %769 = vmatpush.msra.mxu0 %v519
  %770 = vmatpush.msra.mxu0 %v518
  %771 = vmatmul.f32.gmra.mxu0 %v750
  %v772 = vpop.f32.mrf.mxu0
  %v773 = vadd.f32 %v744, %v772
  %774 = vmatmul.f32.gmra.mxu0 %v753
  %v775 = vpop.f32.mrf.mxu0
  %v776 = vadd.f32 %v747, %v775
  %777 = vdwg.mxu0
  %778 = vrot.lane.b32.xlu0 %v516, 64
  %v779 = vpop.permute.xlu0 %778
  %780 = vrot.lane.b32.xlu0 %v517, 64
  %v781 = vpop.permute.xlu0 %780
  %782 = vrot.lane.b32.xlu0 %v488, 64
  %v783 = vpop.permute.xlu0 %782
  %784 = vrot.lane.b32.xlu0 %v491, 64
  %v785 = vpop.permute.xlu0 %784
  %v786 = vsel %vm534, %v779, 0
  %v788 = vsel %vm534, %v781, 0
  %v790 = vsel %vm534, %v783, 0
  %v792 = vsel %vm534, %v785, 0
  %794 = vmatpush.xpose.msra.mxu0 0.0
  %795 = vmatpush.xpose.msra.mxu0 0.0
  %796 = vmatpush.xpose.msra.mxu0 0.0
  %797 = vmatpush.xpose.msra.mxu0 0.0
  %798 = vmatpush.xpose.msra.mxu0 0.0
  %799 = vmatpush.xpose.msra.mxu0 0.0
  %800 = vmatpush.xpose.msra.mxu0 0.0
  %801 = vmatpush.xpose.msra.mxu0 0.0
  %802 = vmatpush.xpose.msra.mxu0 0.0
  %803 = vmatpush.xpose.msra.mxu0 0.0
  %804 = vmatpush.xpose.msra.mxu0 0.0
  %805 = vmatpush.xpose.msra.mxu0 0.0
  %806 = vmatpush.xpose.msra.mxu0 0.0
  %807 = vmatpush.xpose.msra.mxu0 0.0
  %808 = vmatpush.xpose.msra.mxu0 %v792
  %809 = vmatpush.xpose.msra.mxu0 %v790
  %810 = vmatmul.f32.gmra.mxu0 %v786
  %v811 = vpop.f32.mrf.mxu0
  %v812 = vadd.f32 %v389, %v811
  %813 = vmatmul.f32.gmra.mxu0 %v788
  %v814 = vpop.f32.mrf.mxu0
  %v815 = vadd.f32 %v390, %v814
  %816 = vdwg.mxu0
  %v817 = vsel %vm570, %v812, -inf
  %818 = vmax.xlane.f32.xlu0 %v817
  %v819 = vpop.xlane.xlu0 %818
  %v820 = vsel %vm570, %v815, -inf
  %821 = vmax.xlane.f32.xlu0 %v820
  %v822 = vpop.xlane.xlu0 %821
  %v823 = vsub.f32 %v812, %v819
  %v824 = vsub.f32 %v815, %v822
  %v825 = vmul.f32 %v823, 1.442695
  %v826 = vpow.pop %v825
  %v827 = vmul.f32 %v824, 1.442695
  %v828 = vpow.pop %v827
  %v829 = vsel %vm570, %v826, 0.0
  %830 = vadd.xlane.f32.xlu0 %v829
  %v831 = vpop.xlane.xlu0 %830
  %v832 = vsel %vm570, %v828, 0.0
  %833 = vadd.xlane.f32.xlu0 %v832
  %v834 = vpop.xlane.xlu0 %833
  %v835 = vrcp.pop %v831
  %v836 = vrcp.pop %v834
  %v837 = vmul.f32 %v826, %v835
  %v838 = vmul.f32 %v828, %v836
  %839 = vrot.lane.b32.xlu0 %v511, 64
  %v840 = vpop.permute.xlu0 %839
  %841 = vrot.lane.b32.xlu0 %v514, 64
  %v842 = vpop.permute.xlu0 %841
  %v846 = vsel %vm570, %v837, 0
  %v849 = vsel %vm570, %v838, 0
  %851 = vmatpush.msra.mxu0 0.0
  %852 = vmatpush.msra.mxu0 0.0
  %853 = vmatpush.msra.mxu0 0.0
  %854 = vmatpush.msra.mxu0 0.0
  %855 = vmatpush.msra.mxu0 0.0
  %856 = vmatpush.msra.mxu0 0.0
  %857 = vmatpush.msra.mxu0 0.0
  %858 = vmatpush.msra.mxu0 0.0
  %859 = vmatpush.msra.mxu0 0.0
  %860 = vmatpush.msra.mxu0 0.0
  %861 = vmatpush.msra.mxu0 0.0
  %862 = vmatpush.msra.mxu0 0.0
  %863 = vmatpush.msra.mxu0 0.0
  %864 = vmatpush.msra.mxu0 0.0
  %865 = vmatpush.msra.mxu0 %v842
  %866 = vmatpush.msra.mxu0 %v840
  %867 = vmatmul.f32.gmra.mxu0 %v846
  %v868 = vpop.f32.mrf.mxu0
  %v869 = vadd.f32 0.0, %v868
  %870 = vmatmul.f32.gmra.mxu0 %v849
  %v871 = vpop.f32.mrf.mxu0
  %v872 = vadd.f32 0.0, %v871
  %873 = vdwg.mxu0
  %v875 = vsel %vm534, %v869, 0
  %v878 = vsel %vm534, %v872, 0
  %880 = vmatpush.msra.mxu0 0.0
  %881 = vmatpush.msra.mxu0 0.0
  %882 = vmatpush.msra.mxu0 0.0
  %883 = vmatpush.msra.mxu0 0.0
  %884 = vmatpush.msra.mxu0 0.0
  %885 = vmatpush.msra.mxu0 0.0
  %886 = vmatpush.msra.mxu0 0.0
  %887 = vmatpush.msra.mxu0 0.0
  %888 = vmatpush.msra.mxu0 0.0
  %889 = vmatpush.msra.mxu0 0.0
  %890 = vmatpush.msra.mxu0 0.0
  %891 = vmatpush.msra.mxu0 0.0
  %892 = vmatpush.msra.mxu0 %v529
  %893 = vmatpush.msra.mxu0 %v528
  %894 = vmatpush.msra.mxu0 %v527
  %895 = vmatpush.msra.mxu0 %v526
  %896 = vmatmul.f32.gmra.mxu0 %v875
  %v897 = vpop.f32.mrf.mxu0
  %v898 = vadd.f32 0.0, %v897
  %899 = vmatmul.f32.gmra.mxu0 %v878
  %v900 = vpop.f32.mrf.mxu0
  %v901 = vadd.f32 0.0, %v900
  %902 = vdwg.mxu0
  %v903 = vadd.f32 %v773, %v898
  %v904 = vadd.f32 %v776, %v901
  %905 = vrot.lane.b32.xlu0 %v516, 32
  %v906 = vpop.permute.xlu0 %905
  %907 = vrot.lane.b32.xlu0 %v517, 32
  %v908 = vpop.permute.xlu0 %907
  %909 = vrot.lane.b32.xlu0 %v488, 32
  %v910 = vpop.permute.xlu0 %909
  %911 = vrot.lane.b32.xlu0 %v491, 32
  %v912 = vpop.permute.xlu0 %911
  %v913 = vsel %vm534, %v906, 0
  %v915 = vsel %vm534, %v908, 0
  %v917 = vsel %vm534, %v910, 0
  %v919 = vsel %vm534, %v912, 0
  %921 = vmatpush.xpose.msra.mxu0 0.0
  %922 = vmatpush.xpose.msra.mxu0 0.0
  %923 = vmatpush.xpose.msra.mxu0 0.0
  %924 = vmatpush.xpose.msra.mxu0 0.0
  %925 = vmatpush.xpose.msra.mxu0 0.0
  %926 = vmatpush.xpose.msra.mxu0 0.0
  %927 = vmatpush.xpose.msra.mxu0 0.0
  %928 = vmatpush.xpose.msra.mxu0 0.0
  %929 = vmatpush.xpose.msra.mxu0 0.0
  %930 = vmatpush.xpose.msra.mxu0 0.0
  %931 = vmatpush.xpose.msra.mxu0 0.0
  %932 = vmatpush.xpose.msra.mxu0 0.0
  %933 = vmatpush.xpose.msra.mxu0 0.0
  %934 = vmatpush.xpose.msra.mxu0 0.0
  %935 = vmatpush.xpose.msra.mxu0 %v919
  %936 = vmatpush.xpose.msra.mxu0 %v917
  %937 = vmatmul.f32.gmra.mxu0 %v913
  %v938 = vpop.f32.mrf.mxu0
  %v939 = vadd.f32 %v389, %v938
  %940 = vmatmul.f32.gmra.mxu0 %v915
  %v941 = vpop.f32.mrf.mxu0
  %v942 = vadd.f32 %v390, %v941
  %943 = vdwg.mxu0
  %v944 = vsel %vm570, %v939, -inf
  %945 = vmax.xlane.f32.xlu0 %v944
  %v946 = vpop.xlane.xlu0 %945
  %v947 = vsel %vm570, %v942, -inf
  %948 = vmax.xlane.f32.xlu0 %v947
  %v949 = vpop.xlane.xlu0 %948
  %v950 = vsub.f32 %v939, %v946
  %v951 = vsub.f32 %v942, %v949
  %v952 = vmul.f32 %v950, 1.442695
  %v953 = vpow.pop %v952
  %v954 = vmul.f32 %v951, 1.442695
  %v955 = vpow.pop %v954
  %v956 = vsel %vm570, %v953, 0.0
  %957 = vadd.xlane.f32.xlu0 %v956
  %v958 = vpop.xlane.xlu0 %957
  %v959 = vsel %vm570, %v955, 0.0
  %960 = vadd.xlane.f32.xlu0 %v959
  %v961 = vpop.xlane.xlu0 %960
  %v962 = vrcp.pop %v958
  %v963 = vrcp.pop %v961
  %v964 = vmul.f32 %v953, %v962
  %v965 = vmul.f32 %v955, %v963
  %966 = vrot.lane.b32.xlu0 %v511, 32
  %v967 = vpop.permute.xlu0 %966
  %968 = vrot.lane.b32.xlu0 %v514, 32
  %v969 = vpop.permute.xlu0 %968
  %v973 = vsel %vm570, %v964, 0
  %v976 = vsel %vm570, %v965, 0
  %978 = vmatpush.msra.mxu0 0.0
  %979 = vmatpush.msra.mxu0 0.0
  %980 = vmatpush.msra.mxu0 0.0
  %981 = vmatpush.msra.mxu0 0.0
  %982 = vmatpush.msra.mxu0 0.0
  %983 = vmatpush.msra.mxu0 0.0
  %984 = vmatpush.msra.mxu0 0.0
  %985 = vmatpush.msra.mxu0 0.0
  %986 = vmatpush.msra.mxu0 0.0
  %987 = vmatpush.msra.mxu0 0.0
  %988 = vmatpush.msra.mxu0 0.0
  %989 = vmatpush.msra.mxu0 0.0
  %990 = vmatpush.msra.mxu0 0.0
  %991 = vmatpush.msra.mxu0 0.0
  %992 = vmatpush.msra.mxu0 %v969
  %993 = vmatpush.msra.mxu0 %v967
  %994 = vmatmul.f32.gmra.mxu0 %v973
  %v995 = vpop.f32.mrf.mxu0
  %v996 = vadd.f32 0.0, %v995
  %997 = vmatmul.f32.gmra.mxu0 %v976
  %v998 = vpop.f32.mrf.mxu0
  %v999 = vadd.f32 0.0, %v998
  %1000 = vdwg.mxu0
  %v1002 = vsel %vm534, %v996, 0
  %v1005 = vsel %vm534, %v999, 0
  %1007 = vmatpush.msra.mxu0 0.0
  %1008 = vmatpush.msra.mxu0 0.0
  %1009 = vmatpush.msra.mxu0 0.0
  %1010 = vmatpush.msra.mxu0 0.0
  %1011 = vmatpush.msra.mxu0 0.0
  %1012 = vmatpush.msra.mxu0 0.0
  %1013 = vmatpush.msra.mxu0 0.0
  %1014 = vmatpush.msra.mxu0 0.0
  %1015 = vmatpush.msra.mxu0 0.0
  %1016 = vmatpush.msra.mxu0 0.0
  %1017 = vmatpush.msra.mxu0 0.0
  %1018 = vmatpush.msra.mxu0 0.0
  %1019 = vmatpush.msra.mxu0 %v533
  %1020 = vmatpush.msra.mxu0 %v532
  %1021 = vmatpush.msra.mxu0 %v531
  %1022 = vmatpush.msra.mxu0 %v530
  %1023 = vmatmul.f32.gmra.mxu0 %v1002
  %v1024 = vpop.f32.mrf.mxu0
  %v1025 = vadd.f32 0.0, %v1024
  %1026 = vmatmul.f32.gmra.mxu0 %v1005
  %v1027 = vpop.f32.mrf.mxu0
  %v1028 = vadd.f32 0.0, %v1027
  %1029 = vdwg.mxu0
  %v1030 = vadd.f32 %v903, %v1025
  %v1031 = vadd.f32 %v904, %v1028
  %v1032 = vld [vmem:[%s8] sm:$0x1]
  %v1034 = vperm.slane %v1032, 0
  %v1036 = vadd.f32 %v1030, %v1034
  %v1037 = vadd.f32 %v1031, %v1034
  %v1038 = vadd.f32 %v1036, %v373
  %v1039 = vadd.f32 %v1037, %v374
  %v1040 = vld [vmem:[%s9] sm:$0x1]
  %v1041 = vld [vmem:[%s10] sm:$0x1]
  %1042 = vadd.xlane.f32.xlu0 %v1038
  %v1043 = vpop.xlane.xlu0 %1042
  %1044 = vadd.xlane.f32.xlu0 %v1039
  %v1045 = vpop.xlane.xlu0 %1044
  %v1046 = vmul.f32 %v1043, %v328
  %v1047 = vmul.f32 %v1045, %v328
  %v1048 = vsub.f32 %v1038, %v1046
  %v1049 = vsub.f32 %v1039, %v1047
  %v1050 = vmul.f32 %v1048, %v1048
  %v1051 = vmul.f32 %v1049, %v1049
  %1052 = vadd.xlane.f32.xlu0 %v1050
  %v1053 = vpop.xlane.xlu0 %1052
  %1054 = vadd.xlane.f32.xlu0 %v1051
  %v1055 = vpop.xlane.xlu0 %1054
  %v1056 = vmul.f32 %v1053, %v328
  %v1057 = vmul.f32 %v1055, %v328
  %v1058 = vadd.f32 %v1056, 1e-05
  %v1059 = vadd.f32 %v1057, 1e-05
  %v1060 = vrsqrt.pop %v1058
  %v1061 = vmul.f32 %v1060, %v1058
  %v1062 = vmul.f32 %v1061, %v1060
  %v1063 = vmul.f32 0.5, %v1062
  %v1064 = vsub.f32 1.5, %v1063
  %v1065 = vmul.f32 %v1060, %v1064
  %vm1066 = vweird.f32 %v1058
  %vm1067 = vweird.f32 %v1060
  %vm1068 = vmor %vm1066, %vm1067
  %v1069 = vsel %vm1068, %v1060, %v1065
  %v1070 = vrsqrt.pop %v1059
  %v1071 = vmul.f32 %v1070, %v1059
  %v1072 = vmul.f32 %v1071, %v1070
  %v1073 = vmul.f32 0.5, %v1072
  %v1074 = vsub.f32 1.5, %v1073
  %v1075 = vmul.f32 %v1070, %v1074
  %vm1076 = vweird.f32 %v1059
  %vm1077 = vweird.f32 %v1070
  %vm1078 = vmor %vm1076, %vm1077
  %v1079 = vsel %vm1078, %v1070, %v1075
  %v1080 = vmul.f32 %v1048, %v1069
  %v1081 = vmul.f32 %v1049, %v1079
  %v1083 = vperm.slane %v1040, 0
  %v1085 = vmul.f32 %v1080, %v1083
  %v1086 = vmul.f32 %v1081, %v1083
  %v1088 = vperm.slane %v1041, 0
  %v1090 = vadd.f32 %v1085, %v1088
  %v1091 = vadd.f32 %v1086, %v1088
  %v1092 = vld [vmem:[%s11] sm:$0xff]
  %v1093 = vld [vmem:[%s11 + $0x8] sm:$0xff]
  %v1094 = vld [vmem:[%s11 + $0x10] sm:$0xff]
  %v1095 = vld [vmem:[%s11 + $0x18] sm:$0xff]
  %v1096 = vld [vmem:[%s11 + $0x20] sm:$0xff]
  %v1097 = vld [vmem:[%s11 + $0x28] sm:$0xff]
  %v1098 = vld [vmem:[%s11 + $0x30] sm:$0xff]
  %v1099 = vld [vmem:[%s11 + $0x38] sm:$0xff]
  %v1100 = vld [vmem:[%s11 + $0x40] sm:$0xff]
  %v1101 = vld [vmem:[%s11 + $0x48] sm:$0xff]
  %v1102 = vld [vmem:[%s11 + $0x50] sm:$0xff]
  %v1103 = vld [vmem:[%s11 + $0x58] sm:$0xff]
  %v1104 = vld [vmem:[%s11 + $0x60] sm:$0xff]
  %v1105 = vld [vmem:[%s11 + $0x68] sm:$0xff]
  %v1106 = vld [vmem:[%s11 + $0x70] sm:$0xff]
  %v1107 = vld [vmem:[%s11 + $0x78] sm:$0xff]
  %v1108 = vld [vmem:[%s11 + $0x80] sm:$0xff]
  %v1109 = vld [vmem:[%s11 + $0x88] sm:$0xff]
  %v1110 = vld [vmem:[%s11 + $0x90] sm:$0xff]
  %v1111 = vld [vmem:[%s11 + $0x98] sm:$0xff]
  %v1112 = vld [vmem:[%s11 + $0xa0] sm:$0xff]
  %v1113 = vld [vmem:[%s11 + $0xa8] sm:$0xff]
  %v1114 = vld [vmem:[%s11 + $0xb0] sm:$0xff]
  %v1115 = vld [vmem:[%s11 + $0xb8] sm:$0xff]
  %v1116 = vld [vmem:[%s11 + $0xc0] sm:$0xff]
  %v1117 = vld [vmem:[%s11 + $0xc8] sm:$0xff]
  %v1118 = vld [vmem:[%s11 + $0xd0] sm:$0xff]
  %v1119 = vld [vmem:[%s11 + $0xd8] sm:$0xff]
  %v1120 = vld [vmem:[%s11 + $0xe0] sm:$0xff]
  %v1121 = vld [vmem:[%s11 + $0xe8] sm:$0xff]
  %v1122 = vld [vmem:[%s11 + $0xf0] sm:$0xff]
  %v1123 = vld [vmem:[%s11 + $0xf8] sm:$0xff]
  %v1124 = vld [vmem:[%s12] sm:$0x3]
  %v1126 = vperm.slane %v1124, 0
  %v1127 = vperm.slane %v1124, 1
  %1130 = vmatpush.msra.mxu0 %v1122
  %1131 = vmatpush.msra.mxu0 %v1120
  %1132 = vmatpush.msra.mxu0 %v1118
  %1133 = vmatpush.msra.mxu0 %v1116
  %1134 = vmatpush.msra.mxu0 %v1114
  %1135 = vmatpush.msra.mxu0 %v1112
  %1136 = vmatpush.msra.mxu0 %v1110
  %1137 = vmatpush.msra.mxu0 %v1108
  %1138 = vmatpush.msra.mxu0 %v1106
  %1139 = vmatpush.msra.mxu0 %v1104
  %1140 = vmatpush.msra.mxu0 %v1102
  %1141 = vmatpush.msra.mxu0 %v1100
  %1142 = vmatpush.msra.mxu0 %v1098
  %1143 = vmatpush.msra.mxu0 %v1096
  %1144 = vmatpush.msra.mxu0 %v1094
  %1145 = vmatpush.msra.mxu0 %v1092
  %1146 = vmatmul.f32.gmra.mxu0 %v1090
  %v1147 = vpop.f32.mrf.mxu0
  %v1148 = vadd.f32 %v1126, %v1147
  %1149 = vmatmul.f32.gmra.mxu0 %v1091
  %v1150 = vpop.f32.mrf.mxu0
  %v1151 = vadd.f32 %v1126, %v1150
  %1152 = vdwg.mxu0
  %1153 = vmatpush.msra.mxu0 %v1123
  %1154 = vmatpush.msra.mxu0 %v1121
  %1155 = vmatpush.msra.mxu0 %v1119
  %1156 = vmatpush.msra.mxu0 %v1117
  %1157 = vmatpush.msra.mxu0 %v1115
  %1158 = vmatpush.msra.mxu0 %v1113
  %1159 = vmatpush.msra.mxu0 %v1111
  %1160 = vmatpush.msra.mxu0 %v1109
  %1161 = vmatpush.msra.mxu0 %v1107
  %1162 = vmatpush.msra.mxu0 %v1105
  %1163 = vmatpush.msra.mxu0 %v1103
  %1164 = vmatpush.msra.mxu0 %v1101
  %1165 = vmatpush.msra.mxu0 %v1099
  %1166 = vmatpush.msra.mxu0 %v1097
  %1167 = vmatpush.msra.mxu0 %v1095
  %1168 = vmatpush.msra.mxu0 %v1093
  %1169 = vmatmul.f32.gmra.mxu0 %v1090
  %v1170 = vpop.f32.mrf.mxu0
  %v1171 = vadd.f32 %v1127, %v1170
  %1172 = vmatmul.f32.gmra.mxu0 %v1091
  %v1173 = vpop.f32.mrf.mxu0
  %v1174 = vadd.f32 %v1127, %v1173
  %1175 = vdwg.mxu0
  %v1176 = vmul.f32 %v1148, %v1148
  %v1177 = vmul.f32 %v1171, %v1171
  %v1178 = vmul.f32 %v1151, %v1151
  %v1179 = vmul.f32 %v1174, %v1174
  %v1180 = vmul.f32 %v1148, %v1176
  %v1181 = vmul.f32 %v1171, %v1177
  %v1182 = vmul.f32 %v1151, %v1178
  %v1183 = vmul.f32 %v1174, %v1179
  %v1184 = vmul.f32 %v1180, 0.044715
  %v1185 = vmul.f32 %v1181, 0.044715
  %v1186 = vmul.f32 %v1182, 0.044715
  %v1187 = vmul.f32 %v1183, 0.044715
  %v1188 = vadd.f32 %v1148, %v1184
  %v1189 = vadd.f32 %v1171, %v1185
  %v1190 = vadd.f32 %v1151, %v1186
  %v1191 = vadd.f32 %v1174, %v1187
  %v1192 = vmul.f32 %v1188, 0.7978846
  %v1193 = vmul.f32 %v1189, 0.7978846
  %v1194 = vmul.f32 %v1190, 0.7978846
  %v1195 = vmul.f32 %v1191, 0.7978846
  %v1196 = vtanh.pop %v1192
  %v1197 = vtanh.pop %v1193
  %v1198 = vtanh.pop %v1194
  %v1199 = vtanh.pop %v1195
  %v1200 = vadd.f32 %v1196, 1.0
  %v1201 = vadd.f32 %v1197, 1.0
  %v1202 = vadd.f32 %v1198, 1.0
  %v1203 = vadd.f32 %v1199, 1.0
  %v1204 = vmul.f32 %v1200, 0.5
  %v1205 = vmul.f32 %v1201, 0.5
  %v1206 = vmul.f32 %v1202, 0.5
  %v1207 = vmul.f32 %v1203, 0.5
  %v1208 = vmul.f32 %v1148, %v1204
  %v1209 = vmul.f32 %v1171, %v1205
  %v1210 = vmul.f32 %v1151, %v1206
  %v1211 = vmul.f32 %v1174, %v1207
  %v1212 = vld [vmem:[%s13] sm:$0xff]
  %v1213 = vld [vmem:[%s13 + $0x8] sm:$0xff]
  %v1214 = vld [vmem:[%s13 + $0x10] sm:$0xff]
  %v1215 = vld [vmem:[%s13 + $0x18] sm:$0xff]
  %v1216 = vld [vmem:[%s13 + $0x20] sm:$0xff]
  %v1217 = vld [vmem:[%s13 + $0x28] sm:$0xff]
  %v1218 = vld [vmem:[%s13 + $0x30] sm:$0xff]
  %v1219 = vld [vmem:[%s13 + $0x38] sm:$0xff]
  %v1220 = vld [vmem:[%s13 + $0x40] sm:$0xff]
  %v1221 = vld [vmem:[%s13 + $0x48] sm:$0xff]
  %v1222 = vld [vmem:[%s13 + $0x50] sm:$0xff]
  %v1223 = vld [vmem:[%s13 + $0x58] sm:$0xff]
  %v1224 = vld [vmem:[%s13 + $0x60] sm:$0xff]
  %v1225 = vld [vmem:[%s13 + $0x68] sm:$0xff]
  %v1226 = vld [vmem:[%s13 + $0x70] sm:$0xff]
  %v1227 = vld [vmem:[%s13 + $0x78] sm:$0xff]
  %v1228 = vld [vmem:[%s13 + $0x80] sm:$0xff]
  %v1229 = vld [vmem:[%s13 + $0x88] sm:$0xff]
  %v1230 = vld [vmem:[%s13 + $0x90] sm:$0xff]
  %v1231 = vld [vmem:[%s13 + $0x98] sm:$0xff]
  %v1232 = vld [vmem:[%s13 + $0xa0] sm:$0xff]
  %v1233 = vld [vmem:[%s13 + $0xa8] sm:$0xff]
  %v1234 = vld [vmem:[%s13 + $0xb0] sm:$0xff]
  %v1235 = vld [vmem:[%s13 + $0xb8] sm:$0xff]
  %v1236 = vld [vmem:[%s13 + $0xc0] sm:$0xff]
  %v1237 = vld [vmem:[%s13 + $0xc8] sm:$0xff]
  %v1238 = vld [vmem:[%s13 + $0xd0] sm:$0xff]
  %v1239 = vld [vmem:[%s13 + $0xd8] sm:$0xff]
  %v1240 = vld [vmem:[%s13 + $0xe0] sm:$0xff]
  %v1241 = vld [vmem:[%s13 + $0xe8] sm:$0xff]
  %v1242 = vld [vmem:[%s13 + $0xf0] sm:$0xff]
  %v1243 = vld [vmem:[%s13 + $0xf8] sm:$0xff]
  %v1244 = vld [vmem:[%s14] sm:$0x1]
  %v1246 = vperm.slane %v1244, 0
  %1248 = vmatpush.msra.mxu0 %v1227
  %1249 = vmatpush.msra.mxu0 %v1226
  %1250 = vmatpush.msra.mxu0 %v1225
  %1251 = vmatpush.msra.mxu0 %v1224
  %1252 = vmatpush.msra.mxu0 %v1223
  %1253 = vmatpush.msra.mxu0 %v1222
  %1254 = vmatpush.msra.mxu0 %v1221
  %1255 = vmatpush.msra.mxu0 %v1220
  %1256 = vmatpush.msra.mxu0 %v1219
  %1257 = vmatpush.msra.mxu0 %v1218
  %1258 = vmatpush.msra.mxu0 %v1217
  %1259 = vmatpush.msra.mxu0 %v1216
  %1260 = vmatpush.msra.mxu0 %v1215
  %1261 = vmatpush.msra.mxu0 %v1214
  %1262 = vmatpush.msra.mxu0 %v1213
  %1263 = vmatpush.msra.mxu0 %v1212
  %1264 = vmatmul.f32.gmra.mxu0 %v1208
  %v1265 = vpop.f32.mrf.mxu0
  %v1266 = vadd.f32 %v1246, %v1265
  %1267 = vmatmul.f32.gmra.mxu0 %v1210
  %v1268 = vpop.f32.mrf.mxu0
  %v1269 = vadd.f32 %v1246, %v1268
  %1270 = vdwg.mxu0
  %1271 = vmatpush.msra.mxu0 %v1243
  %1272 = vmatpush.msra.mxu0 %v1242
  %1273 = vmatpush.msra.mxu0 %v1241
  %1274 = vmatpush.msra.mxu0 %v1240
  %1275 = vmatpush.msra.mxu0 %v1239
  %1276 = vmatpush.msra.mxu0 %v1238
  %1277 = vmatpush.msra.mxu0 %v1237
  %1278 = vmatpush.msra.mxu0 %v1236
  %1279 = vmatpush.msra.mxu0 %v1235
  %1280 = vmatpush.msra.mxu0 %v1234
  %1281 = vmatpush.msra.mxu0 %v1233
  %1282 = vmatpush.msra.mxu0 %v1232
  %1283 = vmatpush.msra.mxu0 %v1231
  %1284 = vmatpush.msra.mxu0 %v1230
  %1285 = vmatpush.msra.mxu0 %v1229
  %1286 = vmatpush.msra.mxu0 %v1228
  %1287 = vmatmul.f32.gmra.mxu0 %v1209
  %v1288 = vpop.f32.mrf.mxu0
  %v1289 = vadd.f32 %v1266, %v1288
  %1290 = vmatmul.f32.gmra.mxu0 %v1211
  %v1291 = vpop.f32.mrf.mxu0
  %v1292 = vadd.f32 %v1269, %v1291
  %1293 = vdwg.mxu0
  %v1294 = vadd.f32 %v1289, %v1090
  %v1295 = vadd.f32 %v1292, %v1091
  %v1296 = vld [vmem:[%s15] sm:$0x1]
  %v1297 = vld [vmem:[%s16] sm:$0x1]
  %1298 = vadd.xlane.f32.xlu0 %v1294
  %v1299 = vpop.xlane.xlu0 %1298
  %1300 = vadd.xlane.f32.xlu0 %v1295
  %v1301 = vpop.xlane.xlu0 %1300
  %v1302 = vmul.f32 %v1299, %v328
  %v1303 = vmul.f32 %v1301, %v328
  %v1304 = vsub.f32 %v1294, %v1302
  %v1305 = vsub.f32 %v1295, %v1303
  %v1306 = vmul.f32 %v1304, %v1304
  %v1307 = vmul.f32 %v1305, %v1305
  %1308 = vadd.xlane.f32.xlu0 %v1306
  %v1309 = vpop.xlane.xlu0 %1308
  %1310 = vadd.xlane.f32.xlu0 %v1307
  %v1311 = vpop.xlane.xlu0 %1310
  %v1312 = vmul.f32 %v1309, %v328
  %v1313 = vmul.f32 %v1311, %v328
  %v1314 = vadd.f32 %v1312, 1e-05
  %v1315 = vadd.f32 %v1313, 1e-05
  %v1316 = vrsqrt.pop %v1314
  %v1317 = vmul.f32 %v1316, %v1314
  %v1318 = vmul.f32 %v1317, %v1316
  %v1319 = vmul.f32 0.5, %v1318
  %v1320 = vsub.f32 1.5, %v1319
  %v1321 = vmul.f32 %v1316, %v1320
  %vm1322 = vweird.f32 %v1314
  %vm1323 = vweird.f32 %v1316
  %vm1324 = vmor %vm1322, %vm1323
  %v1325 = vsel %vm1324, %v1316, %v1321
  %v1326 = vrsqrt.pop %v1315
  %v1327 = vmul.f32 %v1326, %v1315
  %v1328 = vmul.f32 %v1327, %v1326
  %v1329 = vmul.f32 0.5, %v1328
  %v1330 = vsub.f32 1.5, %v1329
  %v1331 = vmul.f32 %v1326, %v1330
  %vm1332 = vweird.f32 %v1315
  %vm1333 = vweird.f32 %v1326
  %vm1334 = vmor %vm1332, %vm1333
  %v1335 = vsel %vm1334, %v1326, %v1331
  %v1336 = vmul.f32 %v1304, %v1325
  %v1337 = vmul.f32 %v1305, %v1335
  %v1339 = vperm.slane %v1296, 0
  %v1341 = vmul.f32 %v1336, %v1339
  %v1342 = vmul.f32 %v1337, %v1339
  %v1344 = vperm.slane %v1297, 0
  %v1346 = vadd.f32 %v1341, %v1344
  %v1347 = vadd.f32 %v1342, %v1344
  %s1348 = scalar_lea.vmem %s5, 384
  %v1349 = vld [vmem:[%s1348] sm:$0xff]
  %v1350 = vld [vmem:[%s1348 + $0x8] sm:$0xff]
  %v1351 = vld [vmem:[%s1348 + $0x10] sm:$0xff]
  %v1352 = vld [vmem:[%s1348 + $0x18] sm:$0xff]
  %v1353 = vld [vmem:[%s1348 + $0x20] sm:$0xff]
  %v1354 = vld [vmem:[%s1348 + $0x28] sm:$0xff]
  %v1355 = vld [vmem:[%s1348 + $0x30] sm:$0xff]
  %v1356 = vld [vmem:[%s1348 + $0x38] sm:$0xff]
  %v1357 = vld [vmem:[%s1348 + $0x40] sm:$0xff]
  %v1358 = vld [vmem:[%s1348 + $0x48] sm:$0xff]
  %v1359 = vld [vmem:[%s1348 + $0x50] sm:$0xff]
  %v1360 = vld [vmem:[%s1348 + $0x58] sm:$0xff]
  %v1361 = vld [vmem:[%s1348 + $0x60] sm:$0xff]
  %v1362 = vld [vmem:[%s1348 + $0x68] sm:$0xff]
  %v1363 = vld [vmem:[%s1348 + $0x70] sm:$0xff]
  %v1364 = vld [vmem:[%s1348 + $0x78] sm:$0xff]
  %v1365 = vld [vmem:[%s1348 + $0x80] sm:$0xff]
  %v1366 = vld [vmem:[%s1348 + $0x88] sm:$0xff]
  %v1367 = vld [vmem:[%s1348 + $0x90] sm:$0xff]
  %v1368 = vld [vmem:[%s1348 + $0x98] sm:$0xff]
  %v1369 = vld [vmem:[%s1348 + $0xa0] sm:$0xff]
  %v1370 = vld [vmem:[%s1348 + $0xa8] sm:$0xff]
  %v1371 = vld [vmem:[%s1348 + $0xb0] sm:$0xff]
  %v1372 = vld [vmem:[%s1348 + $0xb8] sm:$0xff]
  %v1373 = vld [vmem:[%s1348 + $0xc0] sm:$0xff]
  %v1374 = vld [vmem:[%s1348 + $0xc8] sm:$0xff]
  %v1375 = vld [vmem:[%s1348 + $0xd0] sm:$0xff]
  %v1376 = vld [vmem:[%s1348 + $0xd8] sm:$0xff]
  %v1377 = vld [vmem:[%s1348 + $0xe0] sm:$0xff]
  %v1378 = vld [vmem:[%s1348 + $0xe8] sm:$0xff]
  %v1379 = vld [vmem:[%s1348 + $0xf0] sm:$0xff]
  %v1380 = vld [vmem:[%s1348 + $0xf8] sm:$0xff]
  %v1381 = vld [vmem:[%s1348 + $0x100] sm:$0xff]
  %v1382 = vld [vmem:[%s1348 + $0x108] sm:$0xff]
  %v1383 = vld [vmem:[%s1348 + $0x110] sm:$0xff]
  %v1384 = vld [vmem:[%s1348 + $0x118] sm:$0xff]
  %v1385 = vld [vmem:[%s1348 + $0x120] sm:$0xff]
  %v1386 = vld [vmem:[%s1348 + $0x128] sm:$0xff]
  %v1387 = vld [vmem:[%s1348 + $0x130] sm:$0xff]
  %v1388 = vld [vmem:[%s1348 + $0x138] sm:$0xff]
  %v1389 = vld [vmem:[%s1348 + $0x140] sm:$0xff]
  %v1390 = vld [vmem:[%s1348 + $0x148] sm:$0xff]
  %v1391 = vld [vmem:[%s1348 + $0x150] sm:$0xff]
  %v1392 = vld [vmem:[%s1348 + $0x158] sm:$0xff]
  %v1393 = vld [vmem:[%s1348 + $0x160] sm:$0xff]
  %v1394 = vld [vmem:[%s1348 + $0x168] sm:$0xff]
  %v1395 = vld [vmem:[%s1348 + $0x170] sm:$0xff]
  %v1396 = vld [vmem:[%s1348 + $0x178] sm:$0xff]
  %s1397 = scalar_lea.vmem %s6, 3
  %v1398 = vld [vmem:[%s1397] sm:$0x7]
  %v1400 = vperm.slane %v1398, 0
  %v1401 = vperm.slane %v1398, 1
  %v1402 = vperm.slane %v1398, 2
  %1406 = vmatpush.msra.mxu0 %v1394
  %1407 = vmatpush.msra.mxu0 %v1391
  %1408 = vmatpush.msra.mxu0 %v1388
  %1409 = vmatpush.msra.mxu0 %v1385
  %1410 = vmatpush.msra.mxu0 %v1382
  %1411 = vmatpush.msra.mxu0 %v1379
  %1412 = vmatpush.msra.mxu0 %v1376
  %1413 = vmatpush.msra.mxu0 %v1373
  %1414 = vmatpush.msra.mxu0 %v1370
  %1415 = vmatpush.msra.mxu0 %v1367
  %1416 = vmatpush.msra.mxu0 %v1364
  %1417 = vmatpush.msra.mxu0 %v1361
  %1418 = vmatpush.msra.mxu0 %v1358
  %1419 = vmatpush.msra.mxu0 %v1355
  %1420 = vmatpush.msra.mxu0 %v1352
  %1421 = vmatpush.msra.mxu0 %v1349
  %1422 = vmatmul.f32.gmra.mxu0 %v1346
  %v1423 = vpop.f32.mrf.mxu0
  %v1424 = vadd.f32 %v1400, %v1423
  %1425 = vmatmul.f32.gmra.mxu0 %v1347
  %v1426 = vpop.f32.mrf.mxu0
  %v1427 = vadd.f32 %v1400, %v1426
  %1428 = vdwg.mxu0
  %1429 = vmatpush.msra.mxu0 %v1395
  %1430 = vmatpush.msra.mxu0 %v1392
  %1431 = vmatpush.msra.mxu0 %v1389
  %1432 = vmatpush.msra.mxu0 %v1386
  %1433 = vmatpush.msra.mxu0 %v1383
  %1434 = vmatpush.msra.mxu0 %v1380
  %1435 = vmatpush.msra.mxu0 %v1377
  %1436 = vmatpush.msra.mxu0 %v1374
  %1437 = vmatpush.msra.mxu0 %v1371
  %1438 = vmatpush.msra.mxu0 %v1368
  %1439 = vmatpush.msra.mxu0 %v1365
  %1440 = vmatpush.msra.mxu0 %v1362
  %1441 = vmatpush.msra.mxu0 %v1359
  %1442 = vmatpush.msra.mxu0 %v1356
  %1443 = vmatpush.msra.mxu0 %v1353
  %1444 = vmatpush.msra.mxu0 %v1350
  %1445 = vmatmul.f32.gmra.mxu0 %v1346
  %v1446 = vpop.f32.mrf.mxu0
  %v1447 = vadd.f32 %v1401, %v1446
  %1448 = vmatmul.f32.gmra.mxu0 %v1347
  %v1449 = vpop.f32.mrf.mxu0
  %v1450 = vadd.f32 %v1401, %v1449
  %1451 = vdwg.mxu0
  %1452 = vmatpush.msra.mxu0 %v1396
  %1453 = vmatpush.msra.mxu0 %v1393
  %1454 = vmatpush.msra.mxu0 %v1390
  %1455 = vmatpush.msra.mxu0 %v1387
  %1456 = vmatpush.msra.mxu0 %v1384
  %1457 = vmatpush.msra.mxu0 %v1381
  %1458 = vmatpush.msra.mxu0 %v1378
  %1459 = vmatpush.msra.mxu0 %v1375
  %1460 = vmatpush.msra.mxu0 %v1372
  %1461 = vmatpush.msra.mxu0 %v1369
  %1462 = vmatpush.msra.mxu0 %v1366
  %1463 = vmatpush.msra.mxu0 %v1363
  %1464 = vmatpush.msra.mxu0 %v1360
  %1465 = vmatpush.msra.mxu0 %v1357
  %1466 = vmatpush.msra.mxu0 %v1354
  %1467 = vmatpush.msra.mxu0 %v1351
  %1468 = vmatmul.f32.gmra.mxu0 %v1346
  %v1469 = vpop.f32.mrf.mxu0
  %v1470 = vadd.f32 %v1402, %v1469
  %1471 = vmatmul.f32.gmra.mxu0 %v1347
  %v1472 = vpop.f32.mrf.mxu0
  %v1473 = vadd.f32 %v1402, %v1472
  %1474 = vdwg.mxu0
  %v1475 = vmul.f32 %v1424, 0.17677669
  %v1476 = vmul.f32 %v1427, 0.17677669
  %s1477 = scalar_lea.vmem %s7, 128
  %v1478 = vld [vmem:[%s1477] sm:$0xff]
  %v1479 = vld [vmem:[%s1477 + $0x8] sm:$0xff]
  %v1480 = vld [vmem:[%s1477 + $0x10] sm:$0xff]
  %v1481 = vld [vmem:[%s1477 + $0x18] sm:$0xff]
  %v1482 = vld [vmem:[%s1477 + $0x20] sm:$0xff]
  %v1483 = vld [vmem:[%s1477 + $0x28] sm:$0xff]
  %v1484 = vld [vmem:[%s1477 + $0x30] sm:$0xff]
  %v1485 = vld [vmem:[%s1477 + $0x38] sm:$0xff]
  %v1486 = vld [vmem:[%s1477 + $0x40] sm:$0xff]
  %v1487 = vld [vmem:[%s1477 + $0x48] sm:$0xff]
  %v1488 = vld [vmem:[%s1477 + $0x50] sm:$0xff]
  %v1489 = vld [vmem:[%s1477 + $0x58] sm:$0xff]
  %v1490 = vld [vmem:[%s1477 + $0x60] sm:$0xff]
  %v1491 = vld [vmem:[%s1477 + $0x68] sm:$0xff]
  %v1492 = vld [vmem:[%s1477 + $0x70] sm:$0xff]
  %v1493 = vld [vmem:[%s1477 + $0x78] sm:$0xff]
  %v1495 = vsel %vm534, %v1475, 0
  %v1498 = vsel %vm534, %v1476, 0
  %v1501 = vsel %vm534, %v1447, 0
  %v1504 = vsel %vm534, %v1450, 0
  %1506 = vmatpush.xpose.msra.mxu0 0.0
  %1507 = vmatpush.xpose.msra.mxu0 0.0
  %1508 = vmatpush.xpose.msra.mxu0 0.0
  %1509 = vmatpush.xpose.msra.mxu0 0.0
  %1510 = vmatpush.xpose.msra.mxu0 0.0
  %1511 = vmatpush.xpose.msra.mxu0 0.0
  %1512 = vmatpush.xpose.msra.mxu0 0.0
  %1513 = vmatpush.xpose.msra.mxu0 0.0
  %1514 = vmatpush.xpose.msra.mxu0 0.0
  %1515 = vmatpush.xpose.msra.mxu0 0.0
  %1516 = vmatpush.xpose.msra.mxu0 0.0
  %1517 = vmatpush.xpose.msra.mxu0 0.0
  %1518 = vmatpush.xpose.msra.mxu0 0.0
  %1519 = vmatpush.xpose.msra.mxu0 0.0
  %1520 = vmatpush.xpose.msra.mxu0 %v1504
  %1521 = vmatpush.xpose.msra.mxu0 %v1501
  %1522 = vmatmul.f32.gmra.mxu0 %v1495
  %v1523 = vpop.f32.mrf.mxu0
  %v1524 = vadd.f32 %v389, %v1523
  %1525 = vmatmul.f32.gmra.mxu0 %v1498
  %v1526 = vpop.f32.mrf.mxu0
  %v1527 = vadd.f32 %v390, %v1526
  %1528 = vdwg.mxu0
  %v1529 = vsel %vm570, %v1524, -inf
  %1530 = vmax.xlane.f32.xlu0 %v1529
  %v1531 = vpop.xlane.xlu0 %1530
  %v1532 = vsel %vm570, %v1527, -inf
  %1533 = vmax.xlane.f32.xlu0 %v1532
  %v1534 = vpop.xlane.xlu0 %1533
  %v1535 = vsub.f32 %v1524, %v1531
  %v1536 = vsub.f32 %v1527, %v1534
  %v1537 = vmul.f32 %v1535, 1.442695
  %v1538 = vpow.pop %v1537
  %v1539 = vmul.f32 %v1536, 1.442695
  %v1540 = vpow.pop %v1539
  %v1541 = vsel %vm570, %v1538, 0.0
  %1542 = vadd.xlane.f32.xlu0 %v1541
  %v1543 = vpop.xlane.xlu0 %1542
  %v1544 = vsel %vm570, %v1540, 0.0
  %1545 = vadd.xlane.f32.xlu0 %v1544
  %v1546 = vpop.xlane.xlu0 %1545
  %v1547 = vrcp.pop %v1543
  %v1548 = vrcp.pop %v1546
  %v1549 = vmul.f32 %v1538, %v1547
  %v1550 = vmul.f32 %v1540, %v1548
  %v1552 = vsel %vm570, %v1549, 0
  %v1555 = vsel %vm570, %v1550, 0
  %1557 = vmatpush.msra.mxu0 0.0
  %1558 = vmatpush.msra.mxu0 0.0
  %1559 = vmatpush.msra.mxu0 0.0
  %1560 = vmatpush.msra.mxu0 0.0
  %1561 = vmatpush.msra.mxu0 0.0
  %1562 = vmatpush.msra.mxu0 0.0
  %1563 = vmatpush.msra.mxu0 0.0
  %1564 = vmatpush.msra.mxu0 0.0
  %1565 = vmatpush.msra.mxu0 0.0
  %1566 = vmatpush.msra.mxu0 0.0
  %1567 = vmatpush.msra.mxu0 0.0
  %1568 = vmatpush.msra.mxu0 0.0
  %1569 = vmatpush.msra.mxu0 0.0
  %1570 = vmatpush.msra.mxu0 0.0
  %1571 = vmatpush.msra.mxu0 %v1473
  %1572 = vmatpush.msra.mxu0 %v1470
  %1573 = vmatmul.f32.gmra.mxu0 %v1552
  %v1574 = vpop.f32.mrf.mxu0
  %v1575 = vadd.f32 0.0, %v1574
  %1576 = vmatmul.f32.gmra.mxu0 %v1555
  %v1577 = vpop.f32.mrf.mxu0
  %v1578 = vadd.f32 0.0, %v1577
  %1579 = vdwg.mxu0
  %1580 = vrot.lane.b32.xlu0 %v1475, 96
  %v1581 = vpop.permute.xlu0 %1580
  %1582 = vrot.lane.b32.xlu0 %v1476, 96
  %v1583 = vpop.permute.xlu0 %1582
  %1584 = vrot.lane.b32.xlu0 %v1447, 96
  %v1585 = vpop.permute.xlu0 %1584
  %1586 = vrot.lane.b32.xlu0 %v1450, 96
  %v1587 = vpop.permute.xlu0 %1586
  %v1588 = vsel %vm534, %v1581, 0
  %v1590 = vsel %vm534, %v1583, 0
  %v1592 = vsel %vm534, %v1585, 0
  %v1594 = vsel %vm534, %v1587, 0
  %1596 = vmatpush.xpose.msra.mxu0 0.0
  %1597 = vmatpush.xpose.msra.mxu0 0.0
  %1598 = vmatpush.xpose.msra.mxu0 0.0
  %1599 = vmatpush.xpose.msra.mxu0 0.0
  %1600 = vmatpush.xpose.msra.mxu0 0.0
  %1601 = vmatpush.xpose.msra.mxu0 0.0
  %1602 = vmatpush.xpose.msra.mxu0 0.0
  %1603 = vmatpush.xpose.msra.mxu0 0.0
  %1604 = vmatpush.xpose.msra.mxu0 0.0
  %1605 = vmatpush.xpose.msra.mxu0 0.0
  %1606 = vmatpush.xpose.msra.mxu0 0.0
  %1607 = vmatpush.xpose.msra.mxu0 0.0
  %1608 = vmatpush.xpose.msra.mxu0 0.0
  %1609 = vmatpush.xpose.msra.mxu0 0.0
  %1610 = vmatpush.xpose.msra.mxu0 %v1594
  %1611 = vmatpush.xpose.msra.mxu0 %v1592
  %1612 = vmatmul.f32.gmra.mxu0 %v1588
  %v1613 = vpop.f32.mrf.mxu0
  %v1614 = vadd.f32 %v389, %v1613
  %1615 = vmatmul.f32.gmra.mxu0 %v1590
  %v1616 = vpop.f32.mrf.mxu0
  %v1617 = vadd.f32 %v390, %v1616
  %1618 = vdwg.mxu0
  %v1619 = vsel %vm570, %v1614, -inf
  %1620 = vmax.xlane.f32.xlu0 %v1619
  %v1621 = vpop.xlane.xlu0 %1620
  %v1622 = vsel %vm570, %v1617, -inf
  %1623 = vmax.xlane.f32.xlu0 %v1622
  %v1624 = vpop.xlane.xlu0 %1623
  %v1625 = vsub.f32 %v1614, %v1621
  %v1626 = vsub.f32 %v1617, %v1624
  %v1627 = vmul.f32 %v1625, 1.442695
  %v1628 = vpow.pop %v1627
  %v1629 = vmul.f32 %v1626, 1.442695
  %v1630 = vpow.pop %v1629
  %v1631 = vsel %vm570, %v1628, 0.0
  %1632 = vadd.xlane.f32.xlu0 %v1631
  %v1633 = vpop.xlane.xlu0 %1632
  %v1634 = vsel %vm570, %v1630, 0.0
  %1635 = vadd.xlane.f32.xlu0 %v1634
  %v1636 = vpop.xlane.xlu0 %1635
  %v1637 = vrcp.pop %v1633
  %v1638 = vrcp.pop %v1636
  %v1639 = vmul.f32 %v1628, %v1637
  %v1640 = vmul.f32 %v1630, %v1638
  %1643 = vrot.lane.b32.xlu0 %v1470, 96
  %v1644 = vpop.permute.xlu0 %1643
  %1645 = vrot.lane.b32.xlu0 %v1473, 96
  %v1646 = vpop.permute.xlu0 %1645
  %v1650 = vsel %vm570, %v1639, 0
  %v1653 = vsel %vm570, %v1640, 0
  %1655 = vmatpush.msra.mxu0 0.0
  %1656 = vmatpush.msra.mxu0 0.0
  %1657 = vmatpush.msra.mxu0 0.0
  %1658 = vmatpush.msra.mxu0 0.0
  %1659 = vmatpush.msra.mxu0 0.0
  %1660 = vmatpush.msra.mxu0 0.0
  %1661 = vmatpush.msra.mxu0 0.0
  %1662 = vmatpush.msra.mxu0 0.0
  %1663 = vmatpush.msra.mxu0 0.0
  %1664 = vmatpush.msra.mxu0 0.0
  %1665 = vmatpush.msra.mxu0 0.0
  %1666 = vmatpush.msra.mxu0 0.0
  %1667 = vmatpush.msra.mxu0 0.0
  %1668 = vmatpush.msra.mxu0 0.0
  %1669 = vmatpush.msra.mxu0 %v1646
  %1670 = vmatpush.msra.mxu0 %v1644
  %1671 = vmatmul.f32.gmra.mxu0 %v1650
  %v1672 = vpop.f32.mrf.mxu0
  %v1673 = vadd.f32 0.0, %v1672
  %1674 = vmatmul.f32.gmra.mxu0 %v1653
  %v1675 = vpop.f32.mrf.mxu0
  %v1676 = vadd.f32 0.0, %v1675
  %1677 = vdwg.mxu0
  %v1679 = vsel %vm534, %v1673, 0
  %v1682 = vsel %vm534, %v1676, 0
  %1684 = vmatpush.msra.mxu0 0.0
  %1685 = vmatpush.msra.mxu0 0.0
  %1686 = vmatpush.msra.mxu0 0.0
  %1687 = vmatpush.msra.mxu0 0.0
  %1688 = vmatpush.msra.mxu0 0.0
  %1689 = vmatpush.msra.mxu0 0.0
  %1690 = vmatpush.msra.mxu0 0.0
  %1691 = vmatpush.msra.mxu0 0.0
  %1692 = vmatpush.msra.mxu0 0.0
  %1693 = vmatpush.msra.mxu0 0.0
  %1694 = vmatpush.msra.mxu0 0.0
  %1695 = vmatpush.msra.mxu0 0.0
  %1696 = vmatpush.msra.mxu0 %v1485
  %1697 = vmatpush.msra.mxu0 %v1484
  %1698 = vmatpush.msra.mxu0 %v1483
  %1699 = vmatpush.msra.mxu0 %v1482
  %1700 = vmatmul.f32.gmra.mxu0 %v1679
  %v1701 = vpop.f32.mrf.mxu0
  %v1702 = vadd.f32 0.0, %v1701
  %1703 = vmatmul.f32.gmra.mxu0 %v1682
  %v1704 = vpop.f32.mrf.mxu0
  %v1705 = vadd.f32 0.0, %v1704
  %1706 = vdwg.mxu0
  %v1708 = vsel %vm534, %v1575, 0
  %v1711 = vsel %vm534, %v1578, 0
  %1713 = vmatpush.msra.mxu0 0.0
  %1714 = vmatpush.msra.mxu0 0.0
  %1715 = vmatpush.msra.mxu0 0.0
  %1716 = vmatpush.msra.mxu0 0.0
  %1717 = vmatpush.msra.mxu0 0.0
  %1718 = vmatpush.msra.mxu0 0.0
  %1719 = vmatpush.msra.mxu0 0.0
  %1720 = vmatpush.msra.mxu0 0.0
  %1721 = vmatpush.msra.mxu0 0.0
  %1722 = vmatpush.msra.mxu0 0.0
  %1723 = vmatpush.msra.mxu0 0.0
  %1724 = vmatpush.msra.mxu0 0.0
  %1725 = vmatpush.msra.mxu0 %v1481
  %1726 = vmatpush.msra.mxu0 %v1480
  %1727 = vmatpush.msra.mxu0 %v1479
  %1728 = vmatpush.msra.mxu0 %v1478
  %1729 = vmatmul.f32.gmra.mxu0 %v1708
  %v1730 = vpop.f32.mrf.mxu0
  %v1731 = vadd.f32 %v1702, %v1730
  %1732 = vmatmul.f32.gmra.mxu0 %v1711
  %v1733 = vpop.f32.mrf.mxu0
  %v1734 = vadd.f32 %v1705, %v1733
  %1735 = vdwg.mxu0
  %1736 = vrot.lane.b32.xlu0 %v1475, 64
  %v1737 = vpop.permute.xlu0 %1736
  %1738 = vrot.lane.b32.xlu0 %v1476, 64
  %v1739 = vpop.permute.xlu0 %1738
  %1740 = vrot.lane.b32.xlu0 %v1447, 64
  %v1741 = vpop.permute.xlu0 %1740
  %1742 = vrot.lane.b32.xlu0 %v1450, 64
  %v1743 = vpop.permute.xlu0 %1742
  %v1744 = vsel %vm534, %v1737, 0
  %v1746 = vsel %vm534, %v1739, 0
  %v1748 = vsel %vm534, %v1741, 0
  %v1750 = vsel %vm534, %v1743, 0
  %1752 = vmatpush.xpose.msra.mxu0 0.0
  %1753 = vmatpush.xpose.msra.mxu0 0.0
  %1754 = vmatpush.xpose.msra.mxu0 0.0
  %1755 = vmatpush.xpose.msra.mxu0 0.0
  %1756 = vmatpush.xpose.msra.mxu0 0.0
  %1757 = vmatpush.xpose.msra.mxu0 0.0
  %1758 = vmatpush.xpose.msra.mxu0 0.0
  %1759 = vmatpush.xpose.msra.mxu0 0.0
  %1760 = vmatpush.xpose.msra.mxu0 0.0
  %1761 = vmatpush.xpose.msra.mxu0 0.0
  %1762 = vmatpush.xpose.msra.mxu0 0.0
  %1763 = vmatpush.xpose.msra.mxu0 0.0
  %1764 = vmatpush.xpose.msra.mxu0 0.0
  %1765 = vmatpush.xpose.msra.mxu0 0.0
  %1766 = vmatpush.xpose.msra.mxu0 %v1750
  %1767 = vmatpush.xpose.msra.mxu0 %v1748
  %1768 = vmatmul.f32.gmra.mxu0 %v1744
  %v1769 = vpop.f32.mrf.mxu0
  %v1770 = vadd.f32 %v389, %v1769
  %1771 = vmatmul.f32.gmra.mxu0 %v1746
  %v1772 = vpop.f32.mrf.mxu0
  %v1773 = vadd.f32 %v390, %v1772
  %1774 = vdwg.mxu0
  %v1775 = vsel %vm570, %v1770, -inf
  %1776 = vmax.xlane.f32.xlu0 %v1775
  %v1777 = vpop.xlane.xlu0 %1776
  %v1778 = vsel %vm570, %v1773, -inf
  %1779 = vmax.xlane.f32.xlu0 %v1778
  %v1780 = vpop.xlane.xlu0 %1779
  %v1781 = vsub.f32 %v1770, %v1777
  %v1782 = vsub.f32 %v1773, %v1780
  %v1783 = vmul.f32 %v1781, 1.442695
  %v1784 = vpow.pop %v1783
  %v1785 = vmul.f32 %v1782, 1.442695
  %v1786 = vpow.pop %v1785
  %v1787 = vsel %vm570, %v1784, 0.0
  %1788 = vadd.xlane.f32.xlu0 %v1787
  %v1789 = vpop.xlane.xlu0 %1788
  %v1790 = vsel %vm570, %v1786, 0.0
  %1791 = vadd.xlane.f32.xlu0 %v1790
  %v1792 = vpop.xlane.xlu0 %1791
  %v1793 = vrcp.pop %v1789
  %v1794 = vrcp.pop %v1792
  %v1795 = vmul.f32 %v1784, %v1793
  %v1796 = vmul.f32 %v1786, %v1794
  %1797 = vrot.lane.b32.xlu0 %v1470, 64
  %v1798 = vpop.permute.xlu0 %1797
  %1799 = vrot.lane.b32.xlu0 %v1473, 64
  %v1800 = vpop.permute.xlu0 %1799
  %v1804 = vsel %vm570, %v1795, 0
  %v1807 = vsel %vm570, %v1796, 0
  %1809 = vmatpush.msra.mxu0 0.0
  %1810 = vmatpush.msra.mxu0 0.0
  %1811 = vmatpush.msra.mxu0 0.0
  %1812 = vmatpush.msra.mxu0 0.0
  %1813 = vmatpush.msra.mxu0 0.0
  %1814 = vmatpush.msra.mxu0 0.0
  %1815 = vmatpush.msra.mxu0 0.0
  %1816 = vmatpush.msra.mxu0 0.0
  %1817 = vmatpush.msra.mxu0 0.0
  %1818 = vmatpush.msra.mxu0 0.0
  %1819 = vmatpush.msra.mxu0 0.0
  %1820 = vmatpush.msra.mxu0 0.0
  %1821 = vmatpush.msra.mxu0 0.0
  %1822 = vmatpush.msra.mxu0 0.0
  %1823 = vmatpush.msra.mxu0 %v1800
  %1824 = vmatpush.msra.mxu0 %v1798
  %1825 = vmatmul.f32.gmra.mxu0 %v1804
  %v1826 = vpop.f32.mrf.mxu0
  %v1827 = vadd.f32 0.0, %v1826
  %1828 = vmatmul.f32.gmra.mxu0 %v1807
  %v1829 = vpop.f32.mrf.mxu0
  %v1830 = vadd.f32 0.0, %v1829
  %1831 = vdwg.mxu0
  %v1833 = vsel %vm534, %v1827, 0
  %v1836 = vsel %vm534, %v1830, 0
  %1838 = vmatpush.msra.mxu0 0.0
  %1839 = vmatpush.msra.mxu0 0.0
  %1840 = vmatpush.msra.mxu0 0.0
  %1841 = vmatpush.msra.mxu0 0.0
  %1842 = vmatpush.msra.mxu0 0.0
  %1843 = vmatpush.msra.mxu0 0.0
  %1844 = vmatpush.msra.mxu0 0.0
  %1845 = vmatpush.msra.mxu0 0.0
  %1846 = vmatpush.msra.mxu0 0.0
  %1847 = vmatpush.msra.mxu0 0.0
  %1848 = vmatpush.msra.mxu0 0.0
  %1849 = vmatpush.msra.mxu0 0.0
  %1850 = vmatpush.msra.mxu0 %v1489
  %1851 = vmatpush.msra.mxu0 %v1488
  %1852 = vmatpush.msra.mxu0 %v1487
  %1853 = vmatpush.msra.mxu0 %v1486
  %1854 = vmatmul.f32.gmra.mxu0 %v1833
  %v1855 = vpop.f32.mrf.mxu0
  %v1856 = vadd.f32 0.0, %v1855
  %1857 = vmatmul.f32.gmra.mxu0 %v1836
  %v1858 = vpop.f32.mrf.mxu0
  %v1859 = vadd.f32 0.0, %v1858
  %1860 = vdwg.mxu0
  %v1861 = vadd.f32 %v1731, %v1856
  %v1862 = vadd.f32 %v1734, %v1859
  %1863 = vrot.lane.b32.xlu0 %v1475, 32
  %v1864 = vpop.permute.xlu0 %1863
  %1865 = vrot.lane.b32.xlu0 %v1476, 32
  %v1866 = vpop.permute.xlu0 %1865
  %1867 = vrot.lane.b32.xlu0 %v1447, 32
  %v1868 = vpop.permute.xlu0 %1867
  %1869 = vrot.lane.b32.xlu0 %v1450, 32
  %v1870 = vpop.permute.xlu0 %1869
  %v1871 = vsel %vm534, %v1864, 0
  %v1873 = vsel %vm534, %v1866, 0
  %v1875 = vsel %vm534, %v1868, 0
  %v1877 = vsel %vm534, %v1870, 0
  %1879 = vmatpush.xpose.msra.mxu0 0.0
  %1880 = vmatpush.xpose.msra.mxu0 0.0
  %1881 = vmatpush.xpose.msra.mxu0 0.0
  %1882 = vmatpush.xpose.msra.mxu0 0.0
  %1883 = vmatpush.xpose.msra.mxu0 0.0
  %1884 = vmatpush.xpose.msra.mxu0 0.0
  %1885 = vmatpush.xpose.msra.mxu0 0.0
  %1886 = vmatpush.xpose.msra.mxu0 0.0
  %1887 = vmatpush.xpose.msra.mxu0 0.0
  %1888 = vmatpush.xpose.msra.mxu0 0.0
  %1889 = vmatpush.xpose.msra.mxu0 0.0
  %1890 = vmatpush.xpose.msra.mxu0 0.0
  %1891 = vmatpush.xpose.msra.mxu0 0.0
  %1892 = vmatpush.xpose.msra.mxu0 0.0
  %1893 = vmatpush.xpose.msra.mxu0 %v1877
  %1894 = vmatpush.xpose.msra.mxu0 %v1875
  %1895 = vmatmul.f32.gmra.mxu0 %v1871
  %v1896 = vpop.f32.mrf.mxu0
  %v1897 = vadd.f32 %v389, %v1896
  %1898 = vmatmul.f32.gmra.mxu0 %v1873
  %v1899 = vpop.f32.mrf.mxu0
  %v1900 = vadd.f32 %v390, %v1899
  %1901 = vdwg.mxu0
  %v1902 = vsel %vm570, %v1897, -inf
  %1903 = vmax.xlane.f32.xlu0 %v1902
  %v1904 = vpop.xlane.xlu0 %1903
  %v1905 = vsel %vm570, %v1900, -inf
  %1906 = vmax.xlane.f32.xlu0 %v1905
  %v1907 = vpop.xlane.xlu0 %1906
  %v1908 = vsub.f32 %v1897, %v1904
  %v1909 = vsub.f32 %v1900, %v1907
  %v1910 = vmul.f32 %v1908, 1.442695
  %v1911 = vpow.pop %v1910
  %v1912 = vmul.f32 %v1909, 1.442695
  %v1913 = vpow.pop %v1912
  %v1914 = vsel %vm570, %v1911, 0.0
  %1915 = vadd.xlane.f32.xlu0 %v1914
  %v1916 = vpop.xlane.xlu0 %1915
  %v1917 = vsel %vm570, %v1913, 0.0
  %1918 = vadd.xlane.f32.xlu0 %v1917
  %v1919 = vpop.xlane.xlu0 %1918
  %v1920 = vrcp.pop %v1916
  %v1921 = vrcp.pop %v1919
  %v1922 = vmul.f32 %v1911, %v1920
  %v1923 = vmul.f32 %v1913, %v1921
  %1924 = vrot.lane.b32.xlu0 %v1470, 32
  %v1925 = vpop.permute.xlu0 %1924
  %1926 = vrot.lane.b32.xlu0 %v1473, 32
  %v1927 = vpop.permute.xlu0 %1926
  %v1931 = vsel %vm570, %v1922, 0
  %v1934 = vsel %vm570, %v1923, 0
  %1936 = vmatpush.msra.mxu0 0.0
  %1937 = vmatpush.msra.mxu0 0.0
  %1938 = vmatpush.msra.mxu0 0.0
  %1939 = vmatpush.msra.mxu0 0.0
  %1940 = vmatpush.msra.mxu0 0.0
  %1941 = vmatpush.msra.mxu0 0.0
  %1942 = vmatpush.msra.mxu0 0.0
  %1943 = vmatpush.msra.mxu0 0.0
  %1944 = vmatpush.msra.mxu0 0.0
  %1945 = vmatpush.msra.mxu0 0.0
  %1946 = vmatpush.msra.mxu0 0.0
  %1947 = vmatpush.msra.mxu0 0.0
  %1948 = vmatpush.msra.mxu0 0.0
  %1949 = vmatpush.msra.mxu0 0.0
  %1950 = vmatpush.msra.mxu0 %v1927
  %1951 = vmatpush.msra.mxu0 %v1925
  %1952 = vmatmul.f32.gmra.mxu0 %v1931
  %v1953 = vpop.f32.mrf.mxu0
  %v1954 = vadd.f32 0.0, %v1953
  %1955 = vmatmul.f32.gmra.mxu0 %v1934
  %v1956 = vpop.f32.mrf.mxu0
  %v1957 = vadd.f32 0.0, %v1956
  %1958 = vdwg.mxu0
  %v1960 = vsel %vm534, %v1954, 0
  %v1963 = vsel %vm534, %v1957, 0
  %1965 = vmatpush.msra.mxu0 0.0
  %1966 = vmatpush.msra.mxu0 0.0
  %1967 = vmatpush.msra.mxu0 0.0
  %1968 = vmatpush.msra.mxu0 0.0
  %1969 = vmatpush.msra.mxu0 0.0
  %1970 = vmatpush.msra.mxu0 0.0
  %1971 = vmatpush.msra.mxu0 0.0
  %1972 = vmatpush.msra.mxu0 0.0
  %1973 = vmatpush.msra.mxu0 0.0
  %1974 = vmatpush.msra.mxu0 0.0
  %1975 = vmatpush.msra.mxu0 0.0
  %1976 = vmatpush.msra.mxu0 0.0
  %1977 = vmatpush.msra.mxu0 %v1493
  %1978 = vmatpush.msra.mxu0 %v1492
  %1979 = vmatpush.msra.mxu0 %v1491
  %1980 = vmatpush.msra.mxu0 %v1490
  %1981 = vmatmul.f32.gmra.mxu0 %v1960
  %v1982 = vpop.f32.mrf.mxu0
  %v1983 = vadd.f32 0.0, %v1982
  %1984 = vmatmul.f32.gmra.mxu0 %v1963
  %v1985 = vpop.f32.mrf.mxu0
  %v1986 = vadd.f32 0.0, %v1985
  %1987 = vdwg.mxu0
  %v1988 = vadd.f32 %v1861, %v1983
  %v1989 = vadd.f32 %v1862, %v1986
  %s1990 = scalar_lea.vmem %s8, 1
  %v1991 = vld [vmem:[%s1990] sm:$0x1]
  %v1993 = vperm.slane %v1991, 0
  %v1995 = vadd.f32 %v1988, %v1993
  %v1996 = vadd.f32 %v1989, %v1993
  %v1997 = vadd.f32 %v1995, %v1346
  %v1998 = vadd.f32 %v1996, %v1347
  %s1999 = scalar_lea.vmem %s9, 1
  %v2000 = vld [vmem:[%s1999] sm:$0x1]
  %s2001 = scalar_lea.vmem %s10, 1
  %v2002 = vld [vmem:[%s2001] sm:$0x1]
  %2003 = vadd.xlane.f32.xlu0 %v1997
  %v2004 = vpop.xlane.xlu0 %2003
  %2005 = vadd.xlane.f32.xlu0 %v1998
  %v2006 = vpop.xlane.xlu0 %2005
  %v2007 = vmul.f32 %v2004, %v328
  %v2008 = vmul.f32 %v2006, %v328
  %v2009 = vsub.f32 %v1997, %v2007
  %v2010 = vsub.f32 %v1998, %v2008
  %v2011 = vmul.f32 %v2009, %v2009
  %v2012 = vmul.f32 %v2010, %v2010
  %2013 = vadd.xlane.f32.xlu0 %v2011
  %v2014 = vpop.xlane.xlu0 %2013
  %2015 = vadd.xlane.f32.xlu0 %v2012
  %v2016 = vpop.xlane.xlu0 %2015
  %v2017 = vmul.f32 %v2014, %v328
  %v2018 = vmul.f32 %v2016, %v328
  %v2019 = vadd.f32 %v2017, 1e-05
  %v2020 = vadd.f32 %v2018, 1e-05
  %v2021 = vrsqrt.pop %v2019
  %v2022 = vmul.f32 %v2021, %v2019
  %v2023 = vmul.f32 %v2022, %v2021
  %v2024 = vmul.f32 0.5, %v2023
  %v2025 = vsub.f32 1.5, %v2024
  %v2026 = vmul.f32 %v2021, %v2025
  %vm2027 = vweird.f32 %v2019
  %vm2028 = vweird.f32 %v2021
  %vm2029 = vmor %vm2027, %vm2028
  %v2030 = vsel %vm2029, %v2021, %v2026
  %v2031 = vrsqrt.pop %v2020
  %v2032 = vmul.f32 %v2031, %v2020
  %v2033 = vmul.f32 %v2032, %v2031
  %v2034 = vmul.f32 0.5, %v2033
  %v2035 = vsub.f32 1.5, %v2034
  %v2036 = vmul.f32 %v2031, %v2035
  %vm2037 = vweird.f32 %v2020
  %vm2038 = vweird.f32 %v2031
  %vm2039 = vmor %vm2037, %vm2038
  %v2040 = vsel %vm2039, %v2031, %v2036
  %v2041 = vmul.f32 %v2009, %v2030
  %v2042 = vmul.f32 %v2010, %v2040
  %v2044 = vperm.slane %v2000, 0
  %v2046 = vmul.f32 %v2041, %v2044
  %v2047 = vmul.f32 %v2042, %v2044
  %v2049 = vperm.slane %v2002, 0
  %v2051 = vadd.f32 %v2046, %v2049
  %v2052 = vadd.f32 %v2047, %v2049
  %s2053 = scalar_lea.vmem %s11, 256
  %v2054 = vld [vmem:[%s2053] sm:$0xff]
  %v2055 = vld [vmem:[%s2053 + $0x8] sm:$0xff]
  %v2056 = vld [vmem:[%s2053 + $0x10] sm:$0xff]
  %v2057 = vld [vmem:[%s2053 + $0x18] sm:$0xff]
  %v2058 = vld [vmem:[%s2053 + $0x20] sm:$0xff]
  %v2059 = vld [vmem:[%s2053 + $0x28] sm:$0xff]
  %v2060 = vld [vmem:[%s2053 + $0x30] sm:$0xff]
  %v2061 = vld [vmem:[%s2053 + $0x38] sm:$0xff]
  %v2062 = vld [vmem:[%s2053 + $0x40] sm:$0xff]
  %v2063 = vld [vmem:[%s2053 + $0x48] sm:$0xff]
  %v2064 = vld [vmem:[%s2053 + $0x50] sm:$0xff]
  %v2065 = vld [vmem:[%s2053 + $0x58] sm:$0xff]
  %v2066 = vld [vmem:[%s2053 + $0x60] sm:$0xff]
  %v2067 = vld [vmem:[%s2053 + $0x68] sm:$0xff]
  %v2068 = vld [vmem:[%s2053 + $0x70] sm:$0xff]
  %v2069 = vld [vmem:[%s2053 + $0x78] sm:$0xff]
  %v2070 = vld [vmem:[%s2053 + $0x80] sm:$0xff]
  %v2071 = vld [vmem:[%s2053 + $0x88] sm:$0xff]
  %v2072 = vld [vmem:[%s2053 + $0x90] sm:$0xff]
  %v2073 = vld [vmem:[%s2053 + $0x98] sm:$0xff]
  %v2074 = vld [vmem:[%s2053 + $0xa0] sm:$0xff]
  %v2075 = vld [vmem:[%s2053 + $0xa8] sm:$0xff]
  %v2076 = vld [vmem:[%s2053 + $0xb0] sm:$0xff]
  %v2077 = vld [vmem:[%s2053 + $0xb8] sm:$0xff]
  %v2078 = vld [vmem:[%s2053 + $0xc0] sm:$0xff]
  %v2079 = vld [vmem:[%s2053 + $0xc8] sm:$0xff]
  %v2080 = vld [vmem:[%s2053 + $0xd0] sm:$0xff]
  %v2081 = vld [vmem:[%s2053 + $0xd8] sm:$0xff]
  %v2082 = vld [vmem:[%s2053 + $0xe0] sm:$0xff]
  %v2083 = vld [vmem:[%s2053 + $0xe8] sm:$0xff]
  %v2084 = vld [vmem:[%s2053 + $0xf0] sm:$0xff]
  %v2085 = vld [vmem:[%s2053 + $0xf8] sm:$0xff]
  %s2086 = scalar_lea.vmem %s12, 2
  %v2087 = vld [vmem:[%s2086] sm:$0x3]
  %v2089 = vperm.slane %v2087, 0
  %v2090 = vperm.slane %v2087, 1
  %2093 = vmatpush.msra.mxu0 %v2084
  %2094 = vmatpush.msra.mxu0 %v2082
  %2095 = vmatpush.msra.mxu0 %v2080
  %2096 = vmatpush.msra.mxu0 %v2078
  %2097 = vmatpush.msra.mxu0 %v2076
  %2098 = vmatpush.msra.mxu0 %v2074
  %2099 = vmatpush.msra.mxu0 %v2072
  %2100 = vmatpush.msra.mxu0 %v2070
  %2101 = vmatpush.msra.mxu0 %v2068
  %2102 = vmatpush.msra.mxu0 %v2066
  %2103 = vmatpush.msra.mxu0 %v2064
  %2104 = vmatpush.msra.mxu0 %v2062
  %2105 = vmatpush.msra.mxu0 %v2060
  %2106 = vmatpush.msra.mxu0 %v2058
  %2107 = vmatpush.msra.mxu0 %v2056
  %2108 = vmatpush.msra.mxu0 %v2054
  %2109 = vmatmul.f32.gmra.mxu0 %v2051
  %v2110 = vpop.f32.mrf.mxu0
  %v2111 = vadd.f32 %v2089, %v2110
  %2112 = vmatmul.f32.gmra.mxu0 %v2052
  %v2113 = vpop.f32.mrf.mxu0
  %v2114 = vadd.f32 %v2089, %v2113
  %2115 = vdwg.mxu0
  %2116 = vmatpush.msra.mxu0 %v2085
  %2117 = vmatpush.msra.mxu0 %v2083
  %2118 = vmatpush.msra.mxu0 %v2081
  %2119 = vmatpush.msra.mxu0 %v2079
  %2120 = vmatpush.msra.mxu0 %v2077
  %2121 = vmatpush.msra.mxu0 %v2075
  %2122 = vmatpush.msra.mxu0 %v2073
  %2123 = vmatpush.msra.mxu0 %v2071
  %2124 = vmatpush.msra.mxu0 %v2069
  %2125 = vmatpush.msra.mxu0 %v2067
  %2126 = vmatpush.msra.mxu0 %v2065
  %2127 = vmatpush.msra.mxu0 %v2063
  %2128 = vmatpush.msra.mxu0 %v2061
  %2129 = vmatpush.msra.mxu0 %v2059
  %2130 = vmatpush.msra.mxu0 %v2057
  %2131 = vmatpush.msra.mxu0 %v2055
  %2132 = vmatmul.f32.gmra.mxu0 %v2051
  %v2133 = vpop.f32.mrf.mxu0
  %v2134 = vadd.f32 %v2090, %v2133
  %2135 = vmatmul.f32.gmra.mxu0 %v2052
  %v2136 = vpop.f32.mrf.mxu0
  %v2137 = vadd.f32 %v2090, %v2136
  %2138 = vdwg.mxu0
  %v2139 = vmul.f32 %v2111, %v2111
  %v2140 = vmul.f32 %v2134, %v2134
  %v2141 = vmul.f32 %v2114, %v2114
  %v2142 = vmul.f32 %v2137, %v2137
  %v2143 = vmul.f32 %v2111, %v2139
  %v2144 = vmul.f32 %v2134, %v2140
  %v2145 = vmul.f32 %v2114, %v2141
  %v2146 = vmul.f32 %v2137, %v2142
  %v2147 = vmul.f32 %v2143, 0.044715
  %v2148 = vmul.f32 %v2144, 0.044715
  %v2149 = vmul.f32 %v2145, 0.044715
  %v2150 = vmul.f32 %v2146, 0.044715
  %v2151 = vadd.f32 %v2111, %v2147
  %v2152 = vadd.f32 %v2134, %v2148
  %v2153 = vadd.f32 %v2114, %v2149
  %v2154 = vadd.f32 %v2137, %v2150
  %v2155 = vmul.f32 %v2151, 0.7978846
  %v2156 = vmul.f32 %v2152, 0.7978846
  %v2157 = vmul.f32 %v2153, 0.7978846
  %v2158 = vmul.f32 %v2154, 0.7978846
  %v2159 = vtanh.pop %v2155
  %v2160 = vtanh.pop %v2156
  %v2161 = vtanh.pop %v2157
  %v2162 = vtanh.pop %v2158
  %v2163 = vadd.f32 %v2159, 1.0
  %v2164 = vadd.f32 %v2160, 1.0
  %v2165 = vadd.f32 %v2161, 1.0
  %v2166 = vadd.f32 %v2162, 1.0
  %v2167 = vmul.f32 %v2163, 0.5
  %v2168 = vmul.f32 %v2164, 0.5
  %v2169 = vmul.f32 %v2165, 0.5
  %v2170 = vmul.f32 %v2166, 0.5
  %v2171 = vmul.f32 %v2111, %v2167
  %v2172 = vmul.f32 %v2134, %v2168
  %v2173 = vmul.f32 %v2114, %v2169
  %v2174 = vmul.f32 %v2137, %v2170
  %s2175 = scalar_lea.vmem %s13, 256
  %v2176 = vld [vmem:[%s2175] sm:$0xff]
  %v2177 = vld [vmem:[%s2175 + $0x8] sm:$0xff]
  %v2178 = vld [vmem:[%s2175 + $0x10] sm:$0xff]
  %v2179 = vld [vmem:[%s2175 + $0x18] sm:$0xff]
  %v2180 = vld [vmem:[%s2175 + $0x20] sm:$0xff]
  %v2181 = vld [vmem:[%s2175 + $0x28] sm:$0xff]
  %v2182 = vld [vmem:[%s2175 + $0x30] sm:$0xff]
  %v2183 = vld [vmem:[%s2175 + $0x38] sm:$0xff]
  %v2184 = vld [vmem:[%s2175 + $0x40] sm:$0xff]
  %v2185 = vld [vmem:[%s2175 + $0x48] sm:$0xff]
  %v2186 = vld [vmem:[%s2175 + $0x50] sm:$0xff]
  %v2187 = vld [vmem:[%s2175 + $0x58] sm:$0xff]
  %v2188 = vld [vmem:[%s2175 + $0x60] sm:$0xff]
  %v2189 = vld [vmem:[%s2175 + $0x68] sm:$0xff]
  %v2190 = vld [vmem:[%s2175 + $0x70] sm:$0xff]
  %v2191 = vld [vmem:[%s2175 + $0x78] sm:$0xff]
  %v2192 = vld [vmem:[%s2175 + $0x80] sm:$0xff]
  %v2193 = vld [vmem:[%s2175 + $0x88] sm:$0xff]
  %v2194 = vld [vmem:[%s2175 + $0x90] sm:$0xff]
  %v2195 = vld [vmem:[%s2175 + $0x98] sm:$0xff]
  %v2196 = vld [vmem:[%s2175 + $0xa0] sm:$0xff]
  %v2197 = vld [vmem:[%s2175 + $0xa8] sm:$0xff]
  %v2198 = vld [vmem:[%s2175 + $0xb0] sm:$0xff]
  %v2199 = vld [vmem:[%s2175 + $0xb8] sm:$0xff]
  %v2200 = vld [vmem:[%s2175 + $0xc0] sm:$0xff]
  %v2201 = vld [vmem:[%s2175 + $0xc8] sm:$0xff]
  %v2202 = vld [vmem:[%s2175 + $0xd0] sm:$0xff]
  %v2203 = vld [vmem:[%s2175 + $0xd8] sm:$0xff]
  %v2204 = vld [vmem:[%s2175 + $0xe0] sm:$0xff]
  %v2205 = vld [vmem:[%s2175 + $0xe8] sm:$0xff]
  %v2206 = vld [vmem:[%s2175 + $0xf0] sm:$0xff]
  %v2207 = vld [vmem:[%s2175 + $0xf8] sm:$0xff]
  %s2208 = scalar_lea.vmem %s14, 1
  %v2209 = vld [vmem:[%s2208] sm:$0x1]
  %v2211 = vperm.slane %v2209, 0
  %2213 = vmatpush.msra.mxu0 %v2191
  %2214 = vmatpush.msra.mxu0 %v2190
  %2215 = vmatpush.msra.mxu0 %v2189
  %2216 = vmatpush.msra.mxu0 %v2188
  %2217 = vmatpush.msra.mxu0 %v2187
  %2218 = vmatpush.msra.mxu0 %v2186
  %2219 = vmatpush.msra.mxu0 %v2185
  %2220 = vmatpush.msra.mxu0 %v2184
  %2221 = vmatpush.msra.mxu0 %v2183
  %2222 = vmatpush.msra.mxu0 %v2182
  %2223 = vmatpush.msra.mxu0 %v2181
  %2224 = vmatpush.msra.mxu0 %v2180
  %2225 = vmatpush.msra.mxu0 %v2179
  %2226 = vmatpush.msra.mxu0 %v2178
  %2227 = vmatpush.msra.mxu0 %v2177
  %2228 = vmatpush.msra.mxu0 %v2176
  %2229 = vmatmul.f32.gmra.mxu0 %v2171
  %v2230 = vpop.f32.mrf.mxu0
  %v2231 = vadd.f32 %v2211, %v2230
  %2232 = vmatmul.f32.gmra.mxu0 %v2173
  %v2233 = vpop.f32.mrf.mxu0
  %v2234 = vadd.f32 %v2211, %v2233
  %2235 = vdwg.mxu0
  %2236 = vmatpush.msra.mxu0 %v2207
  %2237 = vmatpush.msra.mxu0 %v2206
  %2238 = vmatpush.msra.mxu0 %v2205
  %2239 = vmatpush.msra.mxu0 %v2204
  %2240 = vmatpush.msra.mxu0 %v2203
  %2241 = vmatpush.msra.mxu0 %v2202
  %2242 = vmatpush.msra.mxu0 %v2201
  %2243 = vmatpush.msra.mxu0 %v2200
  %2244 = vmatpush.msra.mxu0 %v2199
  %2245 = vmatpush.msra.mxu0 %v2198
  %2246 = vmatpush.msra.mxu0 %v2197
  %2247 = vmatpush.msra.mxu0 %v2196
  %2248 = vmatpush.msra.mxu0 %v2195
  %2249 = vmatpush.msra.mxu0 %v2194
  %2250 = vmatpush.msra.mxu0 %v2193
  %2251 = vmatpush.msra.mxu0 %v2192
  %2252 = vmatmul.f32.gmra.mxu0 %v2172
  %v2253 = vpop.f32.mrf.mxu0
  %v2254 = vadd.f32 %v2231, %v2253
  %2255 = vmatmul.f32.gmra.mxu0 %v2174
  %v2256 = vpop.f32.mrf.mxu0
  %v2257 = vadd.f32 %v2234, %v2256
  %2258 = vdwg.mxu0
  %v2259 = vadd.f32 %v2254, %v2051
  %v2260 = vadd.f32 %v2257, %v2052
  %s2261 = scalar_lea.vmem %s15, 1
  %v2262 = vld [vmem:[%s2261] sm:$0x1]
  %s2263 = scalar_lea.vmem %s16, 1
  %v2264 = vld [vmem:[%s2263] sm:$0x1]
  %2265 = vadd.xlane.f32.xlu0 %v2259
  %v2266 = vpop.xlane.xlu0 %2265
  %2267 = vadd.xlane.f32.xlu0 %v2260
  %v2268 = vpop.xlane.xlu0 %2267
  %v2269 = vmul.f32 %v2266, %v328
  %v2270 = vmul.f32 %v2268, %v328
  %v2271 = vsub.f32 %v2259, %v2269
  %v2272 = vsub.f32 %v2260, %v2270
  %v2273 = vmul.f32 %v2271, %v2271
  %v2274 = vmul.f32 %v2272, %v2272
  %2275 = vadd.xlane.f32.xlu0 %v2273
  %v2276 = vpop.xlane.xlu0 %2275
  %2277 = vadd.xlane.f32.xlu0 %v2274
  %v2278 = vpop.xlane.xlu0 %2277
  %v2279 = vmul.f32 %v2276, %v328
  %v2280 = vmul.f32 %v2278, %v328
  %v2281 = vadd.f32 %v2279, 1e-05
  %v2282 = vadd.f32 %v2280, 1e-05
  %v2283 = vrsqrt.pop %v2281
  %v2284 = vmul.f32 %v2283, %v2281
  %v2285 = vmul.f32 %v2284, %v2283
  %v2286 = vmul.f32 0.5, %v2285
  %v2287 = vsub.f32 1.5, %v2286
  %v2288 = vmul.f32 %v2283, %v2287
  %vm2289 = vweird.f32 %v2281
  %vm2290 = vweird.f32 %v2283
  %vm2291 = vmor %vm2289, %vm2290
  %v2292 = vsel %vm2291, %v2283, %v2288
  %v2293 = vrsqrt.pop %v2282
  %v2294 = vmul.f32 %v2293, %v2282
  %v2295 = vmul.f32 %v2294, %v2293
  %v2296 = vmul.f32 0.5, %v2295
  %v2297 = vsub.f32 1.5, %v2296
  %v2298 = vmul.f32 %v2293, %v2297
  %vm2299 = vweird.f32 %v2282
  %vm2300 = vweird.f32 %v2293
  %vm2301 = vmor %vm2299, %vm2300
  %v2302 = vsel %vm2301, %v2293, %v2298
  %v2303 = vmul.f32 %v2271, %v2292
  %v2304 = vmul.f32 %v2272, %v2302
  %v2306 = vperm.slane %v2262, 0
  %v2308 = vmul.f32 %v2303, %v2306
  %v2309 = vmul.f32 %v2304, %v2306
  %v2311 = vperm.slane %v2264, 0
  %v2313 = vadd.f32 %v2308, %v2311
  %v2314 = vadd.f32 %v2309, %v2311
  %v2315 = vld [vmem:[%s17] sm:$0xff]
  %v2316 = vld [vmem:[%s17 + $0x8] sm:$0xff]
  %v2317 = vld [vmem:[%s17 + $0x10] sm:$0xff]
  %v2318 = vld [vmem:[%s17 + $0x18] sm:$0xff]
  %v2319 = vld [vmem:[%s17 + $0x20] sm:$0xff]
  %v2320 = vld [vmem:[%s17 + $0x28] sm:$0xff]
  %v2321 = vld [vmem:[%s17 + $0x30] sm:$0xff]
  %v2322 = vld [vmem:[%s17 + $0x38] sm:$0xff]
  %v2323 = vld [vmem:[%s17 + $0x40] sm:$0xff]
  %v2324 = vld [vmem:[%s17 + $0x48] sm:$0xff]
  %v2325 = vld [vmem:[%s17 + $0x50] sm:$0xff]
  %v2326 = vld [vmem:[%s17 + $0x58] sm:$0xff]
  %v2327 = vld [vmem:[%s17 + $0x60] sm:$0xff]
  %v2328 = vld [vmem:[%s17 + $0x68] sm:$0xff]
  %v2329 = vld [vmem:[%s17 + $0x70] sm:$0xff]
  %v2330 = vld [vmem:[%s17 + $0x78] sm:$0xff]
  %v2331 = vld [vmem:[%s18] sm:$0x1]
  %v2333 = vperm.slane %v2331, 0
  %2335 = vmatpush.msra.mxu0 %v2330
  %2336 = vmatpush.msra.mxu0 %v2329
  %2337 = vmatpush.msra.mxu0 %v2328
  %2338 = vmatpush.msra.mxu0 %v2327
  %2339 = vmatpush.msra.mxu0 %v2326
  %2340 = vmatpush.msra.mxu0 %v2325
  %2341 = vmatpush.msra.mxu0 %v2324
  %2342 = vmatpush.msra.mxu0 %v2323
  %2343 = vmatpush.msra.mxu0 %v2322
  %2344 = vmatpush.msra.mxu0 %v2321
  %2345 = vmatpush.msra.mxu0 %v2320
  %2346 = vmatpush.msra.mxu0 %v2319
  %2347 = vmatpush.msra.mxu0 %v2318
  %2348 = vmatpush.msra.mxu0 %v2317
  %2349 = vmatpush.msra.mxu0 %v2316
  %2350 = vmatpush.msra.mxu0 %v2315
  %2351 = vmatmul.f32.gmra.mxu0 %v2313
  %v2352 = vpop.f32.mrf.mxu0
  %v2353 = vadd.f32 %v2333, %v2352
  %2354 = vmatmul.f32.gmra.mxu0 %v2314
  %v2355 = vpop.f32.mrf.mxu0
  %v2356 = vadd.f32 %v2333, %v2355
  %2357 = vdwg.mxu0
  %v2358 = vmax.f32 %v2353, 0.0
  %v2359 = vmax.f32 %v2356, 0.0
  %v2360 = vld [vmem:[%s19] sm:$0xff]
  %v2361 = vld [vmem:[%s19 + $0x8] sm:$0xff]
  %v2362 = vld [vmem:[%s19 + $0x10] sm:$0xff]
  %v2363 = vld [vmem:[%s19 + $0x18] sm:$0xff]
  %v2364 = vld [vmem:[%s19 + $0x20] sm:$0xff]
  %v2365 = vld [vmem:[%s19 + $0x28] sm:$0xff]
  %v2366 = vld [vmem:[%s19 + $0x30] sm:$0xff]
  %v2367 = vld [vmem:[%s19 + $0x38] sm:$0xff]
  %v2368 = vld [vmem:[%s19 + $0x40] sm:$0xff]
  %v2369 = vld [vmem:[%s19 + $0x48] sm:$0xff]
  %v2370 = vld [vmem:[%s19 + $0x50] sm:$0xff]
  %v2371 = vld [vmem:[%s19 + $0x58] sm:$0xff]
  %v2372 = vld [vmem:[%s19 + $0x60] sm:$0xff]
  %v2373 = vld [vmem:[%s19 + $0x68] sm:$0xff]
  %v2374 = vld [vmem:[%s19 + $0x70] sm:$0xff]
  %v2375 = vld [vmem:[%s19 + $0x78] sm:$0xff]
  %v2376 = vld [vmem:[%s20] sm:$0x1]
  %v2378 = vperm.slane %v2376, 0
  %2380 = vmatpush.msra.mxu0 %v2375
  %2381 = vmatpush.msra.mxu0 %v2374
  %2382 = vmatpush.msra.mxu0 %v2373
  %2383 = vmatpush.msra.mxu0 %v2372
  %2384 = vmatpush.msra.mxu0 %v2371
  %2385 = vmatpush.msra.mxu0 %v2370
  %2386 = vmatpush.msra.mxu0 %v2369
  %2387 = vmatpush.msra.mxu0 %v2368
  %2388 = vmatpush.msra.mxu0 %v2367
  %2389 = vmatpush.msra.mxu0 %v2366
  %2390 = vmatpush.msra.mxu0 %v2365
  %2391 = vmatpush.msra.mxu0 %v2364
  %2392 = vmatpush.msra.mxu0 %v2363
  %2393 = vmatpush.msra.mxu0 %v2362
  %2394 = vmatpush.msra.mxu0 %v2361
  %2395 = vmatpush.msra.mxu0 %v2360
  %2396 = vmatmul.f32.gmra.mxu0 %v2358
  %v2397 = vpop.f32.mrf.mxu0
  %v2398 = vadd.f32 %v2378, %v2397
  %2399 = vmatmul.f32.gmra.mxu0 %v2359
  %v2400 = vpop.f32.mrf.mxu0
  %v2401 = vadd.f32 %v2378, %v2400
  %2402 = vdwg.mxu0
  %v2403 = vmul.f32 %v2398, %v2398
  %v2404 = vmul.f32 %v2401, %v2401
  %2405 = vadd.xlane.f32.xlu0 %v2403
  %v2406 = vpop.xlane.xlu0 %2405
  %2407 = vadd.xlane.f32.xlu0 %v2404
  %v2408 = vpop.xlane.xlu0 %2407
  %v2409 = vmax.f32 %v2406, 1e-24
  %v2410 = vmax.f32 %v2408, 1e-24
  %v2411 = vrsqrt.pop %v2409
  %v2412 = vmul.f32 %v2411, %v2409
  %v2413 = vmul.f32 %v2412, %v2411
  %v2414 = vmul.f32 0.5, %v2413
  %v2415 = vsub.f32 1.5, %v2414
  %v2416 = vmul.f32 %v2411, %v2415
  %vm2417 = vweird.f32 %v2409
  %vm2418 = vweird.f32 %v2411
  %vm2419 = vmor %vm2417, %vm2418
  %v2420 = vsel %vm2419, %v2411, %v2416
  %v2421 = vrsqrt.pop %v2410
  %v2422 = vmul.f32 %v2421, %v2410
  %v2423 = vmul.f32 %v2422, %v2421
  %v2424 = vmul.f32 0.5, %v2423
  %v2425 = vsub.f32 1.5, %v2424
  %v2426 = vmul.f32 %v2421, %v2425
  %vm2427 = vweird.f32 %v2410
  %vm2428 = vweird.f32 %v2421
  %vm2429 = vmor %vm2427, %vm2428
  %v2430 = vsel %vm2429, %v2421, %v2426
  %v2431 = vmul.f32 %v2398, %v2420
  %v2432 = vmul.f32 %v2401, %v2430
  %2433 = vst [vmem:[%s21] sm:$0xff] %v2431
  %2434 = vst [vmem:[%s21 + $0x8] sm:$0xff] %v2432
  // Predicated region
  $region86: #{forward.1} parent=0 // pred_check
    _
  $region87: #{forward.1} parent=0 // pred_check_branch
    %2436 = sbr.rel (0) target = $region89
  $region88: #{forward.1} parent=0 // pred_region
    _
  $region89: #{forward.1} parent=0 // pred_fallthru
    _
  // Predicated region
  $region90: #{forward.1} parent=0 // pred_check
    _
  $region91: #{forward.1} parent=0 // pred_check_branch
    %2438 = sbr.rel (0) target = $region93
  $region92: #{forward.1} parent=0 // pred_region
    _
  $region93: #{forward.1} parent=0 // pred_fallthru
    _

</llo_original>
